<compile_context>
chip_gen: v6e
topology: v6e:2x2x1
jax: 0.10.0
libtpu: 0.0.40
codegen_flags: <defaults>
</compile_context>

<pallas_src>
import functools

import jax
import jax.numpy as jnp
from jax.experimental import pallas as pl
from jax.experimental.pallas import tpu as pltpu


LANE = 128
NEG_PAD = -1e30  # padded-class-lane fill for the noise; |NEG_PAD|/tau stays finite in f32


def _round_up(n, m=LANE):
    return (n + m - 1) // m * m


# ----------------------------------------------------------------------------
# Fused kernel: 3x (bf16 matmul + folded-BN affine [+ ReLU]) -> logits, then k
# unrolled iterations of gumbel_softmax(dim=1, tau, hard=False) with a running
# elementwise max.  Everything stays in vregs/VMEM; one lane-dense store.
# ----------------------------------------------------------------------------
def _masker_kernel(x_ref, w1_ref, s1_ref, t1_ref,
                   w2_ref, s2_ref, t2_ref,
                   w3_ref, s3_ref, t3_ref,
                   noise_ref, out_ref, *, k, tau):
    # ---- fused MLP (eval-mode dropout == identity; bias+BN folded into scale/shift)
    x = x_ref[...]                                                    # (Bt, in_p) bf16
    h = jnp.dot(x, w1_ref[...], preferred_element_type=jnp.float32)   # (Bt, mid_p) f32
    h = jnp.maximum(h * s1_ref[...] + t1_ref[...], 0.0)
    h = jnp.dot(h.astype(jnp.bfloat16), w2_ref[...],
                preferred_element_type=jnp.float32)
    h = jnp.maximum(h * s2_ref[...] + t2_ref[...], 0.0)
    logits = jnp.dot(h.astype(jnp.bfloat16), w3_ref[...],
                     preferred_element_type=jnp.float32)              # (Bt, c_p) f32
    logits = logits * s3_ref[...] + t3_ref[...]                       # pad lanes stay 0

    inv_tau = jnp.float32(1.0 / tau)
    mask = logits
    z = jnp.zeros_like(logits)

    # Static Python loop -> fully unrolled (k is small): lets the LLO scheduler
    # interleave EUP(exp/rcp) / XLU(max/sum) / VPU work across iterations and
    # across the Bt independent row-vregs.
    for i in range(k):
        # Padded class lanes carry NEG_PAD in the noise, so they exp() to 0 and
        # are excluded from the softmax without any per-iteration masking op.
        g = (mask + noise_ref[i]) * inv_tau
        if i == 0:
            # Only the raw BN'd logits need stabilization; afterwards
            # mask ∈ [0,1] so g stays far below the f32 exp overflow point.
            g = g - jnp.max(g, axis=1, keepdims=True)
        e = jnp.exp(g)
        denom = jnp.sum(e, axis=1, keepdims=True)
        mask = e * pl.reciprocal(denom, approx=False)   # exact 1/x on the EUP
        z = jnp.maximum(mask, z)

    out_ref[...] = z                                    # lane-dense (Bt, c_p) store


def masker_pallas(x_p, w1, s1, t1, w2, s2, t2, w3, s3, t3, noise_p, *, tau, b_tile):
    B, in_p = x_p.shape
    mid_p = w1.shape[1]
    c_p = w3.shape[1]
    k = int(noise_p.shape[0])
    assert B % b_tile == 0, "batch must be a multiple of the batch tile"

    kern = functools.partial(_masker_kernel, k=k, tau=tau)

    def const(shape):
        # Grid-invariant operand: one DMA, then VMEM-resident across all steps.
        n = len(shape)
        return pl.BlockSpec(shape, lambda b, n=n: (0,) * n)

    return pl.pallas_call(
        kern,
        out_shape=jax.ShapeDtypeStruct((B, c_p), jnp.float32),
        grid_spec=pltpu.PrefetchScalarGridSpec(
            num_scalar_prefetch=0,
            grid=(B // b_tile,),
            in_specs=[
                pl.BlockSpec((b_tile, in_p), lambda b: (b, 0)),
                const((in_p, mid_p)), const((1, mid_p)), const((1, mid_p)),
                const((mid_p, mid_p)), const((1, mid_p)), const((1, mid_p)),
                const((mid_p, c_p)), const((1, c_p)), const((1, c_p)),
                pl.BlockSpec((k, b_tile, c_p), lambda b: (0, b, 0)),
            ],
            out_specs=pl.BlockSpec((b_tile, c_p), lambda b: (b, 0)),
        ),
        # Batch axis is embarrassingly parallel -> sharded across both TCs on v7x.
        compiler_params=pltpu.CompilerParams(dimension_semantics=("parallel",)),
    )(x_p, w1, s1, t1, w2, s2, t2, w3, s3, t3, noise_p)


@functools.partial(jax.jit, static_argnames=("tau", "b_tile"))
def masker_forward(x_p, prep, noise_p, *, tau=0.5, b_tile=128):
    """Hot path: exactly one pallas_call; inputs pre-padded/cast, output padded."""
    return masker_pallas(x_p, prep["w1"], prep["s1"], prep["t1"],
                         prep["w2"], prep["s2"], prep["t2"],
                         prep["w3"], prep["s3"], prep["t3"],
                         noise_p, tau=tau, b_tile=b_tile)


# ----------------------------------------------------------------------------
# Parameter setup (deterministic, synthetic) + BN folding / lane padding glue
# ----------------------------------------------------------------------------
def init_params(key, in_dim, middle, num_classes):
    ks = jax.random.split(key, 20)
    p = {}
    # Linear weights in [in, out] layout (pre-transposed vs. PyTorch's [out, in]).
    p["w1"] = jax.random.normal(ks[0], (in_dim, middle), jnp.float32) * 0.05
    p["b1"] = jax.random.normal(ks[1], (middle,), jnp.float32) * 0.01
    p["w2"] = jax.random.normal(ks[2], (middle, middle), jnp.float32) * 0.05
    p["b2"] = jax.random.normal(ks[3], (middle,), jnp.float32) * 0.01
    p["w3"] = jax.random.normal(ks[4], (middle, num_classes), jnp.float32) * 0.05
    p["b3"] = jax.random.normal(ks[5], (num_classes,), jnp.float32) * 0.01
    # BatchNorm1d(middle, affine=True) x2 (running stats + gamma/beta).
    for j, n in ((6, "bn1"), (10, "bn2")):
        p[n + "_gamma"] = 1.0 + 0.1 * jax.random.normal(ks[j], (middle,), jnp.float32)
        p[n + "_beta"] = 0.1 * jax.random.normal(ks[j + 1], (middle,), jnp.float32)
        p[n + "_mean"] = 0.1 * jax.random.normal(ks[j + 2], (middle,), jnp.float32)
        p[n + "_var"] = 1.0 + 0.1 * jax.random.uniform(ks[j + 3], (middle,), jnp.float32)
    # Final BatchNorm1d(num_classes, affine=False): running stats only.
    p["bn3_mean"] = 0.1 * jax.random.normal(ks[14], (num_classes,), jnp.float32)
    p["bn3_var"] = 1.0 + 0.1 * jax.random.uniform(ks[15], (num_classes,), jnp.float32)
    return p


def fold_affine(bias, gamma, beta, mean, var, eps=1e-5):
    """bn(x @ W + bias) == (x @ W) * scale + shift  (eval mode, running stats)."""
    scale = gamma / jnp.sqrt(var + eps)
    shift = (bias - mean) * scale + beta
    return scale, shift


def _pad_to(a, shape):
    return jnp.pad(a, [(0, t - s) for s, t in zip(a.shape, shape)])


def prepare_params(p, in_dim, middle, num_classes):
    """Fold BN + Linear bias into per-feature (scale, shift), zero-pad every
    feature dim up to a multiple of 128 lanes and cast weights to bf16.
    Runs ONCE, off the hot path."""
    in_p, mid_p, c_p = _round_up(in_dim), _round_up(middle), _round_up(num_classes)

    s1, t1 = fold_affine(p["b1"], p["bn1_gamma"], p["bn1_beta"], p["bn1_mean"], p["bn1_var"])
    s2, t2 = fold_affine(p["b2"], p["bn2_gamma"], p["bn2_beta"], p["bn2_mean"], p["bn2_var"])
    ones = jnp.ones_like(p["bn3_mean"])
    zeros = jnp.zeros_like(p["bn3_mean"])
    s3, t3 = fold_affine(p["b3"], ones, zeros, p["bn3_mean"], p["bn3_var"])

    return {
        "w1": _pad_to(p["w1"], (in_p, mid_p)).astype(jnp.bfloat16),
        "s1": _pad_to(s1[None, :], (1, mid_p)),
        "t1": _pad_to(t1[None, :], (1, mid_p)),
        "w2": _pad_to(p["w2"], (mid_p, mid_p)).astype(jnp.bfloat16),
        "s2": _pad_to(s2[None, :], (1, mid_p)),
        "t2": _pad_to(t2[None, :], (1, mid_p)),
        "w3": _pad_to(p["w3"], (mid_p, c_p)).astype(jnp.bfloat16),
        "s3": _pad_to(s3[None, :], (1, c_p)),
        "t3": _pad_to(t3[None, :], (1, c_p)),
    }


# Pure-JAX reference mirroring the kernel math exactly (same bf16 weights, same
# padded operands, f32 accumulation) so the check isolates kernel correctness.
def masker_ref_padded(x_p, prep, noise_p, tau=0.5):
    h = jnp.dot(x_p, prep["w1"], preferred_element_type=jnp.float32)
    h = jnp.maximum(h * prep["s1"] + prep["t1"], 0.0)
    h = jnp.dot(h.astype(jnp.bfloat16), prep["w2"], preferred_element_type=jnp.float32)
    h = jnp.maximum(h * prep["s2"] + prep["t2"], 0.0)
    logits = jnp.dot(h.astype(jnp.bfloat16), prep["w3"], preferred_element_type=jnp.float32)
    logits = logits * prep["s3"] + prep["t3"]

    mask = logits
    z = jnp.zeros_like(logits)
    for i in range(noise_p.shape[0]):
        g = (mask + noise_p[i]) / tau
        if i == 0:
            g = g - jnp.max(g, axis=1, keepdims=True)
        e = jnp.exp(g)
        mask = e / jnp.sum(e, axis=1, keepdims=True)
        z = jnp.maximum(mask, z)
    return z


if __name__ == "__main__":
    # Small shapes consistent with the module (in_dim -> middle -> middle -> num_classes),
    # batch large enough to exercise the B tiling / parallel grid axis.
    B, in_dim, middle, num_classes, k = 256, 32, 64, 32, 16
    B_TILE = 128
    tau = 0.5

    key = jax.random.PRNGKey(0)
    k_param, k_input, k_noise = jax.random.split(key, 3)

    params = init_params(k_param, in_dim, middle, num_classes)
    prep = prepare_params(params, in_dim, middle, num_classes)
    in_p = prep["w1"].shape[0]
    c_p = prep["w3"].shape[1]

    f = jax.random.normal(k_input, (B, in_dim), jnp.float32)
    # Gumbel(0,1) noise as used by F.gumbel_softmax, one independent draw per iteration.
    noise = jax.random.gumbel(k_noise, (k, B, num_classes), jnp.float32)

    # Producer-side padding / casting (off the per-call hot path).  Padded class
    # lanes of the noise carry NEG_PAD so the in-kernel softmax ignores them.
    x_p = jnp.pad(f, ((0, 0), (0, in_p - in_dim))).astype(jnp.bfloat16)
    noise_p = jnp.pad(noise, ((0, 0), (0, 0), (0, c_p - num_classes)),
                      constant_values=NEG_PAD)

    z_pad = masker_forward(x_p, prep, noise_p, tau=tau, b_tile=B_TILE)
    z_pad = jax.block_until_ready(z_pad)
    z = z_pad[:, :num_classes]

    z_ref = masker_ref_padded(x_p, prep, noise_p, tau=tau)[:, :num_classes]

    assert z.shape == (B, num_classes)
    assert bool(jnp.all(jnp.isfinite(z)))
    assert jnp.allclose(z, z_ref, atol=2e-3, rtol=2e-3), "mismatch vs. pure-JAX reference"

    print("KERNEL_OK")
</pallas_src>

<mosaic_0001>
module attributes {stable_mosaic.version = 11 : i64} {
  func.func @_masker_kernel(%arg0: i32, %arg1: memref<128x128xbf16, #tpu.memory_space<vmem>>, %arg2: memref<128x128xbf16, #tpu.memory_space<vmem>>, %arg3: memref<1x128xf32, #tpu.memory_space<vmem>>, %arg4: memref<1x128xf32, #tpu.memory_space<vmem>>, %arg5: memref<128x128xbf16, #tpu.memory_space<vmem>>, %arg6: memref<1x128xf32, #tpu.memory_space<vmem>>, %arg7: memref<1x128xf32, #tpu.memory_space<vmem>>, %arg8: memref<128x128xbf16, #tpu.memory_space<vmem>>, %arg9: memref<1x128xf32, #tpu.memory_space<vmem>>, %arg10: memref<1x128xf32, #tpu.memory_space<vmem>>, %arg11: memref<16x128x128xf32, #tpu.memory_space<vmem>>, %arg12: memref<128x128xf32, #tpu.memory_space<vmem>>) attributes {dimension_semantics = [#tpu.dimension_semantics<parallel>], iteration_bounds = array<i64: 2>, scalar_prefetch = 0 : i64, scratch_operands = 0 : i64, tpu.core_type = #tpu.core_type<tc>, window_params = [{transform_indices = @transform_0, window_bounds = array<i64: 128, 128>}, {pipeline_mode = #tpu.pipeline_mode<synchronous>, transform_indices = @transform_1, window_bounds = array<i64: 128, 128>}, {pipeline_mode = #tpu.pipeline_mode<synchronous>, transform_indices = @transform_2, window_bounds = array<i64: 1, 128>}, {pipeline_mode = #tpu.pipeline_mode<synchronous>, transform_indices = @transform_3, window_bounds = array<i64: 1, 128>}, {pipeline_mode = #tpu.pipeline_mode<synchronous>, transform_indices = @transform_4, window_bounds = array<i64: 128, 128>}, {pipeline_mode = #tpu.pipeline_mode<synchronous>, transform_indices = @transform_5, window_bounds = array<i64: 1, 128>}, {pipeline_mode = #tpu.pipeline_mode<synchronous>, transform_indices = @transform_6, window_bounds = array<i64: 1, 128>}, {pipeline_mode = #tpu.pipeline_mode<synchronous>, transform_indices = @transform_7, window_bounds = array<i64: 128, 128>}, {pipeline_mode = #tpu.pipeline_mode<synchronous>, transform_indices = @transform_8, window_bounds = array<i64: 1, 128>}, {pipeline_mode = #tpu.pipeline_mode<synchronous>, transform_indices = @transform_9, window_bounds = array<i64: 1, 128>}, {transform_indices = @transform_10, window_bounds = array<i64: 16, 128, 128>}, {transform_indices = @transform_11, window_bounds = array<i64: 128, 128>}]} {
    %c0 = arith.constant 0 : index
    %c0_0 = arith.constant 0 : index
    %0 = vector.load %arg1[%c0, %c0_0] : memref<128x128xbf16, #tpu.memory_space<vmem>>, vector<128x128xbf16>
    %c0_1 = arith.constant 0 : index
    %c0_2 = arith.constant 0 : index
    %1 = vector.load %arg2[%c0_1, %c0_2] : memref<128x128xbf16, #tpu.memory_space<vmem>>, vector<128x128xbf16>
    %cst = arith.constant dense<0.000000e+00> : vector<128x128xf32>
    %2 = tpu.matmul %0, %1, %cst {dimension_numbers = #tpu.dot_dimension_numbers<[1], [0], [0], [1], [0, 0, 1, 1], [], []>} : vector<128x128xbf16>, vector<128x128xbf16>, vector<128x128xf32> -> vector<128x128xf32>
    %c0_3 = arith.constant 0 : index
    %c0_4 = arith.constant 0 : index
    %3 = vector.load %arg3[%c0_3, %c0_4] : memref<1x128xf32, #tpu.memory_space<vmem>>, vector<1x128xf32>
    %4 = vector.broadcast %3 : vector<1x128xf32> to vector<128x128xf32>
    %5 = arith.mulf %2, %4 : vector<128x128xf32>
    %c0_5 = arith.constant 0 : index
    %c0_6 = arith.constant 0 : index
    %6 = vector.load %arg4[%c0_5, %c0_6] : memref<1x128xf32, #tpu.memory_space<vmem>>, vector<1x128xf32>
    %7 = vector.broadcast %6 : vector<1x128xf32> to vector<128x128xf32>
    %8 = arith.addf %5, %7 : vector<128x128xf32>
    %cst_7 = arith.constant 0.000000e+00 : f32
    %9 = vector.broadcast %cst_7 : f32 to vector<128x128xf32>
    %10 = arith.maximumf %8, %9 : vector<128x128xf32>
    %11 = arith.truncf %10 : vector<128x128xf32> to vector<128x128xbf16>
    %c0_8 = arith.constant 0 : index
    %c0_9 = arith.constant 0 : index
    %12 = vector.load %arg5[%c0_8, %c0_9] : memref<128x128xbf16, #tpu.memory_space<vmem>>, vector<128x128xbf16>
    %cst_10 = arith.constant dense<0.000000e+00> : vector<128x128xf32>
    %13 = tpu.matmul %11, %12, %cst_10 {dimension_numbers = #tpu.dot_dimension_numbers<[1], [0], [0], [1], [0, 0, 1, 1], [], []>} : vector<128x128xbf16>, vector<128x128xbf16>, vector<128x128xf32> -> vector<128x128xf32>
    %c0_11 = arith.constant 0 : index
    %c0_12 = arith.constant 0 : index
    %14 = vector.load %arg6[%c0_11, %c0_12] : memref<1x128xf32, #tpu.memory_space<vmem>>, vector<1x128xf32>
    %15 = vector.broadcast %14 : vector<1x128xf32> to vector<128x128xf32>
    %16 = arith.mulf %13, %15 : vector<128x128xf32>
    %c0_13 = arith.constant 0 : index
    %c0_14 = arith.constant 0 : index
    %17 = vector.load %arg7[%c0_13, %c0_14] : memref<1x128xf32, #tpu.memory_space<vmem>>, vector<1x128xf32>
    %18 = vector.broadcast %17 : vector<1x128xf32> to vector<128x128xf32>
    %19 = arith.addf %16, %18 : vector<128x128xf32>
    %cst_15 = arith.constant 0.000000e+00 : f32
    %20 = vector.broadcast %cst_15 : f32 to vector<128x128xf32>
    %21 = arith.maximumf %19, %20 : vector<128x128xf32>
    %22 = arith.truncf %21 : vector<128x128xf32> to vector<128x128xbf16>
    %c0_16 = arith.constant 0 : index
    %c0_17 = arith.constant 0 : index
    %23 = vector.load %arg8[%c0_16, %c0_17] : memref<128x128xbf16, #tpu.memory_space<vmem>>, vector<128x128xbf16>
    %cst_18 = arith.constant dense<0.000000e+00> : vector<128x128xf32>
    %24 = tpu.matmul %22, %23, %cst_18 {dimension_numbers = #tpu.dot_dimension_numbers<[1], [0], [0], [1], [0, 0, 1, 1], [], []>} : vector<128x128xbf16>, vector<128x128xbf16>, vector<128x128xf32> -> vector<128x128xf32>
    %c0_19 = arith.constant 0 : index
    %c0_20 = arith.constant 0 : index
    %25 = vector.load %arg9[%c0_19, %c0_20] : memref<1x128xf32, #tpu.memory_space<vmem>>, vector<1x128xf32>
    %26 = vector.broadcast %25 : vector<1x128xf32> to vector<128x128xf32>
    %27 = arith.mulf %24, %26 : vector<128x128xf32>
    %c0_21 = arith.constant 0 : index
    %c0_22 = arith.constant 0 : index
    %28 = vector.load %arg10[%c0_21, %c0_22] : memref<1x128xf32, #tpu.memory_space<vmem>>, vector<1x128xf32>
    %29 = vector.broadcast %28 : vector<1x128xf32> to vector<128x128xf32>
    %30 = arith.addf %27, %29 : vector<128x128xf32>
    %cst_23 = arith.constant 0.000000e+00 : f32
    %31 = vector.broadcast %cst_23 : f32 to vector<128x128xf32>
    %c0_24 = arith.constant 0 : index
    %c0_25 = arith.constant 0 : index
    %c0_26 = arith.constant 0 : index
    %32 = vector.load %arg11[%c0_24, %c0_25, %c0_26] : memref<16x128x128xf32, #tpu.memory_space<vmem>>, vector<1x128x128xf32>
    %33 = vector.shape_cast %32 : vector<1x128x128xf32> to vector<128x128xf32>
    %34 = arith.addf %30, %33 : vector<128x128xf32>
    %cst_27 = arith.constant 2.000000e+00 : f32
    %35 = vector.broadcast %cst_27 : f32 to vector<128x128xf32>
    %36 = arith.mulf %34, %35 : vector<128x128xf32>
    %cst_28 = arith.constant dense<0xFF800000> : vector<128xf32>
    %37 = vector.multi_reduction <maximumf>, %36, %cst_28 [1] : vector<128x128xf32> to vector<128xf32>
    %38 = vector.shape_cast %37 : vector<128xf32> to vector<128x1xf32>
    %39 = vector.broadcast %38 : vector<128x1xf32> to vector<128x128xf32>
    %40 = arith.subf %36, %39 : vector<128x128xf32>
    %41 = math.exp %40 : vector<128x128xf32>
    %cst_29 = arith.constant dense<0.000000e+00> : vector<128xf32>
    %42 = vector.multi_reduction <add>, %41, %cst_29 [1] : vector<128x128xf32> to vector<128xf32>
    %43 = vector.shape_cast %42 : vector<128xf32> to vector<128x1xf32>
    %44 = tpu.reciprocal %43 : vector<128x1xf32> -> vector<128x1xf32>
    %45 = vector.broadcast %44 : vector<128x1xf32> to vector<128x128xf32>
    %46 = arith.mulf %41, %45 : vector<128x128xf32>
    %47 = arith.maximumf %46, %31 : vector<128x128xf32>
    %c1 = arith.constant 1 : index
    %c0_30 = arith.constant 0 : index
    %c0_31 = arith.constant 0 : index
    %48 = vector.load %arg11[%c1, %c0_30, %c0_31] : memref<16x128x128xf32, #tpu.memory_space<vmem>>, vector<1x128x128xf32>
    %49 = vector.shape_cast %48 : vector<1x128x128xf32> to vector<128x128xf32>
    %50 = arith.addf %46, %49 : vector<128x128xf32>
    %cst_32 = arith.constant 2.000000e+00 : f32
    %51 = vector.broadcast %cst_32 : f32 to vector<128x128xf32>
    %52 = arith.mulf %50, %51 : vector<128x128xf32>
    %53 = math.exp %52 : vector<128x128xf32>
    %cst_33 = arith.constant dense<0.000000e+00> : vector<128xf32>
    %54 = vector.multi_reduction <add>, %53, %cst_33 [1] : vector<128x128xf32> to vector<128xf32>
    %55 = vector.shape_cast %54 : vector<128xf32> to vector<128x1xf32>
    %56 = tpu.reciprocal %55 : vector<128x1xf32> -> vector<128x1xf32>
    %57 = vector.broadcast %56 : vector<128x1xf32> to vector<128x128xf32>
    %58 = arith.mulf %53, %57 : vector<128x128xf32>
    %59 = arith.maximumf %58, %47 : vector<128x128xf32>
    %c2 = arith.constant 2 : index
    %c0_34 = arith.constant 0 : index
    %c0_35 = arith.constant 0 : index
    %60 = vector.load %arg11[%c2, %c0_34, %c0_35] : memref<16x128x128xf32, #tpu.memory_space<vmem>>, vector<1x128x128xf32>
    %61 = vector.shape_cast %60 : vector<1x128x128xf32> to vector<128x128xf32>
    %62 = arith.addf %58, %61 : vector<128x128xf32>
    %cst_36 = arith.constant 2.000000e+00 : f32
    %63 = vector.broadcast %cst_36 : f32 to vector<128x128xf32>
    %64 = arith.mulf %62, %63 : vector<128x128xf32>
    %65 = math.exp %64 : vector<128x128xf32>
    %cst_37 = arith.constant dense<0.000000e+00> : vector<128xf32>
    %66 = vector.multi_reduction <add>, %65, %cst_37 [1] : vector<128x128xf32> to vector<128xf32>
    %67 = vector.shape_cast %66 : vector<128xf32> to vector<128x1xf32>
    %68 = tpu.reciprocal %67 : vector<128x1xf32> -> vector<128x1xf32>
    %69 = vector.broadcast %68 : vector<128x1xf32> to vector<128x128xf32>
    %70 = arith.mulf %65, %69 : vector<128x128xf32>
    %71 = arith.maximumf %70, %59 : vector<128x128xf32>
    %c3 = arith.constant 3 : index
    %c0_38 = arith.constant 0 : index
    %c0_39 = arith.constant 0 : index
    %72 = vector.load %arg11[%c3, %c0_38, %c0_39] : memref<16x128x128xf32, #tpu.memory_space<vmem>>, vector<1x128x128xf32>
    %73 = vector.shape_cast %72 : vector<1x128x128xf32> to vector<128x128xf32>
    %74 = arith.addf %70, %73 : vector<128x128xf32>
    %cst_40 = arith.constant 2.000000e+00 : f32
    %75 = vector.broadcast %cst_40 : f32 to vector<128x128xf32>
    %76 = arith.mulf %74, %75 : vector<128x128xf32>
    %77 = math.exp %76 : vector<128x128xf32>
    %cst_41 = arith.constant dense<0.000000e+00> : vector<128xf32>
    %78 = vector.multi_reduction <add>, %77, %cst_41 [1] : vector<128x128xf32> to vector<128xf32>
    %79 = vector.shape_cast %78 : vector<128xf32> to vector<128x1xf32>
    %80 = tpu.reciprocal %79 : vector<128x1xf32> -> vector<128x1xf32>
    %81 = vector.broadcast %80 : vector<128x1xf32> to vector<128x128xf32>
    %82 = arith.mulf %77, %81 : vector<128x128xf32>
    %83 = arith.maximumf %82, %71 : vector<128x128xf32>
    %c4 = arith.constant 4 : index
    %c0_42 = arith.constant 0 : index
    %c0_43 = arith.constant 0 : index
    %84 = vector.load %arg11[%c4, %c0_42, %c0_43] : memref<16x128x128xf32, #tpu.memory_space<vmem>>, vector<1x128x128xf32>
    %85 = vector.shape_cast %84 : vector<1x128x128xf32> to vector<128x128xf32>
    %86 = arith.addf %82, %85 : vector<128x128xf32>
    %cst_44 = arith.constant 2.000000e+00 : f32
    %87 = vector.broadcast %cst_44 : f32 to vector<128x128xf32>
    %88 = arith.mulf %86, %87 : vector<128x128xf32>
    %89 = math.exp %88 : vector<128x128xf32>
    %cst_45 = arith.constant dense<0.000000e+00> : vector<128xf32>
    %90 = vector.multi_reduction <add>, %89, %cst_45 [1] : vector<128x128xf32> to vector<128xf32>
    %91 = vector.shape_cast %90 : vector<128xf32> to vector<128x1xf32>
    %92 = tpu.reciprocal %91 : vector<128x1xf32> -> vector<128x1xf32>
    %93 = vector.broadcast %92 : vector<128x1xf32> to vector<128x128xf32>
    %94 = arith.mulf %89, %93 : vector<128x128xf32>
    %95 = arith.maximumf %94, %83 : vector<128x128xf32>
    %c5 = arith.constant 5 : index
    %c0_46 = arith.constant 0 : index
    %c0_47 = arith.constant 0 : index
    %96 = vector.load %arg11[%c5, %c0_46, %c0_47] : memref<16x128x128xf32, #tpu.memory_space<vmem>>, vector<1x128x128xf32>
    %97 = vector.shape_cast %96 : vector<1x128x128xf32> to vector<128x128xf32>
    %98 = arith.addf %94, %97 : vector<128x128xf32>
    %cst_48 = arith.constant 2.000000e+00 : f32
    %99 = vector.broadcast %cst_48 : f32 to vector<128x128xf32>
    %100 = arith.mulf %98, %99 : vector<128x128xf32>
    %101 = math.exp %100 : vector<128x128xf32>
    %cst_49 = arith.constant dense<0.000000e+00> : vector<128xf32>
    %102 = vector.multi_reduction <add>, %101, %cst_49 [1] : vector<128x128xf32> to vector<128xf32>
    %103 = vector.shape_cast %102 : vector<128xf32> to vector<128x1xf32>
    %104 = tpu.reciprocal %103 : vector<128x1xf32> -> vector<128x1xf32>
    %105 = vector.broadcast %104 : vector<128x1xf32> to vector<128x128xf32>
    %106 = arith.mulf %101, %105 : vector<128x128xf32>
    %107 = arith.maximumf %106, %95 : vector<128x128xf32>
    %c6 = arith.constant 6 : index
    %c0_50 = arith.constant 0 : index
    %c0_51 = arith.constant 0 : index
    %108 = vector.load %arg11[%c6, %c0_50, %c0_51] : memref<16x128x128xf32, #tpu.memory_space<vmem>>, vector<1x128x128xf32>
    %109 = vector.shape_cast %108 : vector<1x128x128xf32> to vector<128x128xf32>
    %110 = arith.addf %106, %109 : vector<128x128xf32>
    %cst_52 = arith.constant 2.000000e+00 : f32
    %111 = vector.broadcast %cst_52 : f32 to vector<128x128xf32>
    %112 = arith.mulf %110, %111 : vector<128x128xf32>
    %113 = math.exp %112 : vector<128x128xf32>
    %cst_53 = arith.constant dense<0.000000e+00> : vector<128xf32>
    %114 = vector.multi_reduction <add>, %113, %cst_53 [1] : vector<128x128xf32> to vector<128xf32>
    %115 = vector.shape_cast %114 : vector<128xf32> to vector<128x1xf32>
    %116 = tpu.reciprocal %115 : vector<128x1xf32> -> vector<128x1xf32>
    %117 = vector.broadcast %116 : vector<128x1xf32> to vector<128x128xf32>
    %118 = arith.mulf %113, %117 : vector<128x128xf32>
    %119 = arith.maximumf %118, %107 : vector<128x128xf32>
    %c7 = arith.constant 7 : index
    %c0_54 = arith.constant 0 : index
    %c0_55 = arith.constant 0 : index
    %120 = vector.load %arg11[%c7, %c0_54, %c0_55] : memref<16x128x128xf32, #tpu.memory_space<vmem>>, vector<1x128x128xf32>
    %121 = vector.shape_cast %120 : vector<1x128x128xf32> to vector<128x128xf32>
    %122 = arith.addf %118, %121 : vector<128x128xf32>
    %cst_56 = arith.constant 2.000000e+00 : f32
    %123 = vector.broadcast %cst_56 : f32 to vector<128x128xf32>
    %124 = arith.mulf %122, %123 : vector<128x128xf32>
    %125 = math.exp %124 : vector<128x128xf32>
    %cst_57 = arith.constant dense<0.000000e+00> : vector<128xf32>
    %126 = vector.multi_reduction <add>, %125, %cst_57 [1] : vector<128x128xf32> to vector<128xf32>
    %127 = vector.shape_cast %126 : vector<128xf32> to vector<128x1xf32>
    %128 = tpu.reciprocal %127 : vector<128x1xf32> -> vector<128x1xf32>
    %129 = vector.broadcast %128 : vector<128x1xf32> to vector<128x128xf32>
    %130 = arith.mulf %125, %129 : vector<128x128xf32>
    %131 = arith.maximumf %130, %119 : vector<128x128xf32>
    %c8 = arith.constant 8 : index
    %c0_58 = arith.constant 0 : index
    %c0_59 = arith.constant 0 : index
    %132 = vector.load %arg11[%c8, %c0_58, %c0_59] : memref<16x128x128xf32, #tpu.memory_space<vmem>>, vector<1x128x128xf32>
    %133 = vector.shape_cast %132 : vector<1x128x128xf32> to vector<128x128xf32>
    %134 = arith.addf %130, %133 : vector<128x128xf32>
    %cst_60 = arith.constant 2.000000e+00 : f32
    %135 = vector.broadcast %cst_60 : f32 to vector<128x128xf32>
    %136 = arith.mulf %134, %135 : vector<128x128xf32>
    %137 = math.exp %136 : vector<128x128xf32>
    %cst_61 = arith.constant dense<0.000000e+00> : vector<128xf32>
    %138 = vector.multi_reduction <add>, %137, %cst_61 [1] : vector<128x128xf32> to vector<128xf32>
    %139 = vector.shape_cast %138 : vector<128xf32> to vector<128x1xf32>
    %140 = tpu.reciprocal %139 : vector<128x1xf32> -> vector<128x1xf32>
    %141 = vector.broadcast %140 : vector<128x1xf32> to vector<128x128xf32>
    %142 = arith.mulf %137, %141 : vector<128x128xf32>
    %143 = arith.maximumf %142, %131 : vector<128x128xf32>
    %c9 = arith.constant 9 : index
    %c0_62 = arith.constant 0 : index
    %c0_63 = arith.constant 0 : index
    %144 = vector.load %arg11[%c9, %c0_62, %c0_63] : memref<16x128x128xf32, #tpu.memory_space<vmem>>, vector<1x128x128xf32>
    %145 = vector.shape_cast %144 : vector<1x128x128xf32> to vector<128x128xf32>
    %146 = arith.addf %142, %145 : vector<128x128xf32>
    %cst_64 = arith.constant 2.000000e+00 : f32
    %147 = vector.broadcast %cst_64 : f32 to vector<128x128xf32>
    %148 = arith.mulf %146, %147 : vector<128x128xf32>
    %149 = math.exp %148 : vector<128x128xf32>
    %cst_65 = arith.constant dense<0.000000e+00> : vector<128xf32>
    %150 = vector.multi_reduction <add>, %149, %cst_65 [1] : vector<128x128xf32> to vector<128xf32>
    %151 = vector.shape_cast %150 : vector<128xf32> to vector<128x1xf32>
    %152 = tpu.reciprocal %151 : vector<128x1xf32> -> vector<128x1xf32>
    %153 = vector.broadcast %152 : vector<128x1xf32> to vector<128x128xf32>
    %154 = arith.mulf %149, %153 : vector<128x128xf32>
    %155 = arith.maximumf %154, %143 : vector<128x128xf32>
    %c10 = arith.constant 10 : index
    %c0_66 = arith.constant 0 : index
    %c0_67 = arith.constant 0 : index
    %156 = vector.load %arg11[%c10, %c0_66, %c0_67] : memref<16x128x128xf32, #tpu.memory_space<vmem>>, vector<1x128x128xf32>
    %157 = vector.shape_cast %156 : vector<1x128x128xf32> to vector<128x128xf32>
    %158 = arith.addf %154, %157 : vector<128x128xf32>
    %cst_68 = arith.constant 2.000000e+00 : f32
    %159 = vector.broadcast %cst_68 : f32 to vector<128x128xf32>
    %160 = arith.mulf %158, %159 : vector<128x128xf32>
    %161 = math.exp %160 : vector<128x128xf32>
    %cst_69 = arith.constant dense<0.000000e+00> : vector<128xf32>
    %162 = vector.multi_reduction <add>, %161, %cst_69 [1] : vector<128x128xf32> to vector<128xf32>
    %163 = vector.shape_cast %162 : vector<128xf32> to vector<128x1xf32>
    %164 = tpu.reciprocal %163 : vector<128x1xf32> -> vector<128x1xf32>
    %165 = vector.broadcast %164 : vector<128x1xf32> to vector<128x128xf32>
    %166 = arith.mulf %161, %165 : vector<128x128xf32>
    %167 = arith.maximumf %166, %155 : vector<128x128xf32>
    %c11 = arith.constant 11 : index
    %c0_70 = arith.constant 0 : index
    %c0_71 = arith.constant 0 : index
    %168 = vector.load %arg11[%c11, %c0_70, %c0_71] : memref<16x128x128xf32, #tpu.memory_space<vmem>>, vector<1x128x128xf32>
    %169 = vector.shape_cast %168 : vector<1x128x128xf32> to vector<128x128xf32>
    %170 = arith.addf %166, %169 : vector<128x128xf32>
    %cst_72 = arith.constant 2.000000e+00 : f32
    %171 = vector.broadcast %cst_72 : f32 to vector<128x128xf32>
    %172 = arith.mulf %170, %171 : vector<128x128xf32>
    %173 = math.exp %172 : vector<128x128xf32>
    %cst_73 = arith.constant dense<0.000000e+00> : vector<128xf32>
    %174 = vector.multi_reduction <add>, %173, %cst_73 [1] : vector<128x128xf32> to vector<128xf32>
    %175 = vector.shape_cast %174 : vector<128xf32> to vector<128x1xf32>
    %176 = tpu.reciprocal %175 : vector<128x1xf32> -> vector<128x1xf32>
    %177 = vector.broadcast %176 : vector<128x1xf32> to vector<128x128xf32>
    %178 = arith.mulf %173, %177 : vector<128x128xf32>
    %179 = arith.maximumf %178, %167 : vector<128x128xf32>
    %c12 = arith.constant 12 : index
    %c0_74 = arith.constant 0 : index
    %c0_75 = arith.constant 0 : index
    %180 = vector.load %arg11[%c12, %c0_74, %c0_75] : memref<16x128x128xf32, #tpu.memory_space<vmem>>, vector<1x128x128xf32>
    %181 = vector.shape_cast %180 : vector<1x128x128xf32> to vector<128x128xf32>
    %182 = arith.addf %178, %181 : vector<128x128xf32>
    %cst_76 = arith.constant 2.000000e+00 : f32
    %183 = vector.broadcast %cst_76 : f32 to vector<128x128xf32>
    %184 = arith.mulf %182, %183 : vector<128x128xf32>
    %185 = math.exp %184 : vector<128x128xf32>
    %cst_77 = arith.constant dense<0.000000e+00> : vector<128xf32>
    %186 = vector.multi_reduction <add>, %185, %cst_77 [1] : vector<128x128xf32> to vector<128xf32>
    %187 = vector.shape_cast %186 : vector<128xf32> to vector<128x1xf32>
    %188 = tpu.reciprocal %187 : vector<128x1xf32> -> vector<128x1xf32>
    %189 = vector.broadcast %188 : vector<128x1xf32> to vector<128x128xf32>
    %190 = arith.mulf %185, %189 : vector<128x128xf32>
    %191 = arith.maximumf %190, %179 : vector<128x128xf32>
    %c13 = arith.constant 13 : index
    %c0_78 = arith.constant 0 : index
    %c0_79 = arith.constant 0 : index
    %192 = vector.load %arg11[%c13, %c0_78, %c0_79] : memref<16x128x128xf32, #tpu.memory_space<vmem>>, vector<1x128x128xf32>
    %193 = vector.shape_cast %192 : vector<1x128x128xf32> to vector<128x128xf32>
    %194 = arith.addf %190, %193 : vector<128x128xf32>
    %cst_80 = arith.constant 2.000000e+00 : f32
    %195 = vector.broadcast %cst_80 : f32 to vector<128x128xf32>
    %196 = arith.mulf %194, %195 : vector<128x128xf32>
    %197 = math.exp %196 : vector<128x128xf32>
    %cst_81 = arith.constant dense<0.000000e+00> : vector<128xf32>
    %198 = vector.multi_reduction <add>, %197, %cst_81 [1] : vector<128x128xf32> to vector<128xf32>
    %199 = vector.shape_cast %198 : vector<128xf32> to vector<128x1xf32>
    %200 = tpu.reciprocal %199 : vector<128x1xf32> -> vector<128x1xf32>
    %201 = vector.broadcast %200 : vector<128x1xf32> to vector<128x128xf32>
    %202 = arith.mulf %197, %201 : vector<128x128xf32>
    %203 = arith.maximumf %202, %191 : vector<128x128xf32>
    %c14 = arith.constant 14 : index
    %c0_82 = arith.constant 0 : index
    %c0_83 = arith.constant 0 : index
    %204 = vector.load %arg11[%c14, %c0_82, %c0_83] : memref<16x128x128xf32, #tpu.memory_space<vmem>>, vector<1x128x128xf32>
    %205 = vector.shape_cast %204 : vector<1x128x128xf32> to vector<128x128xf32>
    %206 = arith.addf %202, %205 : vector<128x128xf32>
    %cst_84 = arith.constant 2.000000e+00 : f32
    %207 = vector.broadcast %cst_84 : f32 to vector<128x128xf32>
    %208 = arith.mulf %206, %207 : vector<128x128xf32>
    %209 = math.exp %208 : vector<128x128xf32>
    %cst_85 = arith.constant dense<0.000000e+00> : vector<128xf32>
    %210 = vector.multi_reduction <add>, %209, %cst_85 [1] : vector<128x128xf32> to vector<128xf32>
    %211 = vector.shape_cast %210 : vector<128xf32> to vector<128x1xf32>
    %212 = tpu.reciprocal %211 : vector<128x1xf32> -> vector<128x1xf32>
    %213 = vector.broadcast %212 : vector<128x1xf32> to vector<128x128xf32>
    %214 = arith.mulf %209, %213 : vector<128x128xf32>
    %215 = arith.maximumf %214, %203 : vector<128x128xf32>
    %c15 = arith.constant 15 : index
    %c0_86 = arith.constant 0 : index
    %c0_87 = arith.constant 0 : index
    %216 = vector.load %arg11[%c15, %c0_86, %c0_87] : memref<16x128x128xf32, #tpu.memory_space<vmem>>, vector<1x128x128xf32>
    %217 = vector.shape_cast %216 : vector<1x128x128xf32> to vector<128x128xf32>
    %218 = arith.addf %214, %217 : vector<128x128xf32>
    %cst_88 = arith.constant 2.000000e+00 : f32
    %219 = vector.broadcast %cst_88 : f32 to vector<128x128xf32>
    %220 = arith.mulf %218, %219 : vector<128x128xf32>
    %221 = math.exp %220 : vector<128x128xf32>
    %cst_89 = arith.constant dense<0.000000e+00> : vector<128xf32>
    %222 = vector.multi_reduction <add>, %221, %cst_89 [1] : vector<128x128xf32> to vector<128xf32>
    %223 = vector.shape_cast %222 : vector<128xf32> to vector<128x1xf32>
    %224 = tpu.reciprocal %223 : vector<128x1xf32> -> vector<128x1xf32>
    %225 = vector.broadcast %224 : vector<128x1xf32> to vector<128x128xf32>
    %226 = arith.mulf %221, %225 : vector<128x128xf32>
    %227 = arith.maximumf %226, %215 : vector<128x128xf32>
    %c0_90 = arith.constant 0 : index
    %c0_91 = arith.constant 0 : index
    %228 = vector.load %arg12[%c0_90, %c0_91] : memref<128x128xf32, #tpu.memory_space<vmem>>, vector<128x128xf32>
    tpu.vector_store %arg12[%c0_90, %c0_91], %227 {strides = array<i32>} : memref<128x128xf32, #tpu.memory_space<vmem>>, vector<128x128xf32>,
    return
  }
  func.func @transform_0(%arg0: i32) -> (i32, i32) {
    %c0_i32 = arith.constant 0 : i32
    %c0_i32_0 = arith.constant 0 : i32
    return %arg0, %c0_i32 : i32, i32
  }
  func.func @transform_1(%arg0: i32) -> (i32, i32) {
    %c0_i32 = arith.constant 0 : i32
    %c0_i32_0 = arith.constant 0 : i32
    %c0_i32_1 = arith.constant 0 : i32
    return %c0_i32, %c0_i32_0 : i32, i32
  }
  func.func @transform_2(%arg0: i32) -> (i32, i32) {
    %c0_i32 = arith.constant 0 : i32
    %c0_i32_0 = arith.constant 0 : i32
    %c0_i32_1 = arith.constant 0 : i32
    return %c0_i32, %c0_i32_0 : i32, i32
  }
  func.func @transform_3(%arg0: i32) -> (i32, i32) {
    %c0_i32 = arith.constant 0 : i32
    %c0_i32_0 = arith.constant 0 : i32
    %c0_i32_1 = arith.constant 0 : i32
    return %c0_i32, %c0_i32_0 : i32, i32
  }
  func.func @transform_4(%arg0: i32) -> (i32, i32) {
    %c0_i32 = arith.constant 0 : i32
    %c0_i32_0 = arith.constant 0 : i32
    %c0_i32_1 = arith.constant 0 : i32
    return %c0_i32, %c0_i32_0 : i32, i32
  }
  func.func @transform_5(%arg0: i32) -> (i32, i32) {
    %c0_i32 = arith.constant 0 : i32
    %c0_i32_0 = arith.constant 0 : i32
    %c0_i32_1 = arith.constant 0 : i32
    return %c0_i32, %c0_i32_0 : i32, i32
  }
  func.func @transform_6(%arg0: i32) -> (i32, i32) {
    %c0_i32 = arith.constant 0 : i32
    %c0_i32_0 = arith.constant 0 : i32
    %c0_i32_1 = arith.constant 0 : i32
    return %c0_i32, %c0_i32_0 : i32, i32
  }
  func.func @transform_7(%arg0: i32) -> (i32, i32) {
    %c0_i32 = arith.constant 0 : i32
    %c0_i32_0 = arith.constant 0 : i32
    %c0_i32_1 = arith.constant 0 : i32
    return %c0_i32, %c0_i32_0 : i32, i32
  }
  func.func @transform_8(%arg0: i32) -> (i32, i32) {
    %c0_i32 = arith.constant 0 : i32
    %c0_i32_0 = arith.constant 0 : i32
    %c0_i32_1 = arith.constant 0 : i32
    return %c0_i32, %c0_i32_0 : i32, i32
  }
  func.func @transform_9(%arg0: i32) -> (i32, i32) {
    %c0_i32 = arith.constant 0 : i32
    %c0_i32_0 = arith.constant 0 : i32
    %c0_i32_1 = arith.constant 0 : i32
    return %c0_i32, %c0_i32_0 : i32, i32
  }
  func.func @transform_10(%arg0: i32) -> (i32, i32, i32) {
    %c0_i32 = arith.constant 0 : i32
    %c0_i32_0 = arith.constant 0 : i32
    %c0_i32_1 = arith.constant 0 : i32
    return %c0_i32, %arg0, %c0_i32_0 : i32, i32, i32
  }
  func.func @transform_11(%arg0: i32) -> (i32, i32) {
    %c0_i32 = arith.constant 0 : i32
    %c0_i32_0 = arith.constant 0 : i32
    return %arg0, %c0_i32 : i32, i32
  }
}

</mosaic_0001>

<llo_original>
// kernel: masker_forward.1
$region0: #{masker_forward.1}
  #allocation0 [shape = 'u32[]', space=smem, size = 0x4, offset = 0x4, fixed_abs, tag = 'smem constant byte address 0x4 - core index']
  #allocation1 [shape = 'u32[144,128]{1,0:T(1,128)}', space=vmem, size = 0x12000, scoped, tag = 'internal scratch']
  #allocation21 [shape = 's32[]', space=sflag, size = 0x4, offset = 0, fixed_abs, tag = 'sflag constant byte address 0x0 - dummy sync flag']
  %s0 = inlined_call_operand.hbm [shape: bf16[256,128], index: 0, kind: input, shape index: {}]
  %s1 = inlined_call_operand.hbm [shape: bf16[128,128], index: 1, kind: input, shape index: {}]
  %s2 = inlined_call_operand.hbm [shape: f32[1,128], index: 2, kind: input, shape index: {}]
  %s3 = inlined_call_operand.hbm [shape: f32[1,128], index: 3, kind: input, shape index: {}]
  %s4 = inlined_call_operand.hbm [shape: bf16[128,128], index: 4, kind: input, shape index: {}]
  %s5 = inlined_call_operand.hbm [shape: f32[1,128], index: 5, kind: input, shape index: {}]
  %s6 = inlined_call_operand.hbm [shape: f32[1,128], index: 6, kind: input, shape index: {}]
  %s7 = inlined_call_operand.hbm [shape: bf16[128,128], index: 7, kind: input, shape index: {}]
  %s8 = inlined_call_operand.hbm [shape: f32[1,128], index: 8, kind: input, shape index: {}]
  %s9 = inlined_call_operand.hbm [shape: f32[1,128], index: 9, kind: input, shape index: {}]
  %s10 = inlined_call_operand.hbm [shape: f32[16,256,128], index: 10, kind: input, shape index: {}]
  %s11 = inlined_call_operand.hbm [shape: f32[256,128], index: 11, kind: output, shape index: {}]
  %s12 = sld [smem:[#allocation0]]
  $region121: #{masker_forward.1} parent=0
    _
  %s14 = ssub.s32 1, %s12
  %s15 = scalar_select 0, %s14, %s12
  $region1: #{masker_forward.1} parent=0
    #allocation2 [shape = 'u8[65536]{0}', space=vmem, size = 0x10000, scoped, tag = 'input window, operand 0']
    #allocation3 [shape = 's32[2]{0}', space=sflag, size = 0x8, scoped, tag = 'scoped memory for masker_forward.1']
    #allocation4 [shape = 's32[2]{0}', space=sflag, size = 0x8, scoped, tag = 'scoped memory for masker_forward.1']
    #allocation5 [shape = 'u8[32768]{0}', space=vmem, size = 0x8000, scoped, tag = 'input window, operand 1, single buffered']
    #allocation6 [shape = 's32[1]{0}', space=sflag, size = 0x4, scoped, tag = 'scoped memory for masker_forward.1']
    #allocation7 [shape = 'u8[512]{0}', space=vmem, size = 0x400, scoped, tag = 'input window, operand 2, single buffered']
    #allocation8 [shape = 'u8[512]{0}', space=vmem, size = 0x400, scoped, tag = 'input window, operand 3, single buffered']
    #allocation9 [shape = 's32[1]{0}', space=sflag, size = 0x4, scoped, tag = 'scoped memory for masker_forward.1']
    #allocation10 [shape = 'u8[32768]{0}', space=vmem, size = 0x8000, scoped, tag = 'input window, operand 4, single buffered']
    #allocation11 [shape = 'u8[512]{0}', space=vmem, size = 0x400, scoped, tag = 'input window, operand 5, single buffered']
    #allocation12 [shape = 's32[1]{0}', space=sflag, size = 0x4, scoped, tag = 'scoped memory for masker_forward.1']
    #allocation13 [shape = 'u8[512]{0}', space=vmem, size = 0x400, scoped, tag = 'input window, operand 6, single buffered']
    #allocation14 [shape = 'u8[32768]{0}', space=vmem, size = 0x8000, scoped, tag = 'input window, operand 7, single buffered']
    #allocation15 [shape = 's32[1]{0}', space=sflag, size = 0x4, scoped, tag = 'scoped memory for masker_forward.1']
    #allocation16 [shape = 'u8[512]{0}', space=vmem, size = 0x400, scoped, tag = 'input window, operand 8, single buffered']
    #allocation17 [shape = 'u8[512]{0}', space=vmem, size = 0x400, scoped, tag = 'input window, operand 9, single buffered']
    #allocation18 [shape = 's32[1]{0}', space=sflag, size = 0x4, scoped, tag = 'scoped memory for masker_forward.1']
    #allocation19 [shape = 'u8[2097152]{0}', space=vmem, size = 0x200000, scoped, tag = 'input window, operand 10']
    #allocation20 [shape = 'u8[131072]{0}', space=vmem, size = 0x20000, scoped, tag = 'output window, operand 0']
    %16 = vsyncpa [#allocation3], 0
    %s17 = scalar_lea.sflag [#allocation3], 1
    %18 = vsyncpa %s17, 0
    %19 = vsyncpa [#allocation6], 0
    %20 = vsyncpa [#allocation9], 0
    %21 = vsyncpa [#allocation12], 0
    %22 = vsyncpa [#allocation15], 0
    %23 = vsyncpa [#allocation18], 0
    %24 = vsyncpa [#allocation4], 0
    %s25 = scalar_lea.sflag [#allocation4], 1
    %26 = vsyncpa %s25, 0
    loop: start=0, step=1, limit=4
    $region2: #{masker_forward.1} parent=1 // loop_pre_header
      _
    $region3: #{masker_forward.1} parent=1 // loop_header
      %s28 = sphi 0, %s32
      %p29 = scmp.ge.s32.totalorder %s28, 4
      %s38 = sphi 0, %s40
      %s41 = sphi 0, %s38
      %s42 = sphi 0, %s41
      %s58 = sphi 0, %s42
      %s62 = sphi 0, %s62
      %s64 = sphi 0, %s62
      %s65 = sphi 0, %s64
      %s79 = sphi 0, %s65
      %s83 = sphi 0, %s83
      %s85 = sphi 0, %s83
      %s86 = sphi 0, %s85
      %s100 = sphi 0, %s86
      %s104 = sphi 0, %s104
      %s106 = sphi 0, %s104
      %s107 = sphi 0, %s106
      %s121 = sphi 0, %s107
      %s125 = sphi 0, %s125
      %s127 = sphi 0, %s125
      %s128 = sphi 0, %s127
      %s142 = sphi 0, %s128
      %s146 = sphi 0, %s146
      %s148 = sphi 0, %s146
      %s149 = sphi 0, %s148
      %s163 = sphi 0, %s149
      %s167 = sphi 0, %s167
      %s169 = sphi 0, %s167
      %s170 = sphi 0, %s169
      %s184 = sphi 0, %s170
      %s188 = sphi 0, %s188
      %s190 = sphi 0, %s188
      %s191 = sphi 0, %s190
      %s205 = sphi 0, %s191
      %s209 = sphi 0, %s209
      %s211 = sphi 0, %s209
      %s212 = sphi 0, %s211
      %s226 = sphi 0, %s212
      %s230 = sphi 0, %s230
      %s232 = sphi 0, %s230
      %s233 = sphi 0, %s232
      %s247 = sphi 0, %s233
      %s253 = sphi 0, %s255
      %s256 = sphi 0, %s253
      %s257 = sphi 0, %s256
      %s273 = sphi 0, %s257
      %s279 = sphi 0, %s281
      %s282 = sphi 0, %s279
      %s283 = sphi 0, %s282
      %s299 = sphi 0, %s283
    $region4: #{masker_forward.1} parent=1 // loop_header_branch
      %31 = sbr.rel (%p29) target = $region8
    $region5: #{masker_forward.1} parent=1 // loop_body
      %s33 = ssub.s32 %s28, 1
      %s34 = ssub.s32 %s28, 2
      %s35 = sadd.s32 %s28, 1
      %s36 = ssub.s32 %s28, %s35
      %p37 = scmp.eq.s32.totalorder %s36, 0
      %s39 = sadd.s32 %s38, 1
      %s40 = scalar_select %p37, %s38, %s39
      %p43 = pneg %p37
      %p44 = scmp.eq.s32.totalorder %s28, 1
      %p45 = por %p43, %p44
      %p46 = scmp.ne.s32.totalorder %s38, %s41
      %p47 = scmp.eq.s32.totalorder %s28, 0
      %p48 = por %p46, %p47
      %p49 = scmp.ne.s32.totalorder %s38, %s41
      %p50 = scmp.eq.s32.totalorder %s33, 1
      %p51 = por %p49, %p50
      %p52 = scmp.ne.s32.totalorder %s41, %s42
      %p53 = scmp.eq.s32.totalorder %s33, 0
      %p54 = por %p52, %p53
      %p55 = scmp.ne.s32.totalorder %s41, %s42
      %p56 = scmp.eq.s32.totalorder %s34, 1
      %p57 = por %p55, %p56
      %p59 = scmp.ne.s32.totalorder %s42, %s58
      %p60 = scmp.eq.s32.totalorder %s34, 0
      %p61 = por %p59, %p60
      %s63 = sadd.s32 %s62, 1
      %p66 = scmp.eq.s32.totalorder %s28, 1
      %p67 = scmp.ne.s32.totalorder %s62, %s64
      %p68 = scmp.eq.s32.totalorder %s28, 0
      %p69 = por %p67, %p68
      %p70 = scmp.ne.s32.totalorder %s62, %s64
      %p71 = scmp.eq.s32.totalorder %s33, 1
      %p72 = por %p70, %p71
      %p73 = scmp.ne.s32.totalorder %s64, %s65
      %p74 = scmp.eq.s32.totalorder %s33, 0
      %p75 = por %p73, %p74
      %p76 = scmp.ne.s32.totalorder %s64, %s65
      %p77 = scmp.eq.s32.totalorder %s34, 1
      %p78 = por %p76, %p77
      %p80 = scmp.ne.s32.totalorder %s65, %s79
      %p81 = scmp.eq.s32.totalorder %s34, 0
      %p82 = por %p80, %p81
      %s84 = sadd.s32 %s83, 1
      %p87 = scmp.eq.s32.totalorder %s28, 1
      %p88 = scmp.ne.s32.totalorder %s83, %s85
      %p89 = scmp.eq.s32.totalorder %s28, 0
      %p90 = por %p88, %p89
      %p91 = scmp.ne.s32.totalorder %s83, %s85
      %p92 = scmp.eq.s32.totalorder %s33, 1
      %p93 = por %p91, %p92
      %p94 = scmp.ne.s32.totalorder %s85, %s86
      %p95 = scmp.eq.s32.totalorder %s33, 0
      %p96 = por %p94, %p95
      %p97 = scmp.ne.s32.totalorder %s85, %s86
      %p98 = scmp.eq.s32.totalorder %s34, 1
      %p99 = por %p97, %p98
      %p101 = scmp.ne.s32.totalorder %s86, %s100
      %p102 = scmp.eq.s32.totalorder %s34, 0
      %p103 = por %p101, %p102
      %s105 = sadd.s32 %s104, 1
      %p108 = scmp.eq.s32.totalorder %s28, 1
      %p109 = scmp.ne.s32.totalorder %s104, %s106
      %p110 = scmp.eq.s32.totalorder %s28, 0
      %p111 = por %p109, %p110
      %p112 = scmp.ne.s32.totalorder %s104, %s106
      %p113 = scmp.eq.s32.totalorder %s33, 1
      %p114 = por %p112, %p113
      %p115 = scmp.ne.s32.totalorder %s106, %s107
      %p116 = scmp.eq.s32.totalorder %s33, 0
      %p117 = por %p115, %p116
      %p118 = scmp.ne.s32.totalorder %s106, %s107
      %p119 = scmp.eq.s32.totalorder %s34, 1
      %p120 = por %p118, %p119
      %p122 = scmp.ne.s32.totalorder %s107, %s121
      %p123 = scmp.eq.s32.totalorder %s34, 0
      %p124 = por %p122, %p123
      %s126 = sadd.s32 %s125, 1
      %p129 = scmp.eq.s32.totalorder %s28, 1
      %p130 = scmp.ne.s32.totalorder %s125, %s127
      %p131 = scmp.eq.s32.totalorder %s28, 0
      %p132 = por %p130, %p131
      %p133 = scmp.ne.s32.totalorder %s125, %s127
      %p134 = scmp.eq.s32.totalorder %s33, 1
      %p135 = por %p133, %p134
      %p136 = scmp.ne.s32.totalorder %s127, %s128
      %p137 = scmp.eq.s32.totalorder %s33, 0
      %p138 = por %p136, %p137
      %p139 = scmp.ne.s32.totalorder %s127, %s128
      %p140 = scmp.eq.s32.totalorder %s34, 1
      %p141 = por %p139, %p140
      %p143 = scmp.ne.s32.totalorder %s128, %s142
      %p144 = scmp.eq.s32.totalorder %s34, 0
      %p145 = por %p143, %p144
      %s147 = sadd.s32 %s146, 1
      %p150 = scmp.eq.s32.totalorder %s28, 1
      %p151 = scmp.ne.s32.totalorder %s146, %s148
      %p152 = scmp.eq.s32.totalorder %s28, 0
      %p153 = por %p151, %p152
      %p154 = scmp.ne.s32.totalorder %s146, %s148
      %p155 = scmp.eq.s32.totalorder %s33, 1
      %p156 = por %p154, %p155
      %p157 = scmp.ne.s32.totalorder %s148, %s149
      %p158 = scmp.eq.s32.totalorder %s33, 0
      %p159 = por %p157, %p158
      %p160 = scmp.ne.s32.totalorder %s148, %s149
      %p161 = scmp.eq.s32.totalorder %s34, 1
      %p162 = por %p160, %p161
      %p164 = scmp.ne.s32.totalorder %s149, %s163
      %p165 = scmp.eq.s32.totalorder %s34, 0
      %p166 = por %p164, %p165
      %s168 = sadd.s32 %s167, 1
      %p171 = scmp.eq.s32.totalorder %s28, 1
      %p172 = scmp.ne.s32.totalorder %s167, %s169
      %p173 = scmp.eq.s32.totalorder %s28, 0
      %p174 = por %p172, %p173
      %p175 = scmp.ne.s32.totalorder %s167, %s169
      %p176 = scmp.eq.s32.totalorder %s33, 1
      %p177 = por %p175, %p176
      %p178 = scmp.ne.s32.totalorder %s169, %s170
      %p179 = scmp.eq.s32.totalorder %s33, 0
      %p180 = por %p178, %p179
      %p181 = scmp.ne.s32.totalorder %s169, %s170
      %p182 = scmp.eq.s32.totalorder %s34, 1
      %p183 = por %p181, %p182
      %p185 = scmp.ne.s32.totalorder %s170, %s184
      %p186 = scmp.eq.s32.totalorder %s34, 0
      %p187 = por %p185, %p186
      %s189 = sadd.s32 %s188, 1
      %p192 = scmp.eq.s32.totalorder %s28, 1
      %p193 = scmp.ne.s32.totalorder %s188, %s190
      %p194 = scmp.eq.s32.totalorder %s28, 0
      %p195 = por %p193, %p194
      %p196 = scmp.ne.s32.totalorder %s188, %s190
      %p197 = scmp.eq.s32.totalorder %s33, 1
      %p198 = por %p196, %p197
      %p199 = scmp.ne.s32.totalorder %s190, %s191
      %p200 = scmp.eq.s32.totalorder %s33, 0
      %p201 = por %p199, %p200
      %p202 = scmp.ne.s32.totalorder %s190, %s191
      %p203 = scmp.eq.s32.totalorder %s34, 1
      %p204 = por %p202, %p203
      %p206 = scmp.ne.s32.totalorder %s191, %s205
      %p207 = scmp.eq.s32.totalorder %s34, 0
      %p208 = por %p206, %p207
      %s210 = sadd.s32 %s209, 1
      %p213 = scmp.eq.s32.totalorder %s28, 1
      %p214 = scmp.ne.s32.totalorder %s209, %s211
      %p215 = scmp.eq.s32.totalorder %s28, 0
      %p216 = por %p214, %p215
      %p217 = scmp.ne.s32.totalorder %s209, %s211
      %p218 = scmp.eq.s32.totalorder %s33, 1
      %p219 = por %p217, %p218
      %p220 = scmp.ne.s32.totalorder %s211, %s212
      %p221 = scmp.eq.s32.totalorder %s33, 0
      %p222 = por %p220, %p221
      %p223 = scmp.ne.s32.totalorder %s211, %s212
      %p224 = scmp.eq.s32.totalorder %s34, 1
      %p225 = por %p223, %p224
      %p227 = scmp.ne.s32.totalorder %s212, %s226
      %p228 = scmp.eq.s32.totalorder %s34, 0
      %p229 = por %p227, %p228
      %s231 = sadd.s32 %s230, 1
      %p234 = scmp.eq.s32.totalorder %s28, 1
      %p235 = scmp.ne.s32.totalorder %s230, %s232
      %p236 = scmp.eq.s32.totalorder %s28, 0
      %p237 = por %p235, %p236
      %p238 = scmp.ne.s32.totalorder %s230, %s232
      %p239 = scmp.eq.s32.totalorder %s33, 1
      %p240 = por %p238, %p239
      %p241 = scmp.ne.s32.totalorder %s232, %s233
      %p242 = scmp.eq.s32.totalorder %s33, 0
      %p243 = por %p241, %p242
      %p244 = scmp.ne.s32.totalorder %s232, %s233
      %p245 = scmp.eq.s32.totalorder %s34, 1
      %p246 = por %p244, %p245
      %p248 = scmp.ne.s32.totalorder %s233, %s247
      %p249 = scmp.eq.s32.totalorder %s34, 0
      %p250 = por %p248, %p249
      %s251 = ssub.s32 %s28, %s35
      %p252 = scmp.eq.s32.totalorder %s251, 0
      %s254 = sadd.s32 %s253, 1
      %s255 = scalar_select %p252, %s253, %s254
      %p258 = pneg %p252
      %p259 = scmp.eq.s32.totalorder %s28, 1
      %p260 = por %p258, %p259
      %p261 = scmp.ne.s32.totalorder %s253, %s256
      %p262 = scmp.eq.s32.totalorder %s28, 0
      %p263 = por %p261, %p262
      %p264 = scmp.ne.s32.totalorder %s253, %s256
      %p265 = scmp.eq.s32.totalorder %s33, 1
      %p266 = por %p264, %p265
      %p267 = scmp.ne.s32.totalorder %s256, %s257
      %p268 = scmp.eq.s32.totalorder %s33, 0
      %p269 = por %p267, %p268
      %p270 = scmp.ne.s32.totalorder %s256, %s257
      %p271 = scmp.eq.s32.totalorder %s34, 1
      %p272 = por %p270, %p271
      %p274 = scmp.ne.s32.totalorder %s257, %s273
      %p275 = scmp.eq.s32.totalorder %s34, 0
      %p276 = por %p274, %p275
      %s277 = ssub.s32 %s28, %s35
      %p278 = scmp.eq.s32.totalorder %s277, 0
      %s280 = sadd.s32 %s279, 1
      %s281 = scalar_select %p278, %s279, %s280
      %p284 = pneg %p278
      %p285 = scmp.eq.s32.totalorder %s28, 1
      %p286 = por %p284, %p285
      %p287 = scmp.ne.s32.totalorder %s279, %s282
      %p288 = scmp.eq.s32.totalorder %s28, 0
      %p289 = por %p287, %p288
      %p290 = scmp.ne.s32.totalorder %s279, %s282
      %p291 = scmp.eq.s32.totalorder %s33, 1
      %p292 = por %p290, %p291
      %p293 = scmp.ne.s32.totalorder %s282, %s283
      %p294 = scmp.eq.s32.totalorder %s33, 0
      %p295 = por %p293, %p294
      %p296 = scmp.ne.s32.totalorder %s282, %s283
      %p297 = scmp.eq.s32.totalorder %s34, 1
      %p298 = por %p296, %p297
      %p300 = scmp.ne.s32.totalorder %s283, %s299
      %p301 = scmp.eq.s32.totalorder %s34, 0
      %p302 = por %p300, %p301
      %p303 = scmp.le.s32.totalorder 1, %s28
      %p304 = scmp.lt.s32.totalorder %s28, 3
      %p305 = pnand %p303, %p304
      %p306 = pneg %p305
      // Predicated region
      $region9: #{masker_forward.1} parent=5 // pred_check
        _
      $region10: #{masker_forward.1} parent=5 // pred_check_branch
        %308 = sbr.rel (%p305) target = $region12
      $region11: #{masker_forward.1} parent=5 // pred_region
        %s309 = ssub.s32 %s28, 1
        // Predicated region
        $region13: #{masker_forward.1} parent=11 // pred_check
          %p310 = pneg %p75
        $region14: #{masker_forward.1} parent=11 // pred_check_branch
          %312 = sbr.rel (%p310) target = $region16
        $region15: #{masker_forward.1} parent=11 // pred_region
          %s314 = ssub.s32 1024, 1024
          %315 = vsyncadd [#allocation6], %s314
          %s316 = sshll.u32 [#allocation5], 4
          %s317 = int_to_ptr.vmem [resolvable:$true] %s316
          %322 = dma.hbm_to_vmem [thread:$0]  %s1, 1024, %s317, [#allocation6], 64, 64, 4
        $region16: #{masker_forward.1} parent=11 // pred_fallthru
          _
        // Predicated region
        $region17: #{masker_forward.1} parent=11 // pred_check
          %p323 = pneg %p96
        $region18: #{masker_forward.1} parent=11 // pred_check_branch
          %325 = sbr.rel (%p323) target = $region20
        $region19: #{masker_forward.1} parent=11 // pred_region
          %s327 = ssub.s32 16, 16
          %328 = vsyncadd [#allocation6], %s327
          %s330 = sshll.u32 [#allocation7], 4
          %s331 = int_to_ptr.vmem [resolvable:$true] %s330
          %333 = dma.hbm_to_vmem [thread:$0]  %s2, 16, %s331, [#allocation6]
        $region20: #{masker_forward.1} parent=11 // pred_fallthru
          _
        // Predicated region
        $region21: #{masker_forward.1} parent=11 // pred_check
          %p334 = pneg %p117
        $region22: #{masker_forward.1} parent=11 // pred_check_branch
          %336 = sbr.rel (%p334) target = $region24
        $region23: #{masker_forward.1} parent=11 // pred_region
          %s338 = ssub.s32 16, 16
          %339 = vsyncadd [#allocation9], %s338
          %s341 = sshll.u32 [#allocation8], 4
          %s342 = int_to_ptr.vmem [resolvable:$true] %s341
          %344 = dma.hbm_to_vmem [thread:$0]  %s3, 16, %s342, [#allocation9]
        $region24: #{masker_forward.1} parent=11 // pred_fallthru
          _
        // Predicated region
        $region25: #{masker_forward.1} parent=11 // pred_check
          %p345 = pneg %p138
        $region26: #{masker_forward.1} parent=11 // pred_check_branch
          %347 = sbr.rel (%p345) target = $region28
        $region27: #{masker_forward.1} parent=11 // pred_region
          %s349 = ssub.s32 1024, 1024
          %350 = vsyncadd [#allocation9], %s349
          %s351 = sshll.u32 [#allocation10], 4
          %s352 = int_to_ptr.vmem [resolvable:$true] %s351
          %357 = dma.hbm_to_vmem [thread:$0]  %s4, 1024, %s352, [#allocation9], 64, 64, 4
        $region28: #{masker_forward.1} parent=11 // pred_fallthru
          _
        // Predicated region
        $region29: #{masker_forward.1} parent=11 // pred_check
          %p358 = pneg %p159
        $region30: #{masker_forward.1} parent=11 // pred_check_branch
          %360 = sbr.rel (%p358) target = $region32
        $region31: #{masker_forward.1} parent=11 // pred_region
          %s362 = ssub.s32 16, 16
          %363 = vsyncadd [#allocation12], %s362
          %s365 = sshll.u32 [#allocation11], 4
          %s366 = int_to_ptr.vmem [resolvable:$true] %s365
          %368 = dma.hbm_to_vmem [thread:$0]  %s5, 16, %s366, [#allocation12]
        $region32: #{masker_forward.1} parent=11 // pred_fallthru
          _
        // Predicated region
        $region33: #{masker_forward.1} parent=11 // pred_check
          %p369 = pneg %p180
        $region34: #{masker_forward.1} parent=11 // pred_check_branch
          %371 = sbr.rel (%p369) target = $region36
        $region35: #{masker_forward.1} parent=11 // pred_region
          %s373 = ssub.s32 16, 16
          %374 = vsyncadd [#allocation12], %s373
          %s376 = sshll.u32 [#allocation13], 4
          %s377 = int_to_ptr.vmem [resolvable:$true] %s376
          %379 = dma.hbm_to_vmem [thread:$0]  %s6, 16, %s377, [#allocation12]
        $region36: #{masker_forward.1} parent=11 // pred_fallthru
          _
        // Predicated region
        $region37: #{masker_forward.1} parent=11 // pred_check
          %p380 = pneg %p201
        $region38: #{masker_forward.1} parent=11 // pred_check_branch
          %382 = sbr.rel (%p380) target = $region40
        $region39: #{masker_forward.1} parent=11 // pred_region
          %s384 = ssub.s32 1024, 1024
          %385 = vsyncadd [#allocation15], %s384
          %s386 = sshll.u32 [#allocation14], 4
          %s387 = int_to_ptr.vmem [resolvable:$true] %s386
          %392 = dma.hbm_to_vmem [thread:$0]  %s7, 1024, %s387, [#allocation15], 64, 64, 4
        $region40: #{masker_forward.1} parent=11 // pred_fallthru
          _
        // Predicated region
        $region41: #{masker_forward.1} parent=11 // pred_check
          %p393 = pneg %p222
        $region42: #{masker_forward.1} parent=11 // pred_check_branch
          %395 = sbr.rel (%p393) target = $region44
        $region43: #{masker_forward.1} parent=11 // pred_region
          %s397 = ssub.s32 16, 16
          %398 = vsyncadd [#allocation15], %s397
          %s400 = sshll.u32 [#allocation16], 4
          %s401 = int_to_ptr.vmem [resolvable:$true] %s400
          %403 = dma.hbm_to_vmem [thread:$0]  %s8, 16, %s401, [#allocation15]
        $region44: #{masker_forward.1} parent=11 // pred_fallthru
          _
        // Predicated region
        $region45: #{masker_forward.1} parent=11 // pred_check
          %p404 = pneg %p243
        $region46: #{masker_forward.1} parent=11 // pred_check_branch
          %406 = sbr.rel (%p404) target = $region48
        $region47: #{masker_forward.1} parent=11 // pred_region
          %s408 = ssub.s32 16, 16
          %409 = vsyncadd [#allocation18], %s408
          %s411 = sshll.u32 [#allocation17], 4
          %s412 = int_to_ptr.vmem [resolvable:$true] %s411
          %414 = dma.hbm_to_vmem [thread:$0]  %s9, 16, %s412, [#allocation18]
        $region48: #{masker_forward.1} parent=11 // pred_fallthru
          _
      $region12: #{masker_forward.1} parent=5 // pred_fallthru
        _
      %p415 = scmp.lt.s32.totalorder %s28, 2
      // Predicated region
      $region49: #{masker_forward.1} parent=5 // pred_check
        %p416 = pneg %p415
      $region50: #{masker_forward.1} parent=5 // pred_check_branch
        %418 = sbr.rel (%p416) target = $region52
      $region51: #{masker_forward.1} parent=5 // pred_region
        // Predicated region
        $region53: #{masker_forward.1} parent=51 // pred_check
          %p419 = pneg %p48
        $region54: #{masker_forward.1} parent=51 // pred_check_branch
          %421 = sbr.rel (%p419) target = $region56
        $region55: #{masker_forward.1} parent=51 // pred_region
          %s422 = sand.u32 %s28, 1
          %s423 = scalar_lea.sflag [#allocation3], %s422
          %s424 = sand.u32 %s38, 1
          %s425 = smul.addr %s424, 64
          %s426 = scalar_lea.vmem [#allocation2], %s425
          %s427 = smul.u32 16, %s28
          %s429 = ssub.s32 1024, 1024
          %430 = vsyncadd %s423, %s429
          %s431 = smul.addr %s427, 64
          %s432 = scalar_lea.hbm %s0, %s431
          %s433 = sshll.u32 %s426, 4
          %s434 = int_to_ptr.vmem [resolvable:$true] %s433
          %439 = dma.hbm_to_vmem [thread:$0]  %s432, 1024, %s434, %s423, 64, 64, 4
        $region56: #{masker_forward.1} parent=51 // pred_fallthru
          _
        // Predicated region
        $region57: #{masker_forward.1} parent=51 // pred_check
          %p440 = pneg %p263
        $region58: #{masker_forward.1} parent=51 // pred_check_branch
          %442 = sbr.rel (%p440) target = $region60
        $region59: #{masker_forward.1} parent=51 // pred_region
          #allocation22 [shape = 'u32[6]{0}', space=smem, size = 0x18, scoped, tag = 'DMA stride descriptor']
          %s443 = sand.u32 %s28, 1
          %s444 = scalar_lea.sflag [#allocation3], %s443
          %s445 = sand.u32 %s253, 1
          %s446 = smul.addr %s445, 2048
          %s447 = scalar_lea.vmem [#allocation19], %s446
          %s448 = smul.u32 16, %s28
          %s450 = ssub.s32 32768, 32768
          %451 = vsyncadd %s444, %s450
          %s452 = smul.addr %s448, 128
          %s453 = scalar_lea.hbm %s10, %s452
          %s455 = sshll.u32 1, 14
          %s456 = sxor.u32 4294967295, %s455
          %s458 = sld [smem:[#allocation0]]
          %s459 = sadd.s32 2, %s458
          %s461 = sshll.u32 7, 26
          %s462 = sxor.u32 4294967295, %s461
          %s463 = sand.u32 0, %s462
          %s464 = sshll.u32 %s459, 26
          %s465 = sor.u32 %s463, %s464
          %s466 = sshll.u32 %s447, 4
          %s467 = int_to_ptr.vmem [resolvable:$true] %s466
          %473 = sst [smem:[#allocation22]] 4096
          %s474 = scalar_lea.smem [#allocation22], 1
          %475 = sst [smem:[%s474]] 2048
          %s476 = scalar_lea.smem [#allocation22], 2
          %477 = sst [smem:[%s476]] 16
          %s478 = scalar_lea.smem [#allocation22], 3
          %479 = sst [smem:[%s478]] 128
          %s480 = scalar_lea.smem [#allocation22], 4
          %481 = sst [smem:[%s480]] 128
          %s482 = scalar_lea.smem [#allocation22], 5
          %483 = sst [smem:[%s482]] 8
          %485 = dma.general %s453, 32768, %s467, %s444, 131072, [#allocation22], %s465, 0
        $region60: #{masker_forward.1} parent=51 // pred_fallthru
          _
      $region52: #{masker_forward.1} parent=5 // pred_fallthru
        _
      %p486 = scmp.le.s32.totalorder 1, %s28
      %p487 = scmp.lt.s32.totalorder %s28, 3
      %p488 = pnand %p486, %p487
      %p489 = pneg %p488
      // Predicated region
      $region61: #{masker_forward.1} parent=5 // pred_check
        _
      $region62: #{masker_forward.1} parent=5 // pred_check_branch
        %491 = sbr.rel (%p488) target = $region64
      $region63: #{masker_forward.1} parent=5 // pred_region
        %s492 = ssub.s32 %s28, 1
        %s493 = sand.u32 %s33, 1
        %s494 = scalar_lea.sflag [#allocation3], %s493
        %s495 = sand.u32 %s41, 1
        %s496 = smul.addr %s495, 64
        %s497 = scalar_lea.vmem [#allocation2], %s496
        // Predicated region
        $region65: #{masker_forward.1} parent=63 // pred_check
          %p498 = pneg %p54
        $region66: #{masker_forward.1} parent=63 // pred_check_branch
          %500 = sbr.rel (%p498) target = $region68
        $region67: #{masker_forward.1} parent=63 // pred_region
          %501 = dma.done %s494, 1024
        $region68: #{masker_forward.1} parent=63 // pred_fallthru
          _
        // Predicated region
        $region69: #{masker_forward.1} parent=63 // pred_check
          %p502 = pneg %p75
        $region70: #{masker_forward.1} parent=63 // pred_check_branch
          %504 = sbr.rel (%p502) target = $region72
        $region71: #{masker_forward.1} parent=63 // pred_region
          %505 = dma.done [#allocation6], 1024
        $region72: #{masker_forward.1} parent=63 // pred_fallthru
          _
        // Predicated region
        $region73: #{masker_forward.1} parent=63 // pred_check
          %p506 = pneg %p96
        $region74: #{masker_forward.1} parent=63 // pred_check_branch
          %508 = sbr.rel (%p506) target = $region76
        $region75: #{masker_forward.1} parent=63 // pred_region
          %509 = dma.done [#allocation6], 16
        $region76: #{masker_forward.1} parent=63 // pred_fallthru
          _
        // Predicated region
        $region77: #{masker_forward.1} parent=63 // pred_check
          %p510 = pneg %p117
        $region78: #{masker_forward.1} parent=63 // pred_check_branch
          %512 = sbr.rel (%p510) target = $region80
        $region79: #{masker_forward.1} parent=63 // pred_region
          %513 = dma.done [#allocation9], 16
        $region80: #{masker_forward.1} parent=63 // pred_fallthru
          _
        // Predicated region
        $region81: #{masker_forward.1} parent=63 // pred_check
          %p514 = pneg %p138
        $region82: #{masker_forward.1} parent=63 // pred_check_branch
          %516 = sbr.rel (%p514) target = $region84
        $region83: #{masker_forward.1} parent=63 // pred_region
          %517 = dma.done [#allocation9], 1024
        $region84: #{masker_forward.1} parent=63 // pred_fallthru
          _
        // Predicated region
        $region85: #{masker_forward.1} parent=63 // pred_check
          %p518 = pneg %p159
        $region86: #{masker_forward.1} parent=63 // pred_check_branch
          %520 = sbr.rel (%p518) target = $region88
        $region87: #{masker_forward.1} parent=63 // pred_region
          %521 = dma.done [#allocation12], 16
        $region88: #{masker_forward.1} parent=63 // pred_fallthru
          _
        // Predicated region
        $region89: #{masker_forward.1} parent=63 // pred_check
          %p522 = pneg %p180
        $region90: #{masker_forward.1} parent=63 // pred_check_branch
          %524 = sbr.rel (%p522) target = $region92
        $region91: #{masker_forward.1} parent=63 // pred_region
          %525 = dma.done [#allocation12], 16
        $region92: #{masker_forward.1} parent=63 // pred_fallthru
          _
        // Predicated region
        $region93: #{masker_forward.1} parent=63 // pred_check
          %p526 = pneg %p201
        $region94: #{masker_forward.1} parent=63 // pred_check_branch
          %528 = sbr.rel (%p526) target = $region96
        $region95: #{masker_forward.1} parent=63 // pred_region
          %529 = dma.done [#allocation15], 1024
        $region96: #{masker_forward.1} parent=63 // pred_fallthru
          _
        // Predicated region
        $region97: #{masker_forward.1} parent=63 // pred_check
          %p530 = pneg %p222
        $region98: #{masker_forward.1} parent=63 // pred_check_branch
          %532 = sbr.rel (%p530) target = $region100
        $region99: #{masker_forward.1} parent=63 // pred_region
          %533 = dma.done [#allocation15], 16
        $region100: #{masker_forward.1} parent=63 // pred_fallthru
          _
        // Predicated region
        $region101: #{masker_forward.1} parent=63 // pred_check
          %p534 = pneg %p243
        $region102: #{masker_forward.1} parent=63 // pred_check_branch
          %536 = sbr.rel (%p534) target = $region104
        $region103: #{masker_forward.1} parent=63 // pred_region
          %537 = dma.done [#allocation18], 16
        $region104: #{masker_forward.1} parent=63 // pred_fallthru
          _
        %s538 = sand.u32 %s33, 1
        %s539 = scalar_lea.sflag [#allocation3], %s538
        %s540 = sand.u32 %s256, 1
        %s541 = smul.addr %s540, 2048
        %s542 = scalar_lea.vmem [#allocation19], %s541
        // Predicated region
        $region105: #{masker_forward.1} parent=63 // pred_check
          %p543 = pneg %p269
        $region106: #{masker_forward.1} parent=63 // pred_check_branch
          %545 = sbr.rel (%p543) target = $region108
        $region107: #{masker_forward.1} parent=63 // pred_region
          %546 = dma.done %s539, 32768
        $region108: #{masker_forward.1} parent=63 // pred_fallthru
          _
        %s547 = sand.u32 %s33, 1
        %s548 = scalar_lea.sflag [#allocation3], %s547
        %s549 = sand.u32 %s41, 1
        %s550 = smul.addr %s549, 64
        %s551 = scalar_lea.vmem [#allocation2], %s550
        %p552 = pneg %p54
        %p553 = pneg %p51
        %p554 = pneg %p75
        %p555 = pneg %p72
        %p556 = pneg %p96
        %p557 = pneg %p93
        %p558 = pneg %p117
        %p559 = pneg %p114
        %p560 = pneg %p138
        %p561 = pneg %p135
        %p562 = pneg %p159
        %p563 = pneg %p156
        %p564 = pneg %p180
        %p565 = pneg %p177
        %p566 = pneg %p201
        %p567 = pneg %p198
        %p568 = pneg %p222
        %p569 = pneg %p219
        %p570 = pneg %p243
        %p571 = pneg %p240
        %s572 = sand.u32 %s33, 1
        %s573 = scalar_lea.sflag [#allocation3], %s572
        %s574 = sand.u32 %s256, 1
        %s575 = smul.addr %s574, 2048
        %s576 = scalar_lea.vmem [#allocation19], %s575
        %p577 = pneg %p269
        %p578 = pneg %p266
        %p579 = pneg %p295
        %p580 = pneg %p292
        %s581 = sand.u32 %s282, 1
        %s582 = scalar_lea.sflag [#allocation4], %s581
        %s583 = sand.u32 %s282, 1
        %s584 = smul.addr %s583, 128
        %s585 = scalar_lea.vmem [#allocation20], %s584
        %s586 = smul.u32 16, %s33
        %s587 = smul.u32 16, %s33
        %s588 = smul.u32 16, %s33
        %v590 = vld [vmem:[%s497] sm:$0xf]
        %v591 = vld [vmem:[%s497 + $0x4] sm:$0xf]
        %v592 = vld [vmem:[%s497 + $0x8] sm:$0xf]
        %v593 = vld [vmem:[%s497 + $0xc] sm:$0xf]
        %v594 = vld [vmem:[%s497 + $0x10] sm:$0xf]
        %v595 = vld [vmem:[%s497 + $0x14] sm:$0xf]
        %v596 = vld [vmem:[%s497 + $0x18] sm:$0xf]
        %v597 = vld [vmem:[%s497 + $0x1c] sm:$0xf]
        %v598 = vld [vmem:[%s497 + $0x20] sm:$0xf]
        %v599 = vld [vmem:[%s497 + $0x24] sm:$0xf]
        %v600 = vld [vmem:[%s497 + $0x28] sm:$0xf]
        %v601 = vld [vmem:[%s497 + $0x2c] sm:$0xf]
        %v602 = vld [vmem:[%s497 + $0x30] sm:$0xf]
        %v603 = vld [vmem:[%s497 + $0x34] sm:$0xf]
        %v604 = vld [vmem:[%s497 + $0x38] sm:$0xf]
        %v605 = vld [vmem:[%s497 + $0x3c] sm:$0xf]
        %v606 = vld [vmem:[#allocation5] sm:$0xf]
        %v607 = vld [vmem:[#allocation5 + $0x4] sm:$0xf]
        %v608 = vld [vmem:[#allocation5 + $0x8] sm:$0xf]
        %v609 = vld [vmem:[#allocation5 + $0xc] sm:$0xf]
        %v610 = vld [vmem:[#allocation5 + $0x10] sm:$0xf]
        %v611 = vld [vmem:[#allocation5 + $0x14] sm:$0xf]
        %v612 = vld [vmem:[#allocation5 + $0x18] sm:$0xf]
        %v613 = vld [vmem:[#allocation5 + $0x1c] sm:$0xf]
        %v614 = vld [vmem:[#allocation5 + $0x20] sm:$0xf]
        %v615 = vld [vmem:[#allocation5 + $0x24] sm:$0xf]
        %v616 = vld [vmem:[#allocation5 + $0x28] sm:$0xf]
        %v617 = vld [vmem:[#allocation5 + $0x2c] sm:$0xf]
        %v618 = vld [vmem:[#allocation5 + $0x30] sm:$0xf]
        %v619 = vld [vmem:[#allocation5 + $0x34] sm:$0xf]
        %v620 = vld [vmem:[#allocation5 + $0x38] sm:$0xf]
        %v621 = vld [vmem:[#allocation5 + $0x3c] sm:$0xf]
        %v638 = vunpack.c.l.b16 %v590
        %v639 = vunpack.c.l.b16 %v591
        %v640 = vunpack.c.l.b16 %v592
        %v641 = vunpack.c.l.b16 %v593
        %v642 = vunpack.c.l.b16 %v594
        %v643 = vunpack.c.l.b16 %v595
        %v644 = vunpack.c.l.b16 %v596
        %v645 = vunpack.c.l.b16 %v597
        %v646 = vunpack.c.l.b16 %v598
        %v647 = vunpack.c.l.b16 %v599
        %v648 = vunpack.c.l.b16 %v600
        %v649 = vunpack.c.l.b16 %v601
        %v650 = vunpack.c.l.b16 %v602
        %v651 = vunpack.c.l.b16 %v603
        %v652 = vunpack.c.l.b16 %v604
        %v653 = vunpack.c.l.b16 %v605
        %v654 = vpack.c.b16 %v639, %v638
        %v655 = vpack.c.b16 %v641, %v640
        %v656 = vpack.c.b16 %v643, %v642
        %v657 = vpack.c.b16 %v645, %v644
        %v658 = vpack.c.b16 %v647, %v646
        %v659 = vpack.c.b16 %v649, %v648
        %v660 = vpack.c.b16 %v651, %v650
        %v661 = vpack.c.b16 %v653, %v652
        %v686 = vunpack.c.l.b16 %v606
        %v687 = vunpack.c.l.b16 %v607
        %v688 = vunpack.c.l.b16 %v608
        %v689 = vunpack.c.l.b16 %v609
        %v690 = vunpack.c.l.b16 %v610
        %v691 = vunpack.c.l.b16 %v611
        %v692 = vunpack.c.l.b16 %v612
        %v693 = vunpack.c.l.b16 %v613
        %v694 = vunpack.c.l.b16 %v614
        %v695 = vunpack.c.l.b16 %v615
        %v696 = vunpack.c.l.b16 %v616
        %v697 = vunpack.c.l.b16 %v617
        %v698 = vunpack.c.l.b16 %v618
        %v699 = vunpack.c.l.b16 %v619
        %v700 = vunpack.c.l.b16 %v620
        %v701 = vunpack.c.l.b16 %v621
        %v702 = vpack.c.b16 %v687, %v686
        %v703 = vpack.c.b16 %v689, %v688
        %v704 = vpack.c.b16 %v691, %v690
        %v705 = vpack.c.b16 %v693, %v692
        %v706 = vpack.c.b16 %v695, %v694
        %v707 = vpack.c.b16 %v697, %v696
        %v708 = vpack.c.b16 %v699, %v698
        %v709 = vpack.c.b16 %v701, %v700
        %718 = vmatprep.subr.bf16.mxu0 0
        %719 = vmatpush1.bf16.msra.mxu0 %v709
        %720 = vmatprep.subr.bf16.mxu0 0
        %721 = vmatpush1.bf16.msra.mxu0 %v708
        %722 = vmatprep.subr.bf16.mxu0 0
        %723 = vmatpush1.bf16.msra.mxu0 %v707
        %724 = vmatprep.subr.bf16.mxu0 0
        %725 = vmatpush1.bf16.msra.mxu0 %v706
        %726 = vmatprep.subr.bf16.mxu0 0
        %727 = vmatpush1.bf16.msra.mxu0 %v705
        %728 = vmatprep.subr.bf16.mxu0 0
        %729 = vmatpush1.bf16.msra.mxu0 %v704
        %730 = vmatprep.subr.bf16.mxu0 0
        %731 = vmatpush1.bf16.msra.mxu0 %v703
        %732 = vmatprep.subr.bf16.mxu0 0
        %733 = vmatpush1.bf16.msra.mxu0 %v702
        %734 = vmatprep.subr.bf16.mxu0 0
        %735 = vmatpush2.bf16.msra.mxu0 0
        %736 = vmatprep.subr.bf16.mxu0 0
        %737 = vmatpush2.bf16.msra.mxu0 0
        %738 = vmatprep.subr.bf16.mxu0 0
        %739 = vmatpush2.bf16.msra.mxu0 0
        %740 = vmatprep.subr.bf16.mxu0 0
        %741 = vmatpush2.bf16.msra.mxu0 0
        %742 = vmatprep.subr.bf16.mxu0 0
        %743 = vmatpush2.bf16.msra.mxu0 0
        %744 = vmatprep.subr.bf16.mxu0 0
        %745 = vmatpush2.bf16.msra.mxu0 0
        %746 = vmatprep.subr.bf16.mxu0 0
        %747 = vmatpush2.bf16.msra.mxu0 0
        %748 = vmatprep.subr.bf16.mxu0 0
        %749 = vmatpush2.bf16.msra.mxu0 0
        %750 = vmatprep.mubr.bf16.mxu0 0
        %751 = vmatmul.mubr.bf16.gmra.mxu0 %v654
        %v752 = vpop.f32.mrf.mxu0
        %v753 = vadd.f32 0.0, %v752
        %v754 = vpop.f32.mrf.mxu0
        %v755 = vpop.f32.mrf.mxu0
        %v756 = vadd.f32 0.0, %v755
        %v757 = vpop.f32.mrf.mxu0
        %758 = vmatprep.mubr.bf16.mxu0 0
        %759 = vmatmul.mubr.bf16.gmra.mxu0 %v655
        %v760 = vpop.f32.mrf.mxu0
        %v761 = vadd.f32 0.0, %v760
        %v762 = vpop.f32.mrf.mxu0
        %v763 = vpop.f32.mrf.mxu0
        %v764 = vadd.f32 0.0, %v763
        %v765 = vpop.f32.mrf.mxu0
        %766 = vmatprep.mubr.bf16.mxu0 0
        %767 = vmatmul.mubr.bf16.gmra.mxu0 %v656
        %v768 = vpop.f32.mrf.mxu0
        %v769 = vadd.f32 0.0, %v768
        %v770 = vpop.f32.mrf.mxu0
        %v771 = vpop.f32.mrf.mxu0
        %v772 = vadd.f32 0.0, %v771
        %v773 = vpop.f32.mrf.mxu0
        %774 = vmatprep.mubr.bf16.mxu0 0
        %775 = vmatmul.mubr.bf16.gmra.mxu0 %v657
        %v776 = vpop.f32.mrf.mxu0
        %v777 = vadd.f32 0.0, %v776
        %v778 = vpop.f32.mrf.mxu0
        %v779 = vpop.f32.mrf.mxu0
        %v780 = vadd.f32 0.0, %v779
        %v781 = vpop.f32.mrf.mxu0
        %782 = vmatprep.mubr.bf16.mxu0 0
        %783 = vmatmul.mubr.bf16.gmra.mxu0 %v658
        %v784 = vpop.f32.mrf.mxu0
        %v785 = vadd.f32 0.0, %v784
        %v786 = vpop.f32.mrf.mxu0
        %v787 = vpop.f32.mrf.mxu0
        %v788 = vadd.f32 0.0, %v787
        %v789 = vpop.f32.mrf.mxu0
        %790 = vmatprep.mubr.bf16.mxu0 0
        %791 = vmatmul.mubr.bf16.gmra.mxu0 %v659
        %v792 = vpop.f32.mrf.mxu0
        %v793 = vadd.f32 0.0, %v792
        %v794 = vpop.f32.mrf.mxu0
        %v795 = vpop.f32.mrf.mxu0
        %v796 = vadd.f32 0.0, %v795
        %v797 = vpop.f32.mrf.mxu0
        %798 = vmatprep.mubr.bf16.mxu0 0
        %799 = vmatmul.mubr.bf16.gmra.mxu0 %v660
        %v800 = vpop.f32.mrf.mxu0
        %v801 = vadd.f32 0.0, %v800
        %v802 = vpop.f32.mrf.mxu0
        %v803 = vpop.f32.mrf.mxu0
        %v804 = vadd.f32 0.0, %v803
        %v805 = vpop.f32.mrf.mxu0
        %806 = vmatprep.mubr.bf16.mxu0 0
        %807 = vmatmul.mubr.bf16.gmra.mxu0 %v661
        %v808 = vpop.f32.mrf.mxu0
        %v809 = vadd.f32 0.0, %v808
        %v810 = vpop.f32.mrf.mxu0
        %v811 = vpop.f32.mrf.mxu0
        %v812 = vadd.f32 0.0, %v811
        %v813 = vpop.f32.mrf.mxu0
        %814 = vdwg.mxu0
        %v815 = vld [vmem:[#allocation7] sm:$0x1]
        %v817 = vlaneseq
        %v818 = vshrl.u32 %v817, 7
        %v819 = vsub.s32 0, %v818
        %v820 = vrot.slane %v815, %v819
        %v822 = vmul.f32 %v753, %v820
        %v823 = vmul.f32 %v756, %v820
        %v824 = vmul.f32 %v761, %v820
        %v825 = vmul.f32 %v764, %v820
        %v826 = vmul.f32 %v769, %v820
        %v827 = vmul.f32 %v772, %v820
        %v828 = vmul.f32 %v777, %v820
        %v829 = vmul.f32 %v780, %v820
        %v830 = vmul.f32 %v785, %v820
        %v831 = vmul.f32 %v788, %v820
        %v832 = vmul.f32 %v793, %v820
        %v833 = vmul.f32 %v796, %v820
        %v834 = vmul.f32 %v801, %v820
        %v835 = vmul.f32 %v804, %v820
        %v836 = vmul.f32 %v809, %v820
        %v837 = vmul.f32 %v812, %v820
        %v838 = vld [vmem:[#allocation8] sm:$0x1]
        %v840 = vlaneseq
        %v841 = vshrl.u32 %v840, 7
        %v842 = vsub.s32 0, %v841
        %v843 = vrot.slane %v838, %v842
        %v845 = vadd.f32 %v822, %v843
        %v846 = vadd.f32 %v823, %v843
        %v847 = vadd.f32 %v824, %v843
        %v848 = vadd.f32 %v825, %v843
        %v849 = vadd.f32 %v826, %v843
        %v850 = vadd.f32 %v827, %v843
        %v851 = vadd.f32 %v828, %v843
        %v852 = vadd.f32 %v829, %v843
        %v853 = vadd.f32 %v830, %v843
        %v854 = vadd.f32 %v831, %v843
        %v855 = vadd.f32 %v832, %v843
        %v856 = vadd.f32 %v833, %v843
        %v857 = vadd.f32 %v834, %v843
        %v858 = vadd.f32 %v835, %v843
        %v859 = vadd.f32 %v836, %v843
        %v860 = vadd.f32 %v837, %v843
        %v861 = vmax.f32 %v845, 0.0
        %v862 = vmax.f32 %v846, 0.0
        %v863 = vmax.f32 %v847, 0.0
        %v864 = vmax.f32 %v848, 0.0
        %v865 = vmax.f32 %v849, 0.0
        %v866 = vmax.f32 %v850, 0.0
        %v867 = vmax.f32 %v851, 0.0
        %v868 = vmax.f32 %v852, 0.0
        %v869 = vmax.f32 %v853, 0.0
        %v870 = vmax.f32 %v854, 0.0
        %v871 = vmax.f32 %v855, 0.0
        %v872 = vmax.f32 %v856, 0.0
        %v873 = vmax.f32 %v857, 0.0
        %v874 = vmax.f32 %v858, 0.0
        %v875 = vmax.f32 %v859, 0.0
        %v876 = vmax.f32 %v860, 0.0
        %v877 = vpack.c.bf16 %v862, %v861
        %v878 = vpack.c.bf16 %v864, %v863
        %v879 = vpack.c.bf16 %v866, %v865
        %v880 = vpack.c.bf16 %v868, %v867
        %v881 = vpack.c.bf16 %v870, %v869
        %v882 = vpack.c.bf16 %v872, %v871
        %v883 = vpack.c.bf16 %v874, %v873
        %v884 = vpack.c.bf16 %v876, %v875
        %v885 = vld [vmem:[#allocation10] sm:$0xf]
        %v886 = vld [vmem:[#allocation10 + $0x4] sm:$0xf]
        %v887 = vld [vmem:[#allocation10 + $0x8] sm:$0xf]
        %v888 = vld [vmem:[#allocation10 + $0xc] sm:$0xf]
        %v889 = vld [vmem:[#allocation10 + $0x10] sm:$0xf]
        %v890 = vld [vmem:[#allocation10 + $0x14] sm:$0xf]
        %v891 = vld [vmem:[#allocation10 + $0x18] sm:$0xf]
        %v892 = vld [vmem:[#allocation10 + $0x1c] sm:$0xf]
        %v893 = vld [vmem:[#allocation10 + $0x20] sm:$0xf]
        %v894 = vld [vmem:[#allocation10 + $0x24] sm:$0xf]
        %v895 = vld [vmem:[#allocation10 + $0x28] sm:$0xf]
        %v896 = vld [vmem:[#allocation10 + $0x2c] sm:$0xf]
        %v897 = vld [vmem:[#allocation10 + $0x30] sm:$0xf]
        %v898 = vld [vmem:[#allocation10 + $0x34] sm:$0xf]
        %v899 = vld [vmem:[#allocation10 + $0x38] sm:$0xf]
        %v900 = vld [vmem:[#allocation10 + $0x3c] sm:$0xf]
        %v917 = vunpack.c.l.b16 %v885
        %v918 = vunpack.c.l.b16 %v886
        %v919 = vunpack.c.l.b16 %v887
        %v920 = vunpack.c.l.b16 %v888
        %v921 = vunpack.c.l.b16 %v889
        %v922 = vunpack.c.l.b16 %v890
        %v923 = vunpack.c.l.b16 %v891
        %v924 = vunpack.c.l.b16 %v892
        %v925 = vunpack.c.l.b16 %v893
        %v926 = vunpack.c.l.b16 %v894
        %v927 = vunpack.c.l.b16 %v895
        %v928 = vunpack.c.l.b16 %v896
        %v929 = vunpack.c.l.b16 %v897
        %v930 = vunpack.c.l.b16 %v898
        %v931 = vunpack.c.l.b16 %v899
        %v932 = vunpack.c.l.b16 %v900
        %v933 = vpack.c.b16 %v918, %v917
        %v934 = vpack.c.b16 %v920, %v919
        %v935 = vpack.c.b16 %v922, %v921
        %v936 = vpack.c.b16 %v924, %v923
        %v937 = vpack.c.b16 %v926, %v925
        %v938 = vpack.c.b16 %v928, %v927
        %v939 = vpack.c.b16 %v930, %v929
        %v940 = vpack.c.b16 %v932, %v931
        %949 = vmatprep.subr.bf16.mxu0 0
        %950 = vmatpush1.bf16.msra.mxu0 %v940
        %951 = vmatprep.subr.bf16.mxu0 0
        %952 = vmatpush1.bf16.msra.mxu0 %v939
        %953 = vmatprep.subr.bf16.mxu0 0
        %954 = vmatpush1.bf16.msra.mxu0 %v938
        %955 = vmatprep.subr.bf16.mxu0 0
        %956 = vmatpush1.bf16.msra.mxu0 %v937
        %957 = vmatprep.subr.bf16.mxu0 0
        %958 = vmatpush1.bf16.msra.mxu0 %v936
        %959 = vmatprep.subr.bf16.mxu0 0
        %960 = vmatpush1.bf16.msra.mxu0 %v935
        %961 = vmatprep.subr.bf16.mxu0 0
        %962 = vmatpush1.bf16.msra.mxu0 %v934
        %963 = vmatprep.subr.bf16.mxu0 0
        %964 = vmatpush1.bf16.msra.mxu0 %v933
        %965 = vmatprep.subr.bf16.mxu0 0
        %966 = vmatpush2.bf16.msra.mxu0 0
        %967 = vmatprep.subr.bf16.mxu0 0
        %968 = vmatpush2.bf16.msra.mxu0 0
        %969 = vmatprep.subr.bf16.mxu0 0
        %970 = vmatpush2.bf16.msra.mxu0 0
        %971 = vmatprep.subr.bf16.mxu0 0
        %972 = vmatpush2.bf16.msra.mxu0 0
        %973 = vmatprep.subr.bf16.mxu0 0
        %974 = vmatpush2.bf16.msra.mxu0 0
        %975 = vmatprep.subr.bf16.mxu0 0
        %976 = vmatpush2.bf16.msra.mxu0 0
        %977 = vmatprep.subr.bf16.mxu0 0
        %978 = vmatpush2.bf16.msra.mxu0 0
        %979 = vmatprep.subr.bf16.mxu0 0
        %980 = vmatpush2.bf16.msra.mxu0 0
        %981 = vmatprep.mubr.bf16.mxu0 0
        %982 = vmatmul.mubr.bf16.gmra.mxu0 %v877
        %v983 = vpop.f32.mrf.mxu0
        %v984 = vadd.f32 0.0, %v983
        %v985 = vpop.f32.mrf.mxu0
        %v986 = vpop.f32.mrf.mxu0
        %v987 = vadd.f32 0.0, %v986
        %v988 = vpop.f32.mrf.mxu0
        %989 = vmatprep.mubr.bf16.mxu0 0
        %990 = vmatmul.mubr.bf16.gmra.mxu0 %v878
        %v991 = vpop.f32.mrf.mxu0
        %v992 = vadd.f32 0.0, %v991
        %v993 = vpop.f32.mrf.mxu0
        %v994 = vpop.f32.mrf.mxu0
        %v995 = vadd.f32 0.0, %v994
        %v996 = vpop.f32.mrf.mxu0
        %997 = vmatprep.mubr.bf16.mxu0 0
        %998 = vmatmul.mubr.bf16.gmra.mxu0 %v879
        %v999 = vpop.f32.mrf.mxu0
        %v1000 = vadd.f32 0.0, %v999
        %v1001 = vpop.f32.mrf.mxu0
        %v1002 = vpop.f32.mrf.mxu0
        %v1003 = vadd.f32 0.0, %v1002
        %v1004 = vpop.f32.mrf.mxu0
        %1005 = vmatprep.mubr.bf16.mxu0 0
        %1006 = vmatmul.mubr.bf16.gmra.mxu0 %v880
        %v1007 = vpop.f32.mrf.mxu0
        %v1008 = vadd.f32 0.0, %v1007
        %v1009 = vpop.f32.mrf.mxu0
        %v1010 = vpop.f32.mrf.mxu0
        %v1011 = vadd.f32 0.0, %v1010
        %v1012 = vpop.f32.mrf.mxu0
        %1013 = vmatprep.mubr.bf16.mxu0 0
        %1014 = vmatmul.mubr.bf16.gmra.mxu0 %v881
        %v1015 = vpop.f32.mrf.mxu0
        %v1016 = vadd.f32 0.0, %v1015
        %v1017 = vpop.f32.mrf.mxu0
        %v1018 = vpop.f32.mrf.mxu0
        %v1019 = vadd.f32 0.0, %v1018
        %v1020 = vpop.f32.mrf.mxu0
        %1021 = vmatprep.mubr.bf16.mxu0 0
        %1022 = vmatmul.mubr.bf16.gmra.mxu0 %v882
        %v1023 = vpop.f32.mrf.mxu0
        %v1024 = vadd.f32 0.0, %v1023
        %v1025 = vpop.f32.mrf.mxu0
        %v1026 = vpop.f32.mrf.mxu0
        %v1027 = vadd.f32 0.0, %v1026
        %v1028 = vpop.f32.mrf.mxu0
        %1029 = vmatprep.mubr.bf16.mxu0 0
        %1030 = vmatmul.mubr.bf16.gmra.mxu0 %v883
        %v1031 = vpop.f32.mrf.mxu0
        %v1032 = vadd.f32 0.0, %v1031
        %v1033 = vpop.f32.mrf.mxu0
        %v1034 = vpop.f32.mrf.mxu0
        %v1035 = vadd.f32 0.0, %v1034
        %v1036 = vpop.f32.mrf.mxu0
        %1037 = vmatprep.mubr.bf16.mxu0 0
        %1038 = vmatmul.mubr.bf16.gmra.mxu0 %v884
        %v1039 = vpop.f32.mrf.mxu0
        %v1040 = vadd.f32 0.0, %v1039
        %v1041 = vpop.f32.mrf.mxu0
        %v1042 = vpop.f32.mrf.mxu0
        %v1043 = vadd.f32 0.0, %v1042
        %v1044 = vpop.f32.mrf.mxu0
        %1045 = vdwg.mxu0
        %v1046 = vld [vmem:[#allocation11] sm:$0x1]
        %v1048 = vlaneseq
        %v1049 = vshrl.u32 %v1048, 7
        %v1050 = vsub.s32 0, %v1049
        %v1051 = vrot.slane %v1046, %v1050
        %v1053 = vmul.f32 %v984, %v1051
        %v1054 = vmul.f32 %v987, %v1051
        %v1055 = vmul.f32 %v992, %v1051
        %v1056 = vmul.f32 %v995, %v1051
        %v1057 = vmul.f32 %v1000, %v1051
        %v1058 = vmul.f32 %v1003, %v1051
        %v1059 = vmul.f32 %v1008, %v1051
        %v1060 = vmul.f32 %v1011, %v1051
        %v1061 = vmul.f32 %v1016, %v1051
        %v1062 = vmul.f32 %v1019, %v1051
        %v1063 = vmul.f32 %v1024, %v1051
        %v1064 = vmul.f32 %v1027, %v1051
        %v1065 = vmul.f32 %v1032, %v1051
        %v1066 = vmul.f32 %v1035, %v1051
        %v1067 = vmul.f32 %v1040, %v1051
        %v1068 = vmul.f32 %v1043, %v1051
        %v1069 = vld [vmem:[#allocation13] sm:$0x1]
        %v1071 = vlaneseq
        %v1072 = vshrl.u32 %v1071, 7
        %v1073 = vsub.s32 0, %v1072
        %v1074 = vrot.slane %v1069, %v1073
        %v1076 = vadd.f32 %v1053, %v1074
        %v1077 = vadd.f32 %v1054, %v1074
        %v1078 = vadd.f32 %v1055, %v1074
        %v1079 = vadd.f32 %v1056, %v1074
        %v1080 = vadd.f32 %v1057, %v1074
        %v1081 = vadd.f32 %v1058, %v1074
        %v1082 = vadd.f32 %v1059, %v1074
        %v1083 = vadd.f32 %v1060, %v1074
        %v1084 = vadd.f32 %v1061, %v1074
        %v1085 = vadd.f32 %v1062, %v1074
        %v1086 = vadd.f32 %v1063, %v1074
        %v1087 = vadd.f32 %v1064, %v1074
        %v1088 = vadd.f32 %v1065, %v1074
        %v1089 = vadd.f32 %v1066, %v1074
        %v1090 = vadd.f32 %v1067, %v1074
        %v1091 = vadd.f32 %v1068, %v1074
        %v1092 = vmax.f32 %v1076, 0.0
        %v1093 = vmax.f32 %v1077, 0.0
        %v1094 = vmax.f32 %v1078, 0.0
        %v1095 = vmax.f32 %v1079, 0.0
        %v1096 = vmax.f32 %v1080, 0.0
        %v1097 = vmax.f32 %v1081, 0.0
        %v1098 = vmax.f32 %v1082, 0.0
        %v1099 = vmax.f32 %v1083, 0.0
        %v1100 = vmax.f32 %v1084, 0.0
        %v1101 = vmax.f32 %v1085, 0.0
        %v1102 = vmax.f32 %v1086, 0.0
        %v1103 = vmax.f32 %v1087, 0.0
        %v1104 = vmax.f32 %v1088, 0.0
        %v1105 = vmax.f32 %v1089, 0.0
        %v1106 = vmax.f32 %v1090, 0.0
        %v1107 = vmax.f32 %v1091, 0.0
        %v1108 = vpack.c.bf16 %v1093, %v1092
        %v1109 = vpack.c.bf16 %v1095, %v1094
        %v1110 = vpack.c.bf16 %v1097, %v1096
        %v1111 = vpack.c.bf16 %v1099, %v1098
        %v1112 = vpack.c.bf16 %v1101, %v1100
        %v1113 = vpack.c.bf16 %v1103, %v1102
        %v1114 = vpack.c.bf16 %v1105, %v1104
        %v1115 = vpack.c.bf16 %v1107, %v1106
        %v1116 = vld [vmem:[#allocation14] sm:$0xf]
        %v1117 = vld [vmem:[#allocation14 + $0x4] sm:$0xf]
        %v1118 = vld [vmem:[#allocation14 + $0x8] sm:$0xf]
        %v1119 = vld [vmem:[#allocation14 + $0xc] sm:$0xf]
        %v1120 = vld [vmem:[#allocation14 + $0x10] sm:$0xf]
        %v1121 = vld [vmem:[#allocation14 + $0x14] sm:$0xf]
        %v1122 = vld [vmem:[#allocation14 + $0x18] sm:$0xf]
        %v1123 = vld [vmem:[#allocation14 + $0x1c] sm:$0xf]
        %v1124 = vld [vmem:[#allocation14 + $0x20] sm:$0xf]
        %v1125 = vld [vmem:[#allocation14 + $0x24] sm:$0xf]
        %v1126 = vld [vmem:[#allocation14 + $0x28] sm:$0xf]
        %v1127 = vld [vmem:[#allocation14 + $0x2c] sm:$0xf]
        %v1128 = vld [vmem:[#allocation14 + $0x30] sm:$0xf]
        %v1129 = vld [vmem:[#allocation14 + $0x34] sm:$0xf]
        %v1130 = vld [vmem:[#allocation14 + $0x38] sm:$0xf]
        %v1131 = vld [vmem:[#allocation14 + $0x3c] sm:$0xf]
        %v1148 = vunpack.c.l.b16 %v1116
        %v1149 = vunpack.c.l.b16 %v1117
        %v1150 = vunpack.c.l.b16 %v1118
        %v1151 = vunpack.c.l.b16 %v1119
        %v1152 = vunpack.c.l.b16 %v1120
        %v1153 = vunpack.c.l.b16 %v1121
        %v1154 = vunpack.c.l.b16 %v1122
        %v1155 = vunpack.c.l.b16 %v1123
        %v1156 = vunpack.c.l.b16 %v1124
        %v1157 = vunpack.c.l.b16 %v1125
        %v1158 = vunpack.c.l.b16 %v1126
        %v1159 = vunpack.c.l.b16 %v1127
        %v1160 = vunpack.c.l.b16 %v1128
        %v1161 = vunpack.c.l.b16 %v1129
        %v1162 = vunpack.c.l.b16 %v1130
        %v1163 = vunpack.c.l.b16 %v1131
        %v1164 = vpack.c.b16 %v1149, %v1148
        %v1165 = vpack.c.b16 %v1151, %v1150
        %v1166 = vpack.c.b16 %v1153, %v1152
        %v1167 = vpack.c.b16 %v1155, %v1154
        %v1168 = vpack.c.b16 %v1157, %v1156
        %v1169 = vpack.c.b16 %v1159, %v1158
        %v1170 = vpack.c.b16 %v1161, %v1160
        %v1171 = vpack.c.b16 %v1163, %v1162
        %1180 = vmatprep.subr.bf16.mxu0 0
        %1181 = vmatpush1.bf16.msra.mxu0 %v1171
        %1182 = vmatprep.subr.bf16.mxu0 0
        %1183 = vmatpush1.bf16.msra.mxu0 %v1170
        %1184 = vmatprep.subr.bf16.mxu0 0
        %1185 = vmatpush1.bf16.msra.mxu0 %v1169
        %1186 = vmatprep.subr.bf16.mxu0 0
        %1187 = vmatpush1.bf16.msra.mxu0 %v1168
        %1188 = vmatprep.subr.bf16.mxu0 0
        %1189 = vmatpush1.bf16.msra.mxu0 %v1167
        %1190 = vmatprep.subr.bf16.mxu0 0
        %1191 = vmatpush1.bf16.msra.mxu0 %v1166
        %1192 = vmatprep.subr.bf16.mxu0 0
        %1193 = vmatpush1.bf16.msra.mxu0 %v1165
        %1194 = vmatprep.subr.bf16.mxu0 0
        %1195 = vmatpush1.bf16.msra.mxu0 %v1164
        %1196 = vmatprep.subr.bf16.mxu0 0
        %1197 = vmatpush2.bf16.msra.mxu0 0
        %1198 = vmatprep.subr.bf16.mxu0 0
        %1199 = vmatpush2.bf16.msra.mxu0 0
        %1200 = vmatprep.subr.bf16.mxu0 0
        %1201 = vmatpush2.bf16.msra.mxu0 0
        %1202 = vmatprep.subr.bf16.mxu0 0
        %1203 = vmatpush2.bf16.msra.mxu0 0
        %1204 = vmatprep.subr.bf16.mxu0 0
        %1205 = vmatpush2.bf16.msra.mxu0 0
        %1206 = vmatprep.subr.bf16.mxu0 0
        %1207 = vmatpush2.bf16.msra.mxu0 0
        %1208 = vmatprep.subr.bf16.mxu0 0
        %1209 = vmatpush2.bf16.msra.mxu0 0
        %1210 = vmatprep.subr.bf16.mxu0 0
        %1211 = vmatpush2.bf16.msra.mxu0 0
        %1212 = vmatprep.mubr.bf16.mxu0 0
        %1213 = vmatmul.mubr.bf16.gmra.mxu0 %v1108
        %v1214 = vpop.f32.mrf.mxu0
        %v1215 = vadd.f32 0.0, %v1214
        %v1216 = vpop.f32.mrf.mxu0
        %v1217 = vpop.f32.mrf.mxu0
        %v1218 = vadd.f32 0.0, %v1217
        %v1219 = vpop.f32.mrf.mxu0
        %1220 = vmatprep.mubr.bf16.mxu0 0
        %1221 = vmatmul.mubr.bf16.gmra.mxu0 %v1109
        %v1222 = vpop.f32.mrf.mxu0
        %v1223 = vadd.f32 0.0, %v1222
        %v1224 = vpop.f32.mrf.mxu0
        %v1225 = vpop.f32.mrf.mxu0
        %v1226 = vadd.f32 0.0, %v1225
        %v1227 = vpop.f32.mrf.mxu0
        %1228 = vmatprep.mubr.bf16.mxu0 0
        %1229 = vmatmul.mubr.bf16.gmra.mxu0 %v1110
        %v1230 = vpop.f32.mrf.mxu0
        %v1231 = vadd.f32 0.0, %v1230
        %v1232 = vpop.f32.mrf.mxu0
        %v1233 = vpop.f32.mrf.mxu0
        %v1234 = vadd.f32 0.0, %v1233
        %v1235 = vpop.f32.mrf.mxu0
        %1236 = vmatprep.mubr.bf16.mxu0 0
        %1237 = vmatmul.mubr.bf16.gmra.mxu0 %v1111
        %v1238 = vpop.f32.mrf.mxu0
        %v1239 = vadd.f32 0.0, %v1238
        %v1240 = vpop.f32.mrf.mxu0
        %v1241 = vpop.f32.mrf.mxu0
        %v1242 = vadd.f32 0.0, %v1241
        %v1243 = vpop.f32.mrf.mxu0
        %1244 = vmatprep.mubr.bf16.mxu0 0
        %1245 = vmatmul.mubr.bf16.gmra.mxu0 %v1112
        %v1246 = vpop.f32.mrf.mxu0
        %v1247 = vadd.f32 0.0, %v1246
        %v1248 = vpop.f32.mrf.mxu0
        %v1249 = vpop.f32.mrf.mxu0
        %v1250 = vadd.f32 0.0, %v1249
        %v1251 = vpop.f32.mrf.mxu0
        %1252 = vmatprep.mubr.bf16.mxu0 0
        %1253 = vmatmul.mubr.bf16.gmra.mxu0 %v1113
        %v1254 = vpop.f32.mrf.mxu0
        %v1255 = vadd.f32 0.0, %v1254
        %v1256 = vpop.f32.mrf.mxu0
        %v1257 = vpop.f32.mrf.mxu0
        %v1258 = vadd.f32 0.0, %v1257
        %v1259 = vpop.f32.mrf.mxu0
        %1260 = vmatprep.mubr.bf16.mxu0 0
        %1261 = vmatmul.mubr.bf16.gmra.mxu0 %v1114
        %v1262 = vpop.f32.mrf.mxu0
        %v1263 = vadd.f32 0.0, %v1262
        %v1264 = vpop.f32.mrf.mxu0
        %v1265 = vpop.f32.mrf.mxu0
        %v1266 = vadd.f32 0.0, %v1265
        %v1267 = vpop.f32.mrf.mxu0
        %1268 = vmatprep.mubr.bf16.mxu0 0
        %1269 = vmatmul.mubr.bf16.gmra.mxu0 %v1115
        %v1270 = vpop.f32.mrf.mxu0
        %v1271 = vadd.f32 0.0, %v1270
        %v1272 = vpop.f32.mrf.mxu0
        %v1273 = vpop.f32.mrf.mxu0
        %v1274 = vadd.f32 0.0, %v1273
        %v1275 = vpop.f32.mrf.mxu0
        %1276 = vdwg.mxu0
        %v1277 = vld [vmem:[#allocation16] sm:$0x1]
        %v1279 = vlaneseq
        %v1280 = vshrl.u32 %v1279, 7
        %v1281 = vsub.s32 0, %v1280
        %v1282 = vrot.slane %v1277, %v1281
        %v1284 = vmul.f32 %v1215, %v1282
        %v1285 = vmul.f32 %v1218, %v1282
        %v1286 = vmul.f32 %v1223, %v1282
        %v1287 = vmul.f32 %v1226, %v1282
        %v1288 = vmul.f32 %v1231, %v1282
        %v1289 = vmul.f32 %v1234, %v1282
        %v1290 = vmul.f32 %v1239, %v1282
        %v1291 = vmul.f32 %v1242, %v1282
        %v1292 = vmul.f32 %v1247, %v1282
        %v1293 = vmul.f32 %v1250, %v1282
        %v1294 = vmul.f32 %v1255, %v1282
        %v1295 = vmul.f32 %v1258, %v1282
        %v1296 = vmul.f32 %v1263, %v1282
        %v1297 = vmul.f32 %v1266, %v1282
        %v1298 = vmul.f32 %v1271, %v1282
        %v1299 = vmul.f32 %v1274, %v1282
        %v1300 = vld [vmem:[#allocation17] sm:$0x1]
        %v1302 = vlaneseq
        %v1303 = vshrl.u32 %v1302, 7
        %v1304 = vsub.s32 0, %v1303
        %v1305 = vrot.slane %v1300, %v1304
        %v1307 = vadd.f32 %v1284, %v1305
        %v1308 = vadd.f32 %v1285, %v1305
        %v1309 = vadd.f32 %v1286, %v1305
        %v1310 = vadd.f32 %v1287, %v1305
        %v1311 = vadd.f32 %v1288, %v1305
        %v1312 = vadd.f32 %v1289, %v1305
        %v1313 = vadd.f32 %v1290, %v1305
        %v1314 = vadd.f32 %v1291, %v1305
        %v1315 = vadd.f32 %v1292, %v1305
        %v1316 = vadd.f32 %v1293, %v1305
        %v1317 = vadd.f32 %v1294, %v1305
        %v1318 = vadd.f32 %v1295, %v1305
        %v1319 = vadd.f32 %v1296, %v1305
        %v1320 = vadd.f32 %v1297, %v1305
        %v1321 = vadd.f32 %v1298, %v1305
        %v1322 = vadd.f32 %v1299, %v1305
        %v1323 = vld [vmem:[%s542] sm:$0xff]
        %v1324 = vld [vmem:[%s542 + $0x8] sm:$0xff]
        %v1325 = vld [vmem:[%s542 + $0x10] sm:$0xff]
        %v1326 = vld [vmem:[%s542 + $0x18] sm:$0xff]
        %v1327 = vld [vmem:[%s542 + $0x20] sm:$0xff]
        %v1328 = vld [vmem:[%s542 + $0x28] sm:$0xff]
        %v1329 = vld [vmem:[%s542 + $0x30] sm:$0xff]
        %v1330 = vld [vmem:[%s542 + $0x38] sm:$0xff]
        %v1331 = vld [vmem:[%s542 + $0x40] sm:$0xff]
        %v1332 = vld [vmem:[%s542 + $0x48] sm:$0xff]
        %v1333 = vld [vmem:[%s542 + $0x50] sm:$0xff]
        %v1334 = vld [vmem:[%s542 + $0x58] sm:$0xff]
        %v1335 = vld [vmem:[%s542 + $0x60] sm:$0xff]
        %v1336 = vld [vmem:[%s542 + $0x68] sm:$0xff]
        %v1337 = vld [vmem:[%s542 + $0x70] sm:$0xff]
        %v1338 = vld [vmem:[%s542 + $0x78] sm:$0xff]
        %v1339 = vadd.f32 %v1307, %v1323
        %v1340 = vadd.f32 %v1308, %v1324
        %v1341 = vadd.f32 %v1309, %v1325
        %v1342 = vadd.f32 %v1310, %v1326
        %v1343 = vadd.f32 %v1311, %v1327
        %v1344 = vadd.f32 %v1312, %v1328
        %v1345 = vadd.f32 %v1313, %v1329
        %v1346 = vadd.f32 %v1314, %v1330
        %v1347 = vadd.f32 %v1315, %v1331
        %v1348 = vadd.f32 %v1316, %v1332
        %v1349 = vadd.f32 %v1317, %v1333
        %v1350 = vadd.f32 %v1318, %v1334
        %v1351 = vadd.f32 %v1319, %v1335
        %v1352 = vadd.f32 %v1320, %v1336
        %v1353 = vadd.f32 %v1321, %v1337
        %v1354 = vadd.f32 %v1322, %v1338
        %v1355 = vmul.f32 %v1339, 2.0
        %v1356 = vmul.f32 %v1340, 2.0
        %v1357 = vmul.f32 %v1341, 2.0
        %v1358 = vmul.f32 %v1342, 2.0
        %v1359 = vmul.f32 %v1343, 2.0
        %v1360 = vmul.f32 %v1344, 2.0
        %v1361 = vmul.f32 %v1345, 2.0
        %v1362 = vmul.f32 %v1346, 2.0
        %v1363 = vmul.f32 %v1347, 2.0
        %v1364 = vmul.f32 %v1348, 2.0
        %v1365 = vmul.f32 %v1349, 2.0
        %v1366 = vmul.f32 %v1350, 2.0
        %v1367 = vmul.f32 %v1351, 2.0
        %v1368 = vmul.f32 %v1352, 2.0
        %v1369 = vmul.f32 %v1353, 2.0
        %v1370 = vmul.f32 %v1354, 2.0
        %1371 = vmax.xlane.f32.xlu0 %v1355
        %v1372 = vpop.xlane.xlu0 %1371
        %1373 = vmax.xlane.f32.xlu0 %v1356
        %v1374 = vpop.xlane.xlu0 %1373
        %1375 = vmax.xlane.f32.xlu0 %v1357
        %v1376 = vpop.xlane.xlu0 %1375
        %1377 = vmax.xlane.f32.xlu0 %v1358
        %v1378 = vpop.xlane.xlu0 %1377
        %1379 = vmax.xlane.f32.xlu0 %v1359
        %v1380 = vpop.xlane.xlu0 %1379
        %1381 = vmax.xlane.f32.xlu0 %v1360
        %v1382 = vpop.xlane.xlu0 %1381
        %1383 = vmax.xlane.f32.xlu0 %v1361
        %v1384 = vpop.xlane.xlu0 %1383
        %1385 = vmax.xlane.f32.xlu0 %v1362
        %v1386 = vpop.xlane.xlu0 %1385
        %1387 = vmax.xlane.f32.xlu0 %v1363
        %v1388 = vpop.xlane.xlu0 %1387
        %1389 = vmax.xlane.f32.xlu0 %v1364
        %v1390 = vpop.xlane.xlu0 %1389
        %1391 = vmax.xlane.f32.xlu0 %v1365
        %v1392 = vpop.xlane.xlu0 %1391
        %1393 = vmax.xlane.f32.xlu0 %v1366
        %v1394 = vpop.xlane.xlu0 %1393
        %1395 = vmax.xlane.f32.xlu0 %v1367
        %v1396 = vpop.xlane.xlu0 %1395
        %1397 = vmax.xlane.f32.xlu0 %v1368
        %v1398 = vpop.xlane.xlu0 %1397
        %1399 = vmax.xlane.f32.xlu0 %v1369
        %v1400 = vpop.xlane.xlu0 %1399
        %1401 = vmax.xlane.f32.xlu0 %v1370
        %v1402 = vpop.xlane.xlu0 %1401
        %v1403 = vsub.f32 %v1355, %v1372
        %v1404 = vsub.f32 %v1356, %v1374
        %v1405 = vsub.f32 %v1357, %v1376
        %v1406 = vsub.f32 %v1358, %v1378
        %v1407 = vsub.f32 %v1359, %v1380
        %v1408 = vsub.f32 %v1360, %v1382
        %v1409 = vsub.f32 %v1361, %v1384
        %v1410 = vsub.f32 %v1362, %v1386
        %v1411 = vsub.f32 %v1363, %v1388
        %v1412 = vsub.f32 %v1364, %v1390
        %v1413 = vsub.f32 %v1365, %v1392
        %v1414 = vsub.f32 %v1366, %v1394
        %v1415 = vsub.f32 %v1367, %v1396
        %v1416 = vsub.f32 %v1368, %v1398
        %v1417 = vsub.f32 %v1369, %v1400
        %v1418 = vsub.f32 %v1370, %v1402
        %v1419 = vmul.f32 %v1403, 1.442695
        %v1420 = vpow.pop %v1419
        %v1421 = vmul.f32 %v1404, 1.442695
        %v1422 = vpow.pop %v1421
        %v1423 = vmul.f32 %v1405, 1.442695
        %v1424 = vpow.pop %v1423
        %v1425 = vmul.f32 %v1406, 1.442695
        %v1426 = vpow.pop %v1425
        %v1427 = vmul.f32 %v1407, 1.442695
        %v1428 = vpow.pop %v1427
        %v1429 = vmul.f32 %v1408, 1.442695
        %v1430 = vpow.pop %v1429
        %v1431 = vmul.f32 %v1409, 1.442695
        %v1432 = vpow.pop %v1431
        %v1433 = vmul.f32 %v1410, 1.442695
        %v1434 = vpow.pop %v1433
        %v1435 = vmul.f32 %v1411, 1.442695
        %v1436 = vpow.pop %v1435
        %v1437 = vmul.f32 %v1412, 1.442695
        %v1438 = vpow.pop %v1437
        %v1439 = vmul.f32 %v1413, 1.442695
        %v1440 = vpow.pop %v1439
        %v1441 = vmul.f32 %v1414, 1.442695
        %v1442 = vpow.pop %v1441
        %v1443 = vmul.f32 %v1415, 1.442695
        %v1444 = vpow.pop %v1443
        %v1445 = vmul.f32 %v1416, 1.442695
        %v1446 = vpow.pop %v1445
        %v1447 = vmul.f32 %v1417, 1.442695
        %v1448 = vpow.pop %v1447
        %v1449 = vmul.f32 %v1418, 1.442695
        %v1450 = vpow.pop %v1449
        %1451 = vadd.xlane.f32.xlu0 %v1420
        %v1452 = vpop.xlane.xlu0 %1451
        %1453 = vadd.xlane.f32.xlu0 %v1422
        %v1454 = vpop.xlane.xlu0 %1453
        %1455 = vadd.xlane.f32.xlu0 %v1424
        %v1456 = vpop.xlane.xlu0 %1455
        %1457 = vadd.xlane.f32.xlu0 %v1426
        %v1458 = vpop.xlane.xlu0 %1457
        %1459 = vadd.xlane.f32.xlu0 %v1428
        %v1460 = vpop.xlane.xlu0 %1459
        %1461 = vadd.xlane.f32.xlu0 %v1430
        %v1462 = vpop.xlane.xlu0 %1461
        %1463 = vadd.xlane.f32.xlu0 %v1432
        %v1464 = vpop.xlane.xlu0 %1463
        %1465 = vadd.xlane.f32.xlu0 %v1434
        %v1466 = vpop.xlane.xlu0 %1465
        %1467 = vadd.xlane.f32.xlu0 %v1436
        %v1468 = vpop.xlane.xlu0 %1467
        %1469 = vadd.xlane.f32.xlu0 %v1438
        %v1470 = vpop.xlane.xlu0 %1469
        %1471 = vadd.xlane.f32.xlu0 %v1440
        %v1472 = vpop.xlane.xlu0 %1471
        %1473 = vadd.xlane.f32.xlu0 %v1442
        %v1474 = vpop.xlane.xlu0 %1473
        %1475 = vadd.xlane.f32.xlu0 %v1444
        %v1476 = vpop.xlane.xlu0 %1475
        %1477 = vadd.xlane.f32.xlu0 %v1446
        %v1478 = vpop.xlane.xlu0 %1477
        %1479 = vadd.xlane.f32.xlu0 %v1448
        %v1480 = vpop.xlane.xlu0 %1479
        %1481 = vadd.xlane.f32.xlu0 %v1450
        %v1482 = vpop.xlane.xlu0 %1481
        %v1483 = vrcp.pop %v1452
        %v1484 = vrcp.pop %v1454
        %v1485 = vrcp.pop %v1456
        %v1486 = vrcp.pop %v1458
        %v1487 = vrcp.pop %v1460
        %v1488 = vrcp.pop %v1462
        %v1489 = vrcp.pop %v1464
        %v1490 = vrcp.pop %v1466
        %v1491 = vrcp.pop %v1468
        %v1492 = vrcp.pop %v1470
        %v1493 = vrcp.pop %v1472
        %v1494 = vrcp.pop %v1474
        %v1495 = vrcp.pop %v1476
        %v1496 = vrcp.pop %v1478
        %v1497 = vrcp.pop %v1480
        %v1498 = vrcp.pop %v1482
        %v1499 = vmul.f32 %v1420, %v1483
        %v1500 = vmul.f32 %v1422, %v1484
        %v1501 = vmul.f32 %v1424, %v1485
        %v1502 = vmul.f32 %v1426, %v1486
        %v1503 = vmul.f32 %v1428, %v1487
        %v1504 = vmul.f32 %v1430, %v1488
        %v1505 = vmul.f32 %v1432, %v1489
        %v1506 = vmul.f32 %v1434, %v1490
        %v1507 = vmul.f32 %v1436, %v1491
        %v1508 = vmul.f32 %v1438, %v1492
        %v1509 = vmul.f32 %v1440, %v1493
        %v1510 = vmul.f32 %v1442, %v1494
        %v1511 = vmul.f32 %v1444, %v1495
        %v1512 = vmul.f32 %v1446, %v1496
        %v1513 = vmul.f32 %v1448, %v1497
        %v1514 = vmul.f32 %v1450, %v1498
        %v1515 = vmax.f32 %v1499, 0.0
        %v1516 = vmax.f32 %v1500, 0.0
        %v1517 = vmax.f32 %v1501, 0.0
        %v1518 = vmax.f32 %v1502, 0.0
        %v1519 = vmax.f32 %v1503, 0.0
        %v1520 = vmax.f32 %v1504, 0.0
        %v1521 = vmax.f32 %v1505, 0.0
        %v1522 = vmax.f32 %v1506, 0.0
        %v1523 = vmax.f32 %v1507, 0.0
        %v1524 = vmax.f32 %v1508, 0.0
        %v1525 = vmax.f32 %v1509, 0.0
        %v1526 = vmax.f32 %v1510, 0.0
        %v1527 = vmax.f32 %v1511, 0.0
        %v1528 = vmax.f32 %v1512, 0.0
        %v1529 = vmax.f32 %v1513, 0.0
        %v1530 = vmax.f32 %v1514, 0.0
        %s1531 = scalar_lea.vmem %s542, 128 [#allocation19]
        %v1532 = vld [vmem:[%s1531] sm:$0xff]
        %v1533 = vld [vmem:[%s1531 + $0x8] sm:$0xff]
        %v1534 = vld [vmem:[%s1531 + $0x10] sm:$0xff]
        %v1535 = vld [vmem:[%s1531 + $0x18] sm:$0xff]
        %v1536 = vld [vmem:[%s1531 + $0x20] sm:$0xff]
        %v1537 = vld [vmem:[%s1531 + $0x28] sm:$0xff]
        %v1538 = vld [vmem:[%s1531 + $0x30] sm:$0xff]
        %v1539 = vld [vmem:[%s1531 + $0x38] sm:$0xff]
        %v1540 = vld [vmem:[%s1531 + $0x40] sm:$0xff]
        %v1541 = vld [vmem:[%s1531 + $0x48] sm:$0xff]
        %v1542 = vld [vmem:[%s1531 + $0x50] sm:$0xff]
        %v1543 = vld [vmem:[%s1531 + $0x58] sm:$0xff]
        %v1544 = vld [vmem:[%s1531 + $0x60] sm:$0xff]
        %v1545 = vld [vmem:[%s1531 + $0x68] sm:$0xff]
        %v1546 = vld [vmem:[%s1531 + $0x70] sm:$0xff]
        %v1547 = vld [vmem:[%s1531 + $0x78] sm:$0xff]
        %v1548 = vadd.f32 %v1499, %v1532
        %v1549 = vadd.f32 %v1500, %v1533
        %v1550 = vadd.f32 %v1501, %v1534
        %v1551 = vadd.f32 %v1502, %v1535
        %v1552 = vadd.f32 %v1503, %v1536
        %v1553 = vadd.f32 %v1504, %v1537
        %v1554 = vadd.f32 %v1505, %v1538
        %v1555 = vadd.f32 %v1506, %v1539
        %v1556 = vadd.f32 %v1507, %v1540
        %v1557 = vadd.f32 %v1508, %v1541
        %v1558 = vadd.f32 %v1509, %v1542
        %v1559 = vadd.f32 %v1510, %v1543
        %v1560 = vadd.f32 %v1511, %v1544
        %v1561 = vadd.f32 %v1512, %v1545
        %v1562 = vadd.f32 %v1513, %v1546
        %v1563 = vadd.f32 %v1514, %v1547
        %v1564 = vmul.f32 %v1548, 2.0
        %v1565 = vmul.f32 %v1549, 2.0
        %v1566 = vmul.f32 %v1550, 2.0
        %v1567 = vmul.f32 %v1551, 2.0
        %v1568 = vmul.f32 %v1552, 2.0
        %v1569 = vmul.f32 %v1553, 2.0
        %v1570 = vmul.f32 %v1554, 2.0
        %v1571 = vmul.f32 %v1555, 2.0
        %v1572 = vmul.f32 %v1556, 2.0
        %v1573 = vmul.f32 %v1557, 2.0
        %v1574 = vmul.f32 %v1558, 2.0
        %v1575 = vmul.f32 %v1559, 2.0
        %v1576 = vmul.f32 %v1560, 2.0
        %v1577 = vmul.f32 %v1561, 2.0
        %v1578 = vmul.f32 %v1562, 2.0
        %v1579 = vmul.f32 %v1563, 2.0
        %v1580 = vmul.f32 %v1564, 1.442695
        %v1581 = vpow.pop %v1580
        %v1582 = vmul.f32 %v1565, 1.442695
        %v1583 = vpow.pop %v1582
        %v1584 = vmul.f32 %v1566, 1.442695
        %v1585 = vpow.pop %v1584
        %v1586 = vmul.f32 %v1567, 1.442695
        %v1587 = vpow.pop %v1586
        %v1588 = vmul.f32 %v1568, 1.442695
        %v1589 = vpow.pop %v1588
        %v1590 = vmul.f32 %v1569, 1.442695
        %v1591 = vpow.pop %v1590
        %v1592 = vmul.f32 %v1570, 1.442695
        %v1593 = vpow.pop %v1592
        %v1594 = vmul.f32 %v1571, 1.442695
        %v1595 = vpow.pop %v1594
        %v1596 = vmul.f32 %v1572, 1.442695
        %v1597 = vpow.pop %v1596
        %v1598 = vmul.f32 %v1573, 1.442695
        %v1599 = vpow.pop %v1598
        %v1600 = vmul.f32 %v1574, 1.442695
        %v1601 = vpow.pop %v1600
        %v1602 = vmul.f32 %v1575, 1.442695
        %v1603 = vpow.pop %v1602
        %v1604 = vmul.f32 %v1576, 1.442695
        %v1605 = vpow.pop %v1604
        %v1606 = vmul.f32 %v1577, 1.442695
        %v1607 = vpow.pop %v1606
        %v1608 = vmul.f32 %v1578, 1.442695
        %v1609 = vpow.pop %v1608
        %v1610 = vmul.f32 %v1579, 1.442695
        %v1611 = vpow.pop %v1610
        %1612 = vadd.xlane.f32.xlu0 %v1581
        %v1613 = vpop.xlane.xlu0 %1612
        %1614 = vadd.xlane.f32.xlu0 %v1583
        %v1615 = vpop.xlane.xlu0 %1614
        %1616 = vadd.xlane.f32.xlu0 %v1585
        %v1617 = vpop.xlane.xlu0 %1616
        %1618 = vadd.xlane.f32.xlu0 %v1587
        %v1619 = vpop.xlane.xlu0 %1618
        %1620 = vadd.xlane.f32.xlu0 %v1589
        %v1621 = vpop.xlane.xlu0 %1620
        %1622 = vadd.xlane.f32.xlu0 %v1591
        %v1623 = vpop.xlane.xlu0 %1622
        %1624 = vadd.xlane.f32.xlu0 %v1593
        %v1625 = vpop.xlane.xlu0 %1624
        %1626 = vadd.xlane.f32.xlu0 %v1595
        %v1627 = vpop.xlane.xlu0 %1626
        %1628 = vadd.xlane.f32.xlu0 %v1597
        %v1629 = vpop.xlane.xlu0 %1628
        %1630 = vadd.xlane.f32.xlu0 %v1599
        %v1631 = vpop.xlane.xlu0 %1630
        %1632 = vadd.xlane.f32.xlu0 %v1601
        %v1633 = vpop.xlane.xlu0 %1632
        %1634 = vadd.xlane.f32.xlu0 %v1603
        %v1635 = vpop.xlane.xlu0 %1634
        %1636 = vadd.xlane.f32.xlu0 %v1605
        %v1637 = vpop.xlane.xlu0 %1636
        %1638 = vadd.xlane.f32.xlu0 %v1607
        %v1639 = vpop.xlane.xlu0 %1638
        %1640 = vadd.xlane.f32.xlu0 %v1609
        %v1641 = vpop.xlane.xlu0 %1640
        %1642 = vadd.xlane.f32.xlu0 %v1611
        %v1643 = vpop.xlane.xlu0 %1642
        %v1644 = vrcp.pop %v1613
        %v1645 = vrcp.pop %v1615
        %v1646 = vrcp.pop %v1617
        %v1647 = vrcp.pop %v1619
        %v1648 = vrcp.pop %v1621
        %v1649 = vrcp.pop %v1623
        %v1650 = vrcp.pop %v1625
        %v1651 = vrcp.pop %v1627
        %v1652 = vrcp.pop %v1629
        %v1653 = vrcp.pop %v1631
        %v1654 = vrcp.pop %v1633
        %v1655 = vrcp.pop %v1635
        %v1656 = vrcp.pop %v1637
        %v1657 = vrcp.pop %v1639
        %v1658 = vrcp.pop %v1641
        %v1659 = vrcp.pop %v1643
        %v1660 = vmul.f32 %v1581, %v1644
        %v1661 = vmul.f32 %v1583, %v1645
        %v1662 = vmul.f32 %v1585, %v1646
        %v1663 = vmul.f32 %v1587, %v1647
        %v1664 = vmul.f32 %v1589, %v1648
        %v1665 = vmul.f32 %v1591, %v1649
        %v1666 = vmul.f32 %v1593, %v1650
        %v1667 = vmul.f32 %v1595, %v1651
        %v1668 = vmul.f32 %v1597, %v1652
        %v1669 = vmul.f32 %v1599, %v1653
        %v1670 = vmul.f32 %v1601, %v1654
        %v1671 = vmul.f32 %v1603, %v1655
        %v1672 = vmul.f32 %v1605, %v1656
        %v1673 = vmul.f32 %v1607, %v1657
        %v1674 = vmul.f32 %v1609, %v1658
        %v1675 = vmul.f32 %v1611, %v1659
        %v1676 = vmax.f32 %v1660, %v1515
        %v1677 = vmax.f32 %v1661, %v1516
        %v1678 = vmax.f32 %v1662, %v1517
        %v1679 = vmax.f32 %v1663, %v1518
        %v1680 = vmax.f32 %v1664, %v1519
        %v1681 = vmax.f32 %v1665, %v1520
        %v1682 = vmax.f32 %v1666, %v1521
        %v1683 = vmax.f32 %v1667, %v1522
        %v1684 = vmax.f32 %v1668, %v1523
        %v1685 = vmax.f32 %v1669, %v1524
        %v1686 = vmax.f32 %v1670, %v1525
        %v1687 = vmax.f32 %v1671, %v1526
        %v1688 = vmax.f32 %v1672, %v1527
        %v1689 = vmax.f32 %v1673, %v1528
        %v1690 = vmax.f32 %v1674, %v1529
        %v1691 = vmax.f32 %v1675, %v1530
        %s1692 = scalar_lea.vmem %s542, 256 [#allocation19]
        %v1693 = vld [vmem:[%s1692] sm:$0xff]
        %v1694 = vld [vmem:[%s1692 + $0x8] sm:$0xff]
        %v1695 = vld [vmem:[%s1692 + $0x10] sm:$0xff]
        %v1696 = vld [vmem:[%s1692 + $0x18] sm:$0xff]
        %v1697 = vld [vmem:[%s1692 + $0x20] sm:$0xff]
        %v1698 = vld [vmem:[%s1692 + $0x28] sm:$0xff]
        %v1699 = vld [vmem:[%s1692 + $0x30] sm:$0xff]
        %v1700 = vld [vmem:[%s1692 + $0x38] sm:$0xff]
        %v1701 = vld [vmem:[%s1692 + $0x40] sm:$0xff]
        %v1702 = vld [vmem:[%s1692 + $0x48] sm:$0xff]
        %v1703 = vld [vmem:[%s1692 + $0x50] sm:$0xff]
        %v1704 = vld [vmem:[%s1692 + $0x58] sm:$0xff]
        %v1705 = vld [vmem:[%s1692 + $0x60] sm:$0xff]
        %v1706 = vld [vmem:[%s1692 + $0x68] sm:$0xff]
        %v1707 = vld [vmem:[%s1692 + $0x70] sm:$0xff]
        %v1708 = vld [vmem:[%s1692 + $0x78] sm:$0xff]
        %v1709 = vadd.f32 %v1660, %v1693
        %v1710 = vadd.f32 %v1661, %v1694
        %v1711 = vadd.f32 %v1662, %v1695
        %v1712 = vadd.f32 %v1663, %v1696
        %v1713 = vadd.f32 %v1664, %v1697
        %v1714 = vadd.f32 %v1665, %v1698
        %v1715 = vadd.f32 %v1666, %v1699
        %v1716 = vadd.f32 %v1667, %v1700
        %v1717 = vadd.f32 %v1668, %v1701
        %v1718 = vadd.f32 %v1669, %v1702
        %v1719 = vadd.f32 %v1670, %v1703
        %v1720 = vadd.f32 %v1671, %v1704
        %v1721 = vadd.f32 %v1672, %v1705
        %v1722 = vadd.f32 %v1673, %v1706
        %v1723 = vadd.f32 %v1674, %v1707
        %v1724 = vadd.f32 %v1675, %v1708
        %v1725 = vmul.f32 %v1709, 2.0
        %v1726 = vmul.f32 %v1710, 2.0
        %v1727 = vmul.f32 %v1711, 2.0
        %v1728 = vmul.f32 %v1712, 2.0
        %v1729 = vmul.f32 %v1713, 2.0
        %v1730 = vmul.f32 %v1714, 2.0
        %v1731 = vmul.f32 %v1715, 2.0
        %v1732 = vmul.f32 %v1716, 2.0
        %v1733 = vmul.f32 %v1717, 2.0
        %v1734 = vmul.f32 %v1718, 2.0
        %v1735 = vmul.f32 %v1719, 2.0
        %v1736 = vmul.f32 %v1720, 2.0
        %v1737 = vmul.f32 %v1721, 2.0
        %v1738 = vmul.f32 %v1722, 2.0
        %v1739 = vmul.f32 %v1723, 2.0
        %v1740 = vmul.f32 %v1724, 2.0
        %v1741 = vmul.f32 %v1725, 1.442695
        %v1742 = vpow.pop %v1741
        %v1743 = vmul.f32 %v1726, 1.442695
        %v1744 = vpow.pop %v1743
        %v1745 = vmul.f32 %v1727, 1.442695
        %v1746 = vpow.pop %v1745
        %v1747 = vmul.f32 %v1728, 1.442695
        %v1748 = vpow.pop %v1747
        %v1749 = vmul.f32 %v1729, 1.442695
        %v1750 = vpow.pop %v1749
        %v1751 = vmul.f32 %v1730, 1.442695
        %v1752 = vpow.pop %v1751
        %v1753 = vmul.f32 %v1731, 1.442695
        %v1754 = vpow.pop %v1753
        %v1755 = vmul.f32 %v1732, 1.442695
        %v1756 = vpow.pop %v1755
        %v1757 = vmul.f32 %v1733, 1.442695
        %v1758 = vpow.pop %v1757
        %v1759 = vmul.f32 %v1734, 1.442695
        %v1760 = vpow.pop %v1759
        %v1761 = vmul.f32 %v1735, 1.442695
        %v1762 = vpow.pop %v1761
        %v1763 = vmul.f32 %v1736, 1.442695
        %v1764 = vpow.pop %v1763
        %v1765 = vmul.f32 %v1737, 1.442695
        %v1766 = vpow.pop %v1765
        %v1767 = vmul.f32 %v1738, 1.442695
        %v1768 = vpow.pop %v1767
        %v1769 = vmul.f32 %v1739, 1.442695
        %v1770 = vpow.pop %v1769
        %v1771 = vmul.f32 %v1740, 1.442695
        %v1772 = vpow.pop %v1771
        %1773 = vadd.xlane.f32.xlu0 %v1742
        %v1774 = vpop.xlane.xlu0 %1773
        %1775 = vadd.xlane.f32.xlu0 %v1744
        %v1776 = vpop.xlane.xlu0 %1775
        %1777 = vadd.xlane.f32.xlu0 %v1746
        %v1778 = vpop.xlane.xlu0 %1777
        %1779 = vadd.xlane.f32.xlu0 %v1748
        %v1780 = vpop.xlane.xlu0 %1779
        %1781 = vadd.xlane.f32.xlu0 %v1750
        %v1782 = vpop.xlane.xlu0 %1781
        %1783 = vadd.xlane.f32.xlu0 %v1752
        %v1784 = vpop.xlane.xlu0 %1783
        %1785 = vadd.xlane.f32.xlu0 %v1754
        %v1786 = vpop.xlane.xlu0 %1785
        %1787 = vadd.xlane.f32.xlu0 %v1756
        %v1788 = vpop.xlane.xlu0 %1787
        %1789 = vadd.xlane.f32.xlu0 %v1758
        %v1790 = vpop.xlane.xlu0 %1789
        %1791 = vadd.xlane.f32.xlu0 %v1760
        %v1792 = vpop.xlane.xlu0 %1791
        %1793 = vadd.xlane.f32.xlu0 %v1762
        %v1794 = vpop.xlane.xlu0 %1793
        %1795 = vadd.xlane.f32.xlu0 %v1764
        %v1796 = vpop.xlane.xlu0 %1795
        %1797 = vadd.xlane.f32.xlu0 %v1766
        %v1798 = vpop.xlane.xlu0 %1797
        %1799 = vadd.xlane.f32.xlu0 %v1768
        %v1800 = vpop.xlane.xlu0 %1799
        %1801 = vadd.xlane.f32.xlu0 %v1770
        %v1802 = vpop.xlane.xlu0 %1801
        %1803 = vadd.xlane.f32.xlu0 %v1772
        %v1804 = vpop.xlane.xlu0 %1803
        %v1805 = vrcp.pop %v1774
        %v1806 = vrcp.pop %v1776
        %v1807 = vrcp.pop %v1778
        %v1808 = vrcp.pop %v1780
        %v1809 = vrcp.pop %v1782
        %v1810 = vrcp.pop %v1784
        %v1811 = vrcp.pop %v1786
        %v1812 = vrcp.pop %v1788
        %v1813 = vrcp.pop %v1790
        %v1814 = vrcp.pop %v1792
        %v1815 = vrcp.pop %v1794
        %v1816 = vrcp.pop %v1796
        %v1817 = vrcp.pop %v1798
        %v1818 = vrcp.pop %v1800
        %v1819 = vrcp.pop %v1802
        %v1820 = vrcp.pop %v1804
        %v1821 = vmul.f32 %v1742, %v1805
        %v1822 = vmul.f32 %v1744, %v1806
        %v1823 = vmul.f32 %v1746, %v1807
        %v1824 = vmul.f32 %v1748, %v1808
        %v1825 = vmul.f32 %v1750, %v1809
        %v1826 = vmul.f32 %v1752, %v1810
        %v1827 = vmul.f32 %v1754, %v1811
        %v1828 = vmul.f32 %v1756, %v1812
        %v1829 = vmul.f32 %v1758, %v1813
        %v1830 = vmul.f32 %v1760, %v1814
        %v1831 = vmul.f32 %v1762, %v1815
        %v1832 = vmul.f32 %v1764, %v1816
        %v1833 = vmul.f32 %v1766, %v1817
        %v1834 = vmul.f32 %v1768, %v1818
        %v1835 = vmul.f32 %v1770, %v1819
        %v1836 = vmul.f32 %v1772, %v1820
        %v1837 = vmax.f32 %v1821, %v1676
        %v1838 = vmax.f32 %v1822, %v1677
        %v1839 = vmax.f32 %v1823, %v1678
        %v1840 = vmax.f32 %v1824, %v1679
        %v1841 = vmax.f32 %v1825, %v1680
        %v1842 = vmax.f32 %v1826, %v1681
        %v1843 = vmax.f32 %v1827, %v1682
        %v1844 = vmax.f32 %v1828, %v1683
        %v1845 = vmax.f32 %v1829, %v1684
        %v1846 = vmax.f32 %v1830, %v1685
        %v1847 = vmax.f32 %v1831, %v1686
        %v1848 = vmax.f32 %v1832, %v1687
        %v1849 = vmax.f32 %v1833, %v1688
        %v1850 = vmax.f32 %v1834, %v1689
        %v1851 = vmax.f32 %v1835, %v1690
        %v1852 = vmax.f32 %v1836, %v1691
        %s1853 = scalar_lea.vmem %s542, 384 [#allocation19]
        %v1854 = vld [vmem:[%s1853] sm:$0xff]
        %v1855 = vld [vmem:[%s1853 + $0x8] sm:$0xff]
        %v1856 = vld [vmem:[%s1853 + $0x10] sm:$0xff]
        %v1857 = vld [vmem:[%s1853 + $0x18] sm:$0xff]
        %v1858 = vld [vmem:[%s1853 + $0x20] sm:$0xff]
        %v1859 = vld [vmem:[%s1853 + $0x28] sm:$0xff]
        %v1860 = vld [vmem:[%s1853 + $0x30] sm:$0xff]
        %v1861 = vld [vmem:[%s1853 + $0x38] sm:$0xff]
        %v1862 = vld [vmem:[%s1853 + $0x40] sm:$0xff]
        %v1863 = vld [vmem:[%s1853 + $0x48] sm:$0xff]
        %v1864 = vld [vmem:[%s1853 + $0x50] sm:$0xff]
        %v1865 = vld [vmem:[%s1853 + $0x58] sm:$0xff]
        %v1866 = vld [vmem:[%s1853 + $0x60] sm:$0xff]
        %v1867 = vld [vmem:[%s1853 + $0x68] sm:$0xff]
        %v1868 = vld [vmem:[%s1853 + $0x70] sm:$0xff]
        %v1869 = vld [vmem:[%s1853 + $0x78] sm:$0xff]
        %v1870 = vadd.f32 %v1821, %v1854
        %v1871 = vadd.f32 %v1822, %v1855
        %v1872 = vadd.f32 %v1823, %v1856
        %v1873 = vadd.f32 %v1824, %v1857
        %v1874 = vadd.f32 %v1825, %v1858
        %v1875 = vadd.f32 %v1826, %v1859
        %v1876 = vadd.f32 %v1827, %v1860
        %v1877 = vadd.f32 %v1828, %v1861
        %v1878 = vadd.f32 %v1829, %v1862
        %v1879 = vadd.f32 %v1830, %v1863
        %v1880 = vadd.f32 %v1831, %v1864
        %v1881 = vadd.f32 %v1832, %v1865
        %v1882 = vadd.f32 %v1833, %v1866
        %v1883 = vadd.f32 %v1834, %v1867
        %v1884 = vadd.f32 %v1835, %v1868
        %v1885 = vadd.f32 %v1836, %v1869
        %v1886 = vmul.f32 %v1870, 2.0
        %v1887 = vmul.f32 %v1871, 2.0
        %v1888 = vmul.f32 %v1872, 2.0
        %v1889 = vmul.f32 %v1873, 2.0
        %v1890 = vmul.f32 %v1874, 2.0
        %v1891 = vmul.f32 %v1875, 2.0
        %v1892 = vmul.f32 %v1876, 2.0
        %v1893 = vmul.f32 %v1877, 2.0
        %v1894 = vmul.f32 %v1878, 2.0
        %v1895 = vmul.f32 %v1879, 2.0
        %v1896 = vmul.f32 %v1880, 2.0
        %v1897 = vmul.f32 %v1881, 2.0
        %v1898 = vmul.f32 %v1882, 2.0
        %v1899 = vmul.f32 %v1883, 2.0
        %v1900 = vmul.f32 %v1884, 2.0
        %v1901 = vmul.f32 %v1885, 2.0
        %v1902 = vmul.f32 %v1886, 1.442695
        %v1903 = vpow.pop %v1902
        %v1904 = vmul.f32 %v1887, 1.442695
        %v1905 = vpow.pop %v1904
        %v1906 = vmul.f32 %v1888, 1.442695
        %v1907 = vpow.pop %v1906
        %v1908 = vmul.f32 %v1889, 1.442695
        %v1909 = vpow.pop %v1908
        %v1910 = vmul.f32 %v1890, 1.442695
        %v1911 = vpow.pop %v1910
        %v1912 = vmul.f32 %v1891, 1.442695
        %v1913 = vpow.pop %v1912
        %v1914 = vmul.f32 %v1892, 1.442695
        %v1915 = vpow.pop %v1914
        %v1916 = vmul.f32 %v1893, 1.442695
        %v1917 = vpow.pop %v1916
        %v1918 = vmul.f32 %v1894, 1.442695
        %v1919 = vpow.pop %v1918
        %v1920 = vmul.f32 %v1895, 1.442695
        %v1921 = vpow.pop %v1920
        %v1922 = vmul.f32 %v1896, 1.442695
        %v1923 = vpow.pop %v1922
        %v1924 = vmul.f32 %v1897, 1.442695
        %v1925 = vpow.pop %v1924
        %v1926 = vmul.f32 %v1898, 1.442695
        %v1927 = vpow.pop %v1926
        %v1928 = vmul.f32 %v1899, 1.442695
        %v1929 = vpow.pop %v1928
        %v1930 = vmul.f32 %v1900, 1.442695
        %v1931 = vpow.pop %v1930
        %v1932 = vmul.f32 %v1901, 1.442695
        %v1933 = vpow.pop %v1932
        %1934 = vadd.xlane.f32.xlu0 %v1903
        %v1935 = vpop.xlane.xlu0 %1934
        %1936 = vadd.xlane.f32.xlu0 %v1905
        %v1937 = vpop.xlane.xlu0 %1936
        %1938 = vadd.xlane.f32.xlu0 %v1907
        %v1939 = vpop.xlane.xlu0 %1938
        %1940 = vadd.xlane.f32.xlu0 %v1909
        %v1941 = vpop.xlane.xlu0 %1940
        %1942 = vadd.xlane.f32.xlu0 %v1911
        %v1943 = vpop.xlane.xlu0 %1942
        %1944 = vadd.xlane.f32.xlu0 %v1913
        %v1945 = vpop.xlane.xlu0 %1944
        %1946 = vadd.xlane.f32.xlu0 %v1915
        %v1947 = vpop.xlane.xlu0 %1946
        %1948 = vadd.xlane.f32.xlu0 %v1917
        %v1949 = vpop.xlane.xlu0 %1948
        %1950 = vadd.xlane.f32.xlu0 %v1919
        %v1951 = vpop.xlane.xlu0 %1950
        %1952 = vadd.xlane.f32.xlu0 %v1921
        %v1953 = vpop.xlane.xlu0 %1952
        %1954 = vadd.xlane.f32.xlu0 %v1923
        %v1955 = vpop.xlane.xlu0 %1954
        %1956 = vadd.xlane.f32.xlu0 %v1925
        %v1957 = vpop.xlane.xlu0 %1956
        %1958 = vadd.xlane.f32.xlu0 %v1927
        %v1959 = vpop.xlane.xlu0 %1958
        %1960 = vadd.xlane.f32.xlu0 %v1929
        %v1961 = vpop.xlane.xlu0 %1960
        %1962 = vadd.xlane.f32.xlu0 %v1931
        %v1963 = vpop.xlane.xlu0 %1962
        %1964 = vadd.xlane.f32.xlu0 %v1933
        %v1965 = vpop.xlane.xlu0 %1964
        %v1966 = vrcp.pop %v1935
        %v1967 = vrcp.pop %v1937
        %v1968 = vrcp.pop %v1939
        %v1969 = vrcp.pop %v1941
        %v1970 = vrcp.pop %v1943
        %v1971 = vrcp.pop %v1945
        %v1972 = vrcp.pop %v1947
        %v1973 = vrcp.pop %v1949
        %v1974 = vrcp.pop %v1951
        %v1975 = vrcp.pop %v1953
        %v1976 = vrcp.pop %v1955
        %v1977 = vrcp.pop %v1957
        %v1978 = vrcp.pop %v1959
        %v1979 = vrcp.pop %v1961
        %v1980 = vrcp.pop %v1963
        %v1981 = vrcp.pop %v1965
        %v1982 = vmul.f32 %v1903, %v1966
        %v1983 = vmul.f32 %v1905, %v1967
        %v1984 = vmul.f32 %v1907, %v1968
        %v1985 = vmul.f32 %v1909, %v1969
        %v1986 = vmul.f32 %v1911, %v1970
        %v1987 = vmul.f32 %v1913, %v1971
        %v1988 = vmul.f32 %v1915, %v1972
        %v1989 = vmul.f32 %v1917, %v1973
        %v1990 = vmul.f32 %v1919, %v1974
        %v1991 = vmul.f32 %v1921, %v1975
        %v1992 = vmul.f32 %v1923, %v1976
        %v1993 = vmul.f32 %v1925, %v1977
        %v1994 = vmul.f32 %v1927, %v1978
        %v1995 = vmul.f32 %v1929, %v1979
        %v1996 = vmul.f32 %v1931, %v1980
        %v1997 = vmul.f32 %v1933, %v1981
        %v1998 = vmax.f32 %v1982, %v1837
        %v1999 = vmax.f32 %v1983, %v1838
        %v2000 = vmax.f32 %v1984, %v1839
        %v2001 = vmax.f32 %v1985, %v1840
        %v2002 = vmax.f32 %v1986, %v1841
        %v2003 = vmax.f32 %v1987, %v1842
        %v2004 = vmax.f32 %v1988, %v1843
        %v2005 = vmax.f32 %v1989, %v1844
        %v2006 = vmax.f32 %v1990, %v1845
        %v2007 = vmax.f32 %v1991, %v1846
        %v2008 = vmax.f32 %v1992, %v1847
        %v2009 = vmax.f32 %v1993, %v1848
        %v2010 = vmax.f32 %v1994, %v1849
        %v2011 = vmax.f32 %v1995, %v1850
        %v2012 = vmax.f32 %v1996, %v1851
        %v2013 = vmax.f32 %v1997, %v1852
        %s2014 = scalar_lea.vmem %s542, 512 [#allocation19]
        %v2015 = vld [vmem:[%s2014] sm:$0xff]
        %v2016 = vld [vmem:[%s2014 + $0x8] sm:$0xff]
        %v2017 = vld [vmem:[%s2014 + $0x10] sm:$0xff]
        %v2018 = vld [vmem:[%s2014 + $0x18] sm:$0xff]
        %v2019 = vld [vmem:[%s2014 + $0x20] sm:$0xff]
        %v2020 = vld [vmem:[%s2014 + $0x28] sm:$0xff]
        %v2021 = vld [vmem:[%s2014 + $0x30] sm:$0xff]
        %v2022 = vld [vmem:[%s2014 + $0x38] sm:$0xff]
        %v2023 = vld [vmem:[%s2014 + $0x40] sm:$0xff]
        %v2024 = vld [vmem:[%s2014 + $0x48] sm:$0xff]
        %v2025 = vld [vmem:[%s2014 + $0x50] sm:$0xff]
        %v2026 = vld [vmem:[%s2014 + $0x58] sm:$0xff]
        %v2027 = vld [vmem:[%s2014 + $0x60] sm:$0xff]
        %v2028 = vld [vmem:[%s2014 + $0x68] sm:$0xff]
        %v2029 = vld [vmem:[%s2014 + $0x70] sm:$0xff]
        %v2030 = vld [vmem:[%s2014 + $0x78] sm:$0xff]
        %v2031 = vadd.f32 %v1982, %v2015
        %v2032 = vadd.f32 %v1983, %v2016
        %v2033 = vadd.f32 %v1984, %v2017
        %v2034 = vadd.f32 %v1985, %v2018
        %v2035 = vadd.f32 %v1986, %v2019
        %v2036 = vadd.f32 %v1987, %v2020
        %v2037 = vadd.f32 %v1988, %v2021
        %v2038 = vadd.f32 %v1989, %v2022
        %v2039 = vadd.f32 %v1990, %v2023
        %v2040 = vadd.f32 %v1991, %v2024
        %v2041 = vadd.f32 %v1992, %v2025
        %v2042 = vadd.f32 %v1993, %v2026
        %v2043 = vadd.f32 %v1994, %v2027
        %v2044 = vadd.f32 %v1995, %v2028
        %v2045 = vadd.f32 %v1996, %v2029
        %v2046 = vadd.f32 %v1997, %v2030
        %v2047 = vmul.f32 %v2031, 2.0
        %v2048 = vmul.f32 %v2032, 2.0
        %v2049 = vmul.f32 %v2033, 2.0
        %v2050 = vmul.f32 %v2034, 2.0
        %v2051 = vmul.f32 %v2035, 2.0
        %v2052 = vmul.f32 %v2036, 2.0
        %v2053 = vmul.f32 %v2037, 2.0
        %v2054 = vmul.f32 %v2038, 2.0
        %v2055 = vmul.f32 %v2039, 2.0
        %v2056 = vmul.f32 %v2040, 2.0
        %v2057 = vmul.f32 %v2041, 2.0
        %v2058 = vmul.f32 %v2042, 2.0
        %v2059 = vmul.f32 %v2043, 2.0
        %v2060 = vmul.f32 %v2044, 2.0
        %v2061 = vmul.f32 %v2045, 2.0
        %v2062 = vmul.f32 %v2046, 2.0
        %v2063 = vmul.f32 %v2047, 1.442695
        %v2064 = vpow.pop %v2063
        %v2065 = vmul.f32 %v2048, 1.442695
        %v2066 = vpow.pop %v2065
        %v2067 = vmul.f32 %v2049, 1.442695
        %v2068 = vpow.pop %v2067
        %v2069 = vmul.f32 %v2050, 1.442695
        %v2070 = vpow.pop %v2069
        %v2071 = vmul.f32 %v2051, 1.442695
        %v2072 = vpow.pop %v2071
        %v2073 = vmul.f32 %v2052, 1.442695
        %v2074 = vpow.pop %v2073
        %v2075 = vmul.f32 %v2053, 1.442695
        %v2076 = vpow.pop %v2075
        %v2077 = vmul.f32 %v2054, 1.442695
        %v2078 = vpow.pop %v2077
        %v2079 = vmul.f32 %v2055, 1.442695
        %v2080 = vpow.pop %v2079
        %v2081 = vmul.f32 %v2056, 1.442695
        %v2082 = vpow.pop %v2081
        %v2083 = vmul.f32 %v2057, 1.442695
        %v2084 = vpow.pop %v2083
        %v2085 = vmul.f32 %v2058, 1.442695
        %v2086 = vpow.pop %v2085
        %v2087 = vmul.f32 %v2059, 1.442695
        %v2088 = vpow.pop %v2087
        %v2089 = vmul.f32 %v2060, 1.442695
        %v2090 = vpow.pop %v2089
        %v2091 = vmul.f32 %v2061, 1.442695
        %v2092 = vpow.pop %v2091
        %v2093 = vmul.f32 %v2062, 1.442695
        %v2094 = vpow.pop %v2093
        %2095 = vadd.xlane.f32.xlu0 %v2064
        %v2096 = vpop.xlane.xlu0 %2095
        %2097 = vadd.xlane.f32.xlu0 %v2066
        %v2098 = vpop.xlane.xlu0 %2097
        %2099 = vadd.xlane.f32.xlu0 %v2068
        %v2100 = vpop.xlane.xlu0 %2099
        %2101 = vadd.xlane.f32.xlu0 %v2070
        %v2102 = vpop.xlane.xlu0 %2101
        %2103 = vadd.xlane.f32.xlu0 %v2072
        %v2104 = vpop.xlane.xlu0 %2103
        %2105 = vadd.xlane.f32.xlu0 %v2074
        %v2106 = vpop.xlane.xlu0 %2105
        %2107 = vadd.xlane.f32.xlu0 %v2076
        %v2108 = vpop.xlane.xlu0 %2107
        %2109 = vadd.xlane.f32.xlu0 %v2078
        %v2110 = vpop.xlane.xlu0 %2109
        %2111 = vadd.xlane.f32.xlu0 %v2080
        %v2112 = vpop.xlane.xlu0 %2111
        %2113 = vadd.xlane.f32.xlu0 %v2082
        %v2114 = vpop.xlane.xlu0 %2113
        %2115 = vadd.xlane.f32.xlu0 %v2084
        %v2116 = vpop.xlane.xlu0 %2115
        %2117 = vadd.xlane.f32.xlu0 %v2086
        %v2118 = vpop.xlane.xlu0 %2117
        %2119 = vadd.xlane.f32.xlu0 %v2088
        %v2120 = vpop.xlane.xlu0 %2119
        %2121 = vadd.xlane.f32.xlu0 %v2090
        %v2122 = vpop.xlane.xlu0 %2121
        %2123 = vadd.xlane.f32.xlu0 %v2092
        %v2124 = vpop.xlane.xlu0 %2123
        %2125 = vadd.xlane.f32.xlu0 %v2094
        %v2126 = vpop.xlane.xlu0 %2125
        %v2127 = vrcp.pop %v2096
        %v2128 = vrcp.pop %v2098
        %v2129 = vrcp.pop %v2100
        %v2130 = vrcp.pop %v2102
        %v2131 = vrcp.pop %v2104
        %v2132 = vrcp.pop %v2106
        %v2133 = vrcp.pop %v2108
        %v2134 = vrcp.pop %v2110
        %v2135 = vrcp.pop %v2112
        %v2136 = vrcp.pop %v2114
        %v2137 = vrcp.pop %v2116
        %v2138 = vrcp.pop %v2118
        %v2139 = vrcp.pop %v2120
        %v2140 = vrcp.pop %v2122
        %v2141 = vrcp.pop %v2124
        %v2142 = vrcp.pop %v2126
        %v2143 = vmul.f32 %v2064, %v2127
        %v2144 = vmul.f32 %v2066, %v2128
        %v2145 = vmul.f32 %v2068, %v2129
        %v2146 = vmul.f32 %v2070, %v2130
        %v2147 = vmul.f32 %v2072, %v2131
        %v2148 = vmul.f32 %v2074, %v2132
        %v2149 = vmul.f32 %v2076, %v2133
        %v2150 = vmul.f32 %v2078, %v2134
        %v2151 = vmul.f32 %v2080, %v2135
        %v2152 = vmul.f32 %v2082, %v2136
        %v2153 = vmul.f32 %v2084, %v2137
        %v2154 = vmul.f32 %v2086, %v2138
        %v2155 = vmul.f32 %v2088, %v2139
        %v2156 = vmul.f32 %v2090, %v2140
        %v2157 = vmul.f32 %v2092, %v2141
        %v2158 = vmul.f32 %v2094, %v2142
        %v2159 = vmax.f32 %v2143, %v1998
        %v2160 = vmax.f32 %v2144, %v1999
        %v2161 = vmax.f32 %v2145, %v2000
        %v2162 = vmax.f32 %v2146, %v2001
        %v2163 = vmax.f32 %v2147, %v2002
        %v2164 = vmax.f32 %v2148, %v2003
        %v2165 = vmax.f32 %v2149, %v2004
        %v2166 = vmax.f32 %v2150, %v2005
        %v2167 = vmax.f32 %v2151, %v2006
        %v2168 = vmax.f32 %v2152, %v2007
        %v2169 = vmax.f32 %v2153, %v2008
        %v2170 = vmax.f32 %v2154, %v2009
        %v2171 = vmax.f32 %v2155, %v2010
        %v2172 = vmax.f32 %v2156, %v2011
        %v2173 = vmax.f32 %v2157, %v2012
        %v2174 = vmax.f32 %v2158, %v2013
        %s2175 = scalar_lea.vmem %s542, 640 [#allocation19]
        %v2176 = vld [vmem:[%s2175] sm:$0xff]
        %v2177 = vld [vmem:[%s2175 + $0x8] sm:$0xff]
        %v2178 = vld [vmem:[%s2175 + $0x10] sm:$0xff]
        %v2179 = vld [vmem:[%s2175 + $0x18] sm:$0xff]
        %v2180 = vld [vmem:[%s2175 + $0x20] sm:$0xff]
        %v2181 = vld [vmem:[%s2175 + $0x28] sm:$0xff]
        %v2182 = vld [vmem:[%s2175 + $0x30] sm:$0xff]
        %v2183 = vld [vmem:[%s2175 + $0x38] sm:$0xff]
        %v2184 = vld [vmem:[%s2175 + $0x40] sm:$0xff]
        %v2185 = vld [vmem:[%s2175 + $0x48] sm:$0xff]
        %v2186 = vld [vmem:[%s2175 + $0x50] sm:$0xff]
        %v2187 = vld [vmem:[%s2175 + $0x58] sm:$0xff]
        %v2188 = vld [vmem:[%s2175 + $0x60] sm:$0xff]
        %v2189 = vld [vmem:[%s2175 + $0x68] sm:$0xff]
        %v2190 = vld [vmem:[%s2175 + $0x70] sm:$0xff]
        %v2191 = vld [vmem:[%s2175 + $0x78] sm:$0xff]
        %v2192 = vadd.f32 %v2143, %v2176
        %v2193 = vadd.f32 %v2144, %v2177
        %v2194 = vadd.f32 %v2145, %v2178
        %v2195 = vadd.f32 %v2146, %v2179
        %v2196 = vadd.f32 %v2147, %v2180
        %v2197 = vadd.f32 %v2148, %v2181
        %v2198 = vadd.f32 %v2149, %v2182
        %v2199 = vadd.f32 %v2150, %v2183
        %v2200 = vadd.f32 %v2151, %v2184
        %v2201 = vadd.f32 %v2152, %v2185
        %v2202 = vadd.f32 %v2153, %v2186
        %v2203 = vadd.f32 %v2154, %v2187
        %v2204 = vadd.f32 %v2155, %v2188
        %v2205 = vadd.f32 %v2156, %v2189
        %v2206 = vadd.f32 %v2157, %v2190
        %v2207 = vadd.f32 %v2158, %v2191
        %v2208 = vmul.f32 %v2192, 2.0
        %v2209 = vmul.f32 %v2193, 2.0
        %v2210 = vmul.f32 %v2194, 2.0
        %v2211 = vmul.f32 %v2195, 2.0
        %v2212 = vmul.f32 %v2196, 2.0
        %v2213 = vmul.f32 %v2197, 2.0
        %v2214 = vmul.f32 %v2198, 2.0
        %v2215 = vmul.f32 %v2199, 2.0
        %v2216 = vmul.f32 %v2200, 2.0
        %v2217 = vmul.f32 %v2201, 2.0
        %v2218 = vmul.f32 %v2202, 2.0
        %v2219 = vmul.f32 %v2203, 2.0
        %v2220 = vmul.f32 %v2204, 2.0
        %v2221 = vmul.f32 %v2205, 2.0
        %v2222 = vmul.f32 %v2206, 2.0
        %v2223 = vmul.f32 %v2207, 2.0
        %v2224 = vmul.f32 %v2208, 1.442695
        %v2225 = vpow.pop %v2224
        %v2226 = vmul.f32 %v2209, 1.442695
        %v2227 = vpow.pop %v2226
        %v2228 = vmul.f32 %v2210, 1.442695
        %v2229 = vpow.pop %v2228
        %v2230 = vmul.f32 %v2211, 1.442695
        %v2231 = vpow.pop %v2230
        %v2232 = vmul.f32 %v2212, 1.442695
        %v2233 = vpow.pop %v2232
        %v2234 = vmul.f32 %v2213, 1.442695
        %v2235 = vpow.pop %v2234
        %v2236 = vmul.f32 %v2214, 1.442695
        %v2237 = vpow.pop %v2236
        %v2238 = vmul.f32 %v2215, 1.442695
        %v2239 = vpow.pop %v2238
        %v2240 = vmul.f32 %v2216, 1.442695
        %v2241 = vpow.pop %v2240
        %v2242 = vmul.f32 %v2217, 1.442695
        %v2243 = vpow.pop %v2242
        %v2244 = vmul.f32 %v2218, 1.442695
        %v2245 = vpow.pop %v2244
        %v2246 = vmul.f32 %v2219, 1.442695
        %v2247 = vpow.pop %v2246
        %v2248 = vmul.f32 %v2220, 1.442695
        %v2249 = vpow.pop %v2248
        %v2250 = vmul.f32 %v2221, 1.442695
        %v2251 = vpow.pop %v2250
        %v2252 = vmul.f32 %v2222, 1.442695
        %v2253 = vpow.pop %v2252
        %v2254 = vmul.f32 %v2223, 1.442695
        %v2255 = vpow.pop %v2254
        %2256 = vadd.xlane.f32.xlu0 %v2225
        %v2257 = vpop.xlane.xlu0 %2256
        %2258 = vadd.xlane.f32.xlu0 %v2227
        %v2259 = vpop.xlane.xlu0 %2258
        %2260 = vadd.xlane.f32.xlu0 %v2229
        %v2261 = vpop.xlane.xlu0 %2260
        %2262 = vadd.xlane.f32.xlu0 %v2231
        %v2263 = vpop.xlane.xlu0 %2262
        %2264 = vadd.xlane.f32.xlu0 %v2233
        %v2265 = vpop.xlane.xlu0 %2264
        %2266 = vadd.xlane.f32.xlu0 %v2235
        %v2267 = vpop.xlane.xlu0 %2266
        %2268 = vadd.xlane.f32.xlu0 %v2237
        %v2269 = vpop.xlane.xlu0 %2268
        %2270 = vadd.xlane.f32.xlu0 %v2239
        %v2271 = vpop.xlane.xlu0 %2270
        %2272 = vadd.xlane.f32.xlu0 %v2241
        %v2273 = vpop.xlane.xlu0 %2272
        %2274 = vadd.xlane.f32.xlu0 %v2243
        %v2275 = vpop.xlane.xlu0 %2274
        %2276 = vadd.xlane.f32.xlu0 %v2245
        %v2277 = vpop.xlane.xlu0 %2276
        %2278 = vadd.xlane.f32.xlu0 %v2247
        %v2279 = vpop.xlane.xlu0 %2278
        %2280 = vadd.xlane.f32.xlu0 %v2249
        %v2281 = vpop.xlane.xlu0 %2280
        %2282 = vadd.xlane.f32.xlu0 %v2251
        %v2283 = vpop.xlane.xlu0 %2282
        %2284 = vadd.xlane.f32.xlu0 %v2253
        %v2285 = vpop.xlane.xlu0 %2284
        %2286 = vadd.xlane.f32.xlu0 %v2255
        %v2287 = vpop.xlane.xlu0 %2286
        %v2288 = vrcp.pop %v2257
        %v2289 = vrcp.pop %v2259
        %v2290 = vrcp.pop %v2261
        %v2291 = vrcp.pop %v2263
        %v2292 = vrcp.pop %v2265
        %v2293 = vrcp.pop %v2267
        %v2294 = vrcp.pop %v2269
        %v2295 = vrcp.pop %v2271
        %v2296 = vrcp.pop %v2273
        %v2297 = vrcp.pop %v2275
        %v2298 = vrcp.pop %v2277
        %v2299 = vrcp.pop %v2279
        %v2300 = vrcp.pop %v2281
        %v2301 = vrcp.pop %v2283
        %v2302 = vrcp.pop %v2285
        %v2303 = vrcp.pop %v2287
        %v2304 = vmul.f32 %v2225, %v2288
        %v2305 = vmul.f32 %v2227, %v2289
        %v2306 = vmul.f32 %v2229, %v2290
        %v2307 = vmul.f32 %v2231, %v2291
        %v2308 = vmul.f32 %v2233, %v2292
        %v2309 = vmul.f32 %v2235, %v2293
        %v2310 = vmul.f32 %v2237, %v2294
        %v2311 = vmul.f32 %v2239, %v2295
        %v2312 = vmul.f32 %v2241, %v2296
        %v2313 = vmul.f32 %v2243, %v2297
        %v2314 = vmul.f32 %v2245, %v2298
        %v2315 = vmul.f32 %v2247, %v2299
        %v2316 = vmul.f32 %v2249, %v2300
        %v2317 = vmul.f32 %v2251, %v2301
        %v2318 = vmul.f32 %v2253, %v2302
        %v2319 = vmul.f32 %v2255, %v2303
        %v2320 = vmax.f32 %v2304, %v2159
        %v2321 = vmax.f32 %v2305, %v2160
        %v2322 = vmax.f32 %v2306, %v2161
        %v2323 = vmax.f32 %v2307, %v2162
        %v2324 = vmax.f32 %v2308, %v2163
        %v2325 = vmax.f32 %v2309, %v2164
        %v2326 = vmax.f32 %v2310, %v2165
        %v2327 = vmax.f32 %v2311, %v2166
        %v2328 = vmax.f32 %v2312, %v2167
        %v2329 = vmax.f32 %v2313, %v2168
        %v2330 = vmax.f32 %v2314, %v2169
        %v2331 = vmax.f32 %v2315, %v2170
        %v2332 = vmax.f32 %v2316, %v2171
        %v2333 = vmax.f32 %v2317, %v2172
        %v2334 = vmax.f32 %v2318, %v2173
        %v2335 = vmax.f32 %v2319, %v2174
        %s2336 = scalar_lea.vmem %s542, 768 [#allocation19]
        %v2337 = vld [vmem:[%s2336] sm:$0xff]
        %v2338 = vld [vmem:[%s2336 + $0x8] sm:$0xff]
        %v2339 = vld [vmem:[%s2336 + $0x10] sm:$0xff]
        %v2340 = vld [vmem:[%s2336 + $0x18] sm:$0xff]
        %v2341 = vld [vmem:[%s2336 + $0x20] sm:$0xff]
        %v2342 = vld [vmem:[%s2336 + $0x28] sm:$0xff]
        %v2343 = vld [vmem:[%s2336 + $0x30] sm:$0xff]
        %v2344 = vld [vmem:[%s2336 + $0x38] sm:$0xff]
        %v2345 = vld [vmem:[%s2336 + $0x40] sm:$0xff]
        %v2346 = vld [vmem:[%s2336 + $0x48] sm:$0xff]
        %v2347 = vld [vmem:[%s2336 + $0x50] sm:$0xff]
        %v2348 = vld [vmem:[%s2336 + $0x58] sm:$0xff]
        %v2349 = vld [vmem:[%s2336 + $0x60] sm:$0xff]
        %v2350 = vld [vmem:[%s2336 + $0x68] sm:$0xff]
        %v2351 = vld [vmem:[%s2336 + $0x70] sm:$0xff]
        %v2352 = vld [vmem:[%s2336 + $0x78] sm:$0xff]
        %v2353 = vadd.f32 %v2304, %v2337
        %v2354 = vadd.f32 %v2305, %v2338
        %v2355 = vadd.f32 %v2306, %v2339
        %v2356 = vadd.f32 %v2307, %v2340
        %v2357 = vadd.f32 %v2308, %v2341
        %v2358 = vadd.f32 %v2309, %v2342
        %v2359 = vadd.f32 %v2310, %v2343
        %v2360 = vadd.f32 %v2311, %v2344
        %v2361 = vadd.f32 %v2312, %v2345
        %v2362 = vadd.f32 %v2313, %v2346
        %v2363 = vadd.f32 %v2314, %v2347
        %v2364 = vadd.f32 %v2315, %v2348
        %v2365 = vadd.f32 %v2316, %v2349
        %v2366 = vadd.f32 %v2317, %v2350
        %v2367 = vadd.f32 %v2318, %v2351
        %v2368 = vadd.f32 %v2319, %v2352
        %v2369 = vmul.f32 %v2353, 2.0
        %v2370 = vmul.f32 %v2354, 2.0
        %v2371 = vmul.f32 %v2355, 2.0
        %v2372 = vmul.f32 %v2356, 2.0
        %v2373 = vmul.f32 %v2357, 2.0
        %v2374 = vmul.f32 %v2358, 2.0
        %v2375 = vmul.f32 %v2359, 2.0
        %v2376 = vmul.f32 %v2360, 2.0
        %v2377 = vmul.f32 %v2361, 2.0
        %v2378 = vmul.f32 %v2362, 2.0
        %v2379 = vmul.f32 %v2363, 2.0
        %v2380 = vmul.f32 %v2364, 2.0
        %v2381 = vmul.f32 %v2365, 2.0
        %v2382 = vmul.f32 %v2366, 2.0
        %v2383 = vmul.f32 %v2367, 2.0
        %v2384 = vmul.f32 %v2368, 2.0
        %v2385 = vmul.f32 %v2369, 1.442695
        %v2386 = vpow.pop %v2385
        %v2387 = vmul.f32 %v2370, 1.442695
        %v2388 = vpow.pop %v2387
        %v2389 = vmul.f32 %v2371, 1.442695
        %v2390 = vpow.pop %v2389
        %v2391 = vmul.f32 %v2372, 1.442695
        %v2392 = vpow.pop %v2391
        %v2393 = vmul.f32 %v2373, 1.442695
        %v2394 = vpow.pop %v2393
        %v2395 = vmul.f32 %v2374, 1.442695
        %v2396 = vpow.pop %v2395
        %v2397 = vmul.f32 %v2375, 1.442695
        %v2398 = vpow.pop %v2397
        %v2399 = vmul.f32 %v2376, 1.442695
        %v2400 = vpow.pop %v2399
        %v2401 = vmul.f32 %v2377, 1.442695
        %v2402 = vpow.pop %v2401
        %v2403 = vmul.f32 %v2378, 1.442695
        %v2404 = vpow.pop %v2403
        %v2405 = vmul.f32 %v2379, 1.442695
        %v2406 = vpow.pop %v2405
        %v2407 = vmul.f32 %v2380, 1.442695
        %v2408 = vpow.pop %v2407
        %v2409 = vmul.f32 %v2381, 1.442695
        %v2410 = vpow.pop %v2409
        %v2411 = vmul.f32 %v2382, 1.442695
        %v2412 = vpow.pop %v2411
        %v2413 = vmul.f32 %v2383, 1.442695
        %v2414 = vpow.pop %v2413
        %v2415 = vmul.f32 %v2384, 1.442695
        %v2416 = vpow.pop %v2415
        %2417 = vadd.xlane.f32.xlu0 %v2386
        %v2418 = vpop.xlane.xlu0 %2417
        %2419 = vadd.xlane.f32.xlu0 %v2388
        %v2420 = vpop.xlane.xlu0 %2419
        %2421 = vadd.xlane.f32.xlu0 %v2390
        %v2422 = vpop.xlane.xlu0 %2421
        %2423 = vadd.xlane.f32.xlu0 %v2392
        %v2424 = vpop.xlane.xlu0 %2423
        %2425 = vadd.xlane.f32.xlu0 %v2394
        %v2426 = vpop.xlane.xlu0 %2425
        %2427 = vadd.xlane.f32.xlu0 %v2396
        %v2428 = vpop.xlane.xlu0 %2427
        %2429 = vadd.xlane.f32.xlu0 %v2398
        %v2430 = vpop.xlane.xlu0 %2429
        %2431 = vadd.xlane.f32.xlu0 %v2400
        %v2432 = vpop.xlane.xlu0 %2431
        %2433 = vadd.xlane.f32.xlu0 %v2402
        %v2434 = vpop.xlane.xlu0 %2433
        %2435 = vadd.xlane.f32.xlu0 %v2404
        %v2436 = vpop.xlane.xlu0 %2435
        %2437 = vadd.xlane.f32.xlu0 %v2406
        %v2438 = vpop.xlane.xlu0 %2437
        %2439 = vadd.xlane.f32.xlu0 %v2408
        %v2440 = vpop.xlane.xlu0 %2439
        %2441 = vadd.xlane.f32.xlu0 %v2410
        %v2442 = vpop.xlane.xlu0 %2441
        %2443 = vadd.xlane.f32.xlu0 %v2412
        %v2444 = vpop.xlane.xlu0 %2443
        %2445 = vadd.xlane.f32.xlu0 %v2414
        %v2446 = vpop.xlane.xlu0 %2445
        %2447 = vadd.xlane.f32.xlu0 %v2416
        %v2448 = vpop.xlane.xlu0 %2447
        %v2449 = vrcp.pop %v2418
        %v2450 = vrcp.pop %v2420
        %v2451 = vrcp.pop %v2422
        %v2452 = vrcp.pop %v2424
        %v2453 = vrcp.pop %v2426
        %v2454 = vrcp.pop %v2428
        %v2455 = vrcp.pop %v2430
        %v2456 = vrcp.pop %v2432
        %v2457 = vrcp.pop %v2434
        %v2458 = vrcp.pop %v2436
        %v2459 = vrcp.pop %v2438
        %v2460 = vrcp.pop %v2440
        %v2461 = vrcp.pop %v2442
        %v2462 = vrcp.pop %v2444
        %v2463 = vrcp.pop %v2446
        %v2464 = vrcp.pop %v2448
        %v2465 = vmul.f32 %v2386, %v2449
        %v2466 = vmul.f32 %v2388, %v2450
        %v2467 = vmul.f32 %v2390, %v2451
        %v2468 = vmul.f32 %v2392, %v2452
        %v2469 = vmul.f32 %v2394, %v2453
        %v2470 = vmul.f32 %v2396, %v2454
        %v2471 = vmul.f32 %v2398, %v2455
        %v2472 = vmul.f32 %v2400, %v2456
        %v2473 = vmul.f32 %v2402, %v2457
        %v2474 = vmul.f32 %v2404, %v2458
        %v2475 = vmul.f32 %v2406, %v2459
        %v2476 = vmul.f32 %v2408, %v2460
        %v2477 = vmul.f32 %v2410, %v2461
        %v2478 = vmul.f32 %v2412, %v2462
        %v2479 = vmul.f32 %v2414, %v2463
        %v2480 = vmul.f32 %v2416, %v2464
        %v2481 = vmax.f32 %v2465, %v2320
        %v2482 = vmax.f32 %v2466, %v2321
        %v2483 = vmax.f32 %v2467, %v2322
        %v2484 = vmax.f32 %v2468, %v2323
        %v2485 = vmax.f32 %v2469, %v2324
        %v2486 = vmax.f32 %v2470, %v2325
        %v2487 = vmax.f32 %v2471, %v2326
        %v2488 = vmax.f32 %v2472, %v2327
        %v2489 = vmax.f32 %v2473, %v2328
        %v2490 = vmax.f32 %v2474, %v2329
        %v2491 = vmax.f32 %v2475, %v2330
        %v2492 = vmax.f32 %v2476, %v2331
        %v2493 = vmax.f32 %v2477, %v2332
        %v2494 = vmax.f32 %v2478, %v2333
        %v2495 = vmax.f32 %v2479, %v2334
        %v2496 = vmax.f32 %v2480, %v2335
        %s2497 = scalar_lea.vmem %s542, 896 [#allocation19]
        %v2498 = vld [vmem:[%s2497] sm:$0xff]
        %v2499 = vld [vmem:[%s2497 + $0x8] sm:$0xff]
        %v2500 = vld [vmem:[%s2497 + $0x10] sm:$0xff]
        %v2501 = vld [vmem:[%s2497 + $0x18] sm:$0xff]
        %v2502 = vld [vmem:[%s2497 + $0x20] sm:$0xff]
        %v2503 = vld [vmem:[%s2497 + $0x28] sm:$0xff]
        %v2504 = vld [vmem:[%s2497 + $0x30] sm:$0xff]
        %v2505 = vld [vmem:[%s2497 + $0x38] sm:$0xff]
        %v2506 = vld [vmem:[%s2497 + $0x40] sm:$0xff]
        %v2507 = vld [vmem:[%s2497 + $0x48] sm:$0xff]
        %v2508 = vld [vmem:[%s2497 + $0x50] sm:$0xff]
        %v2509 = vld [vmem:[%s2497 + $0x58] sm:$0xff]
        %v2510 = vld [vmem:[%s2497 + $0x60] sm:$0xff]
        %v2511 = vld [vmem:[%s2497 + $0x68] sm:$0xff]
        %v2512 = vld [vmem:[%s2497 + $0x70] sm:$0xff]
        %v2513 = vld [vmem:[%s2497 + $0x78] sm:$0xff]
        %v2514 = vadd.f32 %v2465, %v2498
        %v2515 = vadd.f32 %v2466, %v2499
        %v2516 = vadd.f32 %v2467, %v2500
        %v2517 = vadd.f32 %v2468, %v2501
        %v2518 = vadd.f32 %v2469, %v2502
        %v2519 = vadd.f32 %v2470, %v2503
        %v2520 = vadd.f32 %v2471, %v2504
        %v2521 = vadd.f32 %v2472, %v2505
        %v2522 = vadd.f32 %v2473, %v2506
        %v2523 = vadd.f32 %v2474, %v2507
        %v2524 = vadd.f32 %v2475, %v2508
        %v2525 = vadd.f32 %v2476, %v2509
        %v2526 = vadd.f32 %v2477, %v2510
        %v2527 = vadd.f32 %v2478, %v2511
        %v2528 = vadd.f32 %v2479, %v2512
        %v2529 = vadd.f32 %v2480, %v2513
        %v2530 = vmul.f32 %v2514, 2.0
        %v2531 = vmul.f32 %v2515, 2.0
        %v2532 = vmul.f32 %v2516, 2.0
        %v2533 = vmul.f32 %v2517, 2.0
        %v2534 = vmul.f32 %v2518, 2.0
        %v2535 = vmul.f32 %v2519, 2.0
        %v2536 = vmul.f32 %v2520, 2.0
        %v2537 = vmul.f32 %v2521, 2.0
        %v2538 = vmul.f32 %v2522, 2.0
        %v2539 = vmul.f32 %v2523, 2.0
        %v2540 = vmul.f32 %v2524, 2.0
        %v2541 = vmul.f32 %v2525, 2.0
        %v2542 = vmul.f32 %v2526, 2.0
        %v2543 = vmul.f32 %v2527, 2.0
        %v2544 = vmul.f32 %v2528, 2.0
        %v2545 = vmul.f32 %v2529, 2.0
        %v2546 = vmul.f32 %v2530, 1.442695
        %v2547 = vpow.pop %v2546
        %v2548 = vmul.f32 %v2531, 1.442695
        %v2549 = vpow.pop %v2548
        %v2550 = vmul.f32 %v2532, 1.442695
        %v2551 = vpow.pop %v2550
        %v2552 = vmul.f32 %v2533, 1.442695
        %v2553 = vpow.pop %v2552
        %v2554 = vmul.f32 %v2534, 1.442695
        %v2555 = vpow.pop %v2554
        %v2556 = vmul.f32 %v2535, 1.442695
        %v2557 = vpow.pop %v2556
        %v2558 = vmul.f32 %v2536, 1.442695
        %v2559 = vpow.pop %v2558
        %v2560 = vmul.f32 %v2537, 1.442695
        %v2561 = vpow.pop %v2560
        %v2562 = vmul.f32 %v2538, 1.442695
        %v2563 = vpow.pop %v2562
        %v2564 = vmul.f32 %v2539, 1.442695
        %v2565 = vpow.pop %v2564
        %v2566 = vmul.f32 %v2540, 1.442695
        %v2567 = vpow.pop %v2566
        %v2568 = vmul.f32 %v2541, 1.442695
        %v2569 = vpow.pop %v2568
        %v2570 = vmul.f32 %v2542, 1.442695
        %v2571 = vpow.pop %v2570
        %v2572 = vmul.f32 %v2543, 1.442695
        %v2573 = vpow.pop %v2572
        %v2574 = vmul.f32 %v2544, 1.442695
        %v2575 = vpow.pop %v2574
        %v2576 = vmul.f32 %v2545, 1.442695
        %v2577 = vpow.pop %v2576
        %2578 = vadd.xlane.f32.xlu0 %v2547
        %v2579 = vpop.xlane.xlu0 %2578
        %2580 = vadd.xlane.f32.xlu0 %v2549
        %v2581 = vpop.xlane.xlu0 %2580
        %2582 = vadd.xlane.f32.xlu0 %v2551
        %v2583 = vpop.xlane.xlu0 %2582
        %2584 = vadd.xlane.f32.xlu0 %v2553
        %v2585 = vpop.xlane.xlu0 %2584
        %2586 = vadd.xlane.f32.xlu0 %v2555
        %v2587 = vpop.xlane.xlu0 %2586
        %2588 = vadd.xlane.f32.xlu0 %v2557
        %v2589 = vpop.xlane.xlu0 %2588
        %2590 = vadd.xlane.f32.xlu0 %v2559
        %v2591 = vpop.xlane.xlu0 %2590
        %2592 = vadd.xlane.f32.xlu0 %v2561
        %v2593 = vpop.xlane.xlu0 %2592
        %2594 = vadd.xlane.f32.xlu0 %v2563
        %v2595 = vpop.xlane.xlu0 %2594
        %2596 = vadd.xlane.f32.xlu0 %v2565
        %v2597 = vpop.xlane.xlu0 %2596
        %2598 = vadd.xlane.f32.xlu0 %v2567
        %v2599 = vpop.xlane.xlu0 %2598
        %2600 = vadd.xlane.f32.xlu0 %v2569
        %v2601 = vpop.xlane.xlu0 %2600
        %2602 = vadd.xlane.f32.xlu0 %v2571
        %v2603 = vpop.xlane.xlu0 %2602
        %2604 = vadd.xlane.f32.xlu0 %v2573
        %v2605 = vpop.xlane.xlu0 %2604
        %2606 = vadd.xlane.f32.xlu0 %v2575
        %v2607 = vpop.xlane.xlu0 %2606
        %2608 = vadd.xlane.f32.xlu0 %v2577
        %v2609 = vpop.xlane.xlu0 %2608
        %v2610 = vrcp.pop %v2579
        %v2611 = vrcp.pop %v2581
        %v2612 = vrcp.pop %v2583
        %v2613 = vrcp.pop %v2585
        %v2614 = vrcp.pop %v2587
        %v2615 = vrcp.pop %v2589
        %v2616 = vrcp.pop %v2591
        %v2617 = vrcp.pop %v2593
        %v2618 = vrcp.pop %v2595
        %v2619 = vrcp.pop %v2597
        %v2620 = vrcp.pop %v2599
        %v2621 = vrcp.pop %v2601
        %v2622 = vrcp.pop %v2603
        %v2623 = vrcp.pop %v2605
        %v2624 = vrcp.pop %v2607
        %v2625 = vrcp.pop %v2609
        %v2626 = vmul.f32 %v2547, %v2610
        %v2627 = vmul.f32 %v2549, %v2611
        %v2628 = vmul.f32 %v2551, %v2612
        %v2629 = vmul.f32 %v2553, %v2613
        %v2630 = vmul.f32 %v2555, %v2614
        %v2631 = vmul.f32 %v2557, %v2615
        %v2632 = vmul.f32 %v2559, %v2616
        %v2633 = vmul.f32 %v2561, %v2617
        %v2634 = vmul.f32 %v2563, %v2618
        %v2635 = vmul.f32 %v2565, %v2619
        %v2636 = vmul.f32 %v2567, %v2620
        %v2637 = vmul.f32 %v2569, %v2621
        %v2638 = vmul.f32 %v2571, %v2622
        %v2639 = vmul.f32 %v2573, %v2623
        %v2640 = vmul.f32 %v2575, %v2624
        %v2641 = vmul.f32 %v2577, %v2625
        %v2642 = vmax.f32 %v2626, %v2481
        %v2643 = vmax.f32 %v2627, %v2482
        %v2644 = vmax.f32 %v2628, %v2483
        %v2645 = vmax.f32 %v2629, %v2484
        %v2646 = vmax.f32 %v2630, %v2485
        %v2647 = vmax.f32 %v2631, %v2486
        %v2648 = vmax.f32 %v2632, %v2487
        %v2649 = vmax.f32 %v2633, %v2488
        %v2650 = vmax.f32 %v2634, %v2489
        %v2651 = vmax.f32 %v2635, %v2490
        %v2652 = vmax.f32 %v2636, %v2491
        %v2653 = vmax.f32 %v2637, %v2492
        %v2654 = vmax.f32 %v2638, %v2493
        %v2655 = vmax.f32 %v2639, %v2494
        %v2656 = vmax.f32 %v2640, %v2495
        %v2657 = vmax.f32 %v2641, %v2496
        %s2658 = scalar_lea.vmem %s542, 1024 [#allocation19]
        %v2659 = vld [vmem:[%s2658] sm:$0xff]
        %v2660 = vld [vmem:[%s2658 + $0x8] sm:$0xff]
        %v2661 = vld [vmem:[%s2658 + $0x10] sm:$0xff]
        %v2662 = vld [vmem:[%s2658 + $0x18] sm:$0xff]
        %v2663 = vld [vmem:[%s2658 + $0x20] sm:$0xff]
        %v2664 = vld [vmem:[%s2658 + $0x28] sm:$0xff]
        %v2665 = vld [vmem:[%s2658 + $0x30] sm:$0xff]
        %v2666 = vld [vmem:[%s2658 + $0x38] sm:$0xff]
        %v2667 = vld [vmem:[%s2658 + $0x40] sm:$0xff]
        %v2668 = vld [vmem:[%s2658 + $0x48] sm:$0xff]
        %v2669 = vld [vmem:[%s2658 + $0x50] sm:$0xff]
        %v2670 = vld [vmem:[%s2658 + $0x58] sm:$0xff]
        %v2671 = vld [vmem:[%s2658 + $0x60] sm:$0xff]
        %v2672 = vld [vmem:[%s2658 + $0x68] sm:$0xff]
        %v2673 = vld [vmem:[%s2658 + $0x70] sm:$0xff]
        %v2674 = vld [vmem:[%s2658 + $0x78] sm:$0xff]
        %v2675 = vadd.f32 %v2626, %v2659
        %v2676 = vadd.f32 %v2627, %v2660
        %v2677 = vadd.f32 %v2628, %v2661
        %v2678 = vadd.f32 %v2629, %v2662
        %v2679 = vadd.f32 %v2630, %v2663
        %v2680 = vadd.f32 %v2631, %v2664
        %v2681 = vadd.f32 %v2632, %v2665
        %v2682 = vadd.f32 %v2633, %v2666
        %v2683 = vadd.f32 %v2634, %v2667
        %v2684 = vadd.f32 %v2635, %v2668
        %v2685 = vadd.f32 %v2636, %v2669
        %v2686 = vadd.f32 %v2637, %v2670
        %v2687 = vadd.f32 %v2638, %v2671
        %v2688 = vadd.f32 %v2639, %v2672
        %v2689 = vadd.f32 %v2640, %v2673
        %v2690 = vadd.f32 %v2641, %v2674
        %v2691 = vmul.f32 %v2675, 2.0
        %v2692 = vmul.f32 %v2676, 2.0
        %v2693 = vmul.f32 %v2677, 2.0
        %v2694 = vmul.f32 %v2678, 2.0
        %v2695 = vmul.f32 %v2679, 2.0
        %v2696 = vmul.f32 %v2680, 2.0
        %v2697 = vmul.f32 %v2681, 2.0
        %v2698 = vmul.f32 %v2682, 2.0
        %v2699 = vmul.f32 %v2683, 2.0
        %v2700 = vmul.f32 %v2684, 2.0
        %v2701 = vmul.f32 %v2685, 2.0
        %v2702 = vmul.f32 %v2686, 2.0
        %v2703 = vmul.f32 %v2687, 2.0
        %v2704 = vmul.f32 %v2688, 2.0
        %v2705 = vmul.f32 %v2689, 2.0
        %v2706 = vmul.f32 %v2690, 2.0
        %v2707 = vmul.f32 %v2691, 1.442695
        %v2708 = vpow.pop %v2707
        %v2709 = vmul.f32 %v2692, 1.442695
        %v2710 = vpow.pop %v2709
        %v2711 = vmul.f32 %v2693, 1.442695
        %v2712 = vpow.pop %v2711
        %v2713 = vmul.f32 %v2694, 1.442695
        %v2714 = vpow.pop %v2713
        %v2715 = vmul.f32 %v2695, 1.442695
        %v2716 = vpow.pop %v2715
        %v2717 = vmul.f32 %v2696, 1.442695
        %v2718 = vpow.pop %v2717
        %v2719 = vmul.f32 %v2697, 1.442695
        %v2720 = vpow.pop %v2719
        %v2721 = vmul.f32 %v2698, 1.442695
        %v2722 = vpow.pop %v2721
        %v2723 = vmul.f32 %v2699, 1.442695
        %v2724 = vpow.pop %v2723
        %v2725 = vmul.f32 %v2700, 1.442695
        %v2726 = vpow.pop %v2725
        %v2727 = vmul.f32 %v2701, 1.442695
        %v2728 = vpow.pop %v2727
        %v2729 = vmul.f32 %v2702, 1.442695
        %v2730 = vpow.pop %v2729
        %v2731 = vmul.f32 %v2703, 1.442695
        %v2732 = vpow.pop %v2731
        %v2733 = vmul.f32 %v2704, 1.442695
        %v2734 = vpow.pop %v2733
        %v2735 = vmul.f32 %v2705, 1.442695
        %v2736 = vpow.pop %v2735
        %v2737 = vmul.f32 %v2706, 1.442695
        %v2738 = vpow.pop %v2737
        %2739 = vadd.xlane.f32.xlu0 %v2708
        %v2740 = vpop.xlane.xlu0 %2739
        %2741 = vadd.xlane.f32.xlu0 %v2710
        %v2742 = vpop.xlane.xlu0 %2741
        %2743 = vadd.xlane.f32.xlu0 %v2712
        %v2744 = vpop.xlane.xlu0 %2743
        %2745 = vadd.xlane.f32.xlu0 %v2714
        %v2746 = vpop.xlane.xlu0 %2745
        %2747 = vadd.xlane.f32.xlu0 %v2716
        %v2748 = vpop.xlane.xlu0 %2747
        %2749 = vadd.xlane.f32.xlu0 %v2718
        %v2750 = vpop.xlane.xlu0 %2749
        %2751 = vadd.xlane.f32.xlu0 %v2720
        %v2752 = vpop.xlane.xlu0 %2751
        %2753 = vadd.xlane.f32.xlu0 %v2722
        %v2754 = vpop.xlane.xlu0 %2753
        %2755 = vadd.xlane.f32.xlu0 %v2724
        %v2756 = vpop.xlane.xlu0 %2755
        %2757 = vadd.xlane.f32.xlu0 %v2726
        %v2758 = vpop.xlane.xlu0 %2757
        %2759 = vadd.xlane.f32.xlu0 %v2728
        %v2760 = vpop.xlane.xlu0 %2759
        %2761 = vadd.xlane.f32.xlu0 %v2730
        %v2762 = vpop.xlane.xlu0 %2761
        %2763 = vadd.xlane.f32.xlu0 %v2732
        %v2764 = vpop.xlane.xlu0 %2763
        %2765 = vadd.xlane.f32.xlu0 %v2734
        %v2766 = vpop.xlane.xlu0 %2765
        %2767 = vadd.xlane.f32.xlu0 %v2736
        %v2768 = vpop.xlane.xlu0 %2767
        %2769 = vadd.xlane.f32.xlu0 %v2738
        %v2770 = vpop.xlane.xlu0 %2769
        %v2771 = vrcp.pop %v2740
        %v2772 = vrcp.pop %v2742
        %v2773 = vrcp.pop %v2744
        %v2774 = vrcp.pop %v2746
        %v2775 = vrcp.pop %v2748
        %v2776 = vrcp.pop %v2750
        %v2777 = vrcp.pop %v2752
        %v2778 = vrcp.pop %v2754
        %v2779 = vrcp.pop %v2756
        %v2780 = vrcp.pop %v2758
        %v2781 = vrcp.pop %v2760
        %v2782 = vrcp.pop %v2762
        %v2783 = vrcp.pop %v2764
        %v2784 = vrcp.pop %v2766
        %v2785 = vrcp.pop %v2768
        %v2786 = vrcp.pop %v2770
        %v2787 = vmul.f32 %v2708, %v2771
        %v2788 = vmul.f32 %v2710, %v2772
        %v2789 = vmul.f32 %v2712, %v2773
        %v2790 = vmul.f32 %v2714, %v2774
        %v2791 = vmul.f32 %v2716, %v2775
        %v2792 = vmul.f32 %v2718, %v2776
        %v2793 = vmul.f32 %v2720, %v2777
        %v2794 = vmul.f32 %v2722, %v2778
        %v2795 = vmul.f32 %v2724, %v2779
        %v2796 = vmul.f32 %v2726, %v2780
        %v2797 = vmul.f32 %v2728, %v2781
        %v2798 = vmul.f32 %v2730, %v2782
        %v2799 = vmul.f32 %v2732, %v2783
        %v2800 = vmul.f32 %v2734, %v2784
        %v2801 = vmul.f32 %v2736, %v2785
        %v2802 = vmul.f32 %v2738, %v2786
        %v2803 = vmax.f32 %v2787, %v2642
        %v2804 = vmax.f32 %v2788, %v2643
        %v2805 = vmax.f32 %v2789, %v2644
        %v2806 = vmax.f32 %v2790, %v2645
        %v2807 = vmax.f32 %v2791, %v2646
        %v2808 = vmax.f32 %v2792, %v2647
        %v2809 = vmax.f32 %v2793, %v2648
        %v2810 = vmax.f32 %v2794, %v2649
        %v2811 = vmax.f32 %v2795, %v2650
        %v2812 = vmax.f32 %v2796, %v2651
        %v2813 = vmax.f32 %v2797, %v2652
        %v2814 = vmax.f32 %v2798, %v2653
        %v2815 = vmax.f32 %v2799, %v2654
        %v2816 = vmax.f32 %v2800, %v2655
        %v2817 = vmax.f32 %v2801, %v2656
        %v2818 = vmax.f32 %v2802, %v2657
        %s2819 = scalar_lea.vmem %s542, 1152 [#allocation19]
        %v2820 = vld [vmem:[%s2819] sm:$0xff]
        %v2821 = vld [vmem:[%s2819 + $0x8] sm:$0xff]
        %v2822 = vld [vmem:[%s2819 + $0x10] sm:$0xff]
        %v2823 = vld [vmem:[%s2819 + $0x18] sm:$0xff]
        %v2824 = vld [vmem:[%s2819 + $0x20] sm:$0xff]
        %v2825 = vld [vmem:[%s2819 + $0x28] sm:$0xff]
        %v2826 = vld [vmem:[%s2819 + $0x30] sm:$0xff]
        %v2827 = vld [vmem:[%s2819 + $0x38] sm:$0xff]
        %v2828 = vld [vmem:[%s2819 + $0x40] sm:$0xff]
        %v2829 = vld [vmem:[%s2819 + $0x48] sm:$0xff]
        %v2830 = vld [vmem:[%s2819 + $0x50] sm:$0xff]
        %v2831 = vld [vmem:[%s2819 + $0x58] sm:$0xff]
        %v2832 = vld [vmem:[%s2819 + $0x60] sm:$0xff]
        %v2833 = vld [vmem:[%s2819 + $0x68] sm:$0xff]
        %v2834 = vld [vmem:[%s2819 + $0x70] sm:$0xff]
        %v2835 = vld [vmem:[%s2819 + $0x78] sm:$0xff]
        %v2836 = vadd.f32 %v2787, %v2820
        %v2837 = vadd.f32 %v2788, %v2821
        %v2838 = vadd.f32 %v2789, %v2822
        %v2839 = vadd.f32 %v2790, %v2823
        %v2840 = vadd.f32 %v2791, %v2824
        %v2841 = vadd.f32 %v2792, %v2825
        %v2842 = vadd.f32 %v2793, %v2826
        %v2843 = vadd.f32 %v2794, %v2827
        %v2844 = vadd.f32 %v2795, %v2828
        %v2845 = vadd.f32 %v2796, %v2829
        %v2846 = vadd.f32 %v2797, %v2830
        %v2847 = vadd.f32 %v2798, %v2831
        %v2848 = vadd.f32 %v2799, %v2832
        %v2849 = vadd.f32 %v2800, %v2833
        %v2850 = vadd.f32 %v2801, %v2834
        %v2851 = vadd.f32 %v2802, %v2835
        %v2852 = vmul.f32 %v2836, 2.0
        %v2853 = vmul.f32 %v2837, 2.0
        %v2854 = vmul.f32 %v2838, 2.0
        %v2855 = vmul.f32 %v2839, 2.0
        %v2856 = vmul.f32 %v2840, 2.0
        %v2857 = vmul.f32 %v2841, 2.0
        %v2858 = vmul.f32 %v2842, 2.0
        %v2859 = vmul.f32 %v2843, 2.0
        %v2860 = vmul.f32 %v2844, 2.0
        %v2861 = vmul.f32 %v2845, 2.0
        %v2862 = vmul.f32 %v2846, 2.0
        %v2863 = vmul.f32 %v2847, 2.0
        %v2864 = vmul.f32 %v2848, 2.0
        %v2865 = vmul.f32 %v2849, 2.0
        %v2866 = vmul.f32 %v2850, 2.0
        %v2867 = vmul.f32 %v2851, 2.0
        %v2868 = vmul.f32 %v2852, 1.442695
        %v2869 = vpow.pop %v2868
        %v2870 = vmul.f32 %v2853, 1.442695
        %v2871 = vpow.pop %v2870
        %v2872 = vmul.f32 %v2854, 1.442695
        %v2873 = vpow.pop %v2872
        %v2874 = vmul.f32 %v2855, 1.442695
        %v2875 = vpow.pop %v2874
        %v2876 = vmul.f32 %v2856, 1.442695
        %v2877 = vpow.pop %v2876
        %v2878 = vmul.f32 %v2857, 1.442695
        %v2879 = vpow.pop %v2878
        %v2880 = vmul.f32 %v2858, 1.442695
        %v2881 = vpow.pop %v2880
        %v2882 = vmul.f32 %v2859, 1.442695
        %v2883 = vpow.pop %v2882
        %v2884 = vmul.f32 %v2860, 1.442695
        %v2885 = vpow.pop %v2884
        %v2886 = vmul.f32 %v2861, 1.442695
        %v2887 = vpow.pop %v2886
        %v2888 = vmul.f32 %v2862, 1.442695
        %v2889 = vpow.pop %v2888
        %v2890 = vmul.f32 %v2863, 1.442695
        %v2891 = vpow.pop %v2890
        %v2892 = vmul.f32 %v2864, 1.442695
        %v2893 = vpow.pop %v2892
        %v2894 = vmul.f32 %v2865, 1.442695
        %v2895 = vpow.pop %v2894
        %v2896 = vmul.f32 %v2866, 1.442695
        %v2897 = vpow.pop %v2896
        %v2898 = vmul.f32 %v2867, 1.442695
        %v2899 = vpow.pop %v2898
        %2900 = vadd.xlane.f32.xlu0 %v2869
        %v2901 = vpop.xlane.xlu0 %2900
        %2902 = vadd.xlane.f32.xlu0 %v2871
        %v2903 = vpop.xlane.xlu0 %2902
        %2904 = vadd.xlane.f32.xlu0 %v2873
        %v2905 = vpop.xlane.xlu0 %2904
        %2906 = vadd.xlane.f32.xlu0 %v2875
        %v2907 = vpop.xlane.xlu0 %2906
        %2908 = vadd.xlane.f32.xlu0 %v2877
        %v2909 = vpop.xlane.xlu0 %2908
        %2910 = vadd.xlane.f32.xlu0 %v2879
        %v2911 = vpop.xlane.xlu0 %2910
        %2912 = vadd.xlane.f32.xlu0 %v2881
        %v2913 = vpop.xlane.xlu0 %2912
        %2914 = vadd.xlane.f32.xlu0 %v2883
        %v2915 = vpop.xlane.xlu0 %2914
        %2916 = vadd.xlane.f32.xlu0 %v2885
        %v2917 = vpop.xlane.xlu0 %2916
        %2918 = vadd.xlane.f32.xlu0 %v2887
        %v2919 = vpop.xlane.xlu0 %2918
        %2920 = vadd.xlane.f32.xlu0 %v2889
        %v2921 = vpop.xlane.xlu0 %2920
        %2922 = vadd.xlane.f32.xlu0 %v2891
        %v2923 = vpop.xlane.xlu0 %2922
        %2924 = vadd.xlane.f32.xlu0 %v2893
        %v2925 = vpop.xlane.xlu0 %2924
        %2926 = vadd.xlane.f32.xlu0 %v2895
        %v2927 = vpop.xlane.xlu0 %2926
        %2928 = vadd.xlane.f32.xlu0 %v2897
        %v2929 = vpop.xlane.xlu0 %2928
        %2930 = vadd.xlane.f32.xlu0 %v2899
        %v2931 = vpop.xlane.xlu0 %2930
        %v2932 = vrcp.pop %v2901
        %v2933 = vrcp.pop %v2903
        %v2934 = vrcp.pop %v2905
        %v2935 = vrcp.pop %v2907
        %v2936 = vrcp.pop %v2909
        %v2937 = vrcp.pop %v2911
        %v2938 = vrcp.pop %v2913
        %v2939 = vrcp.pop %v2915
        %v2940 = vrcp.pop %v2917
        %v2941 = vrcp.pop %v2919
        %v2942 = vrcp.pop %v2921
        %v2943 = vrcp.pop %v2923
        %v2944 = vrcp.pop %v2925
        %v2945 = vrcp.pop %v2927
        %v2946 = vrcp.pop %v2929
        %v2947 = vrcp.pop %v2931
        %v2948 = vmul.f32 %v2869, %v2932
        %v2949 = vmul.f32 %v2871, %v2933
        %v2950 = vmul.f32 %v2873, %v2934
        %v2951 = vmul.f32 %v2875, %v2935
        %v2952 = vmul.f32 %v2877, %v2936
        %v2953 = vmul.f32 %v2879, %v2937
        %v2954 = vmul.f32 %v2881, %v2938
        %v2955 = vmul.f32 %v2883, %v2939
        %v2956 = vmul.f32 %v2885, %v2940
        %v2957 = vmul.f32 %v2887, %v2941
        %v2958 = vmul.f32 %v2889, %v2942
        %v2959 = vmul.f32 %v2891, %v2943
        %v2960 = vmul.f32 %v2893, %v2944
        %v2961 = vmul.f32 %v2895, %v2945
        %v2962 = vmul.f32 %v2897, %v2946
        %v2963 = vmul.f32 %v2899, %v2947
        %v2964 = vmax.f32 %v2948, %v2803
        %v2965 = vmax.f32 %v2949, %v2804
        %v2966 = vmax.f32 %v2950, %v2805
        %v2967 = vmax.f32 %v2951, %v2806
        %v2968 = vmax.f32 %v2952, %v2807
        %v2969 = vmax.f32 %v2953, %v2808
        %v2970 = vmax.f32 %v2954, %v2809
        %v2971 = vmax.f32 %v2955, %v2810
        %v2972 = vmax.f32 %v2956, %v2811
        %v2973 = vmax.f32 %v2957, %v2812
        %v2974 = vmax.f32 %v2958, %v2813
        %v2975 = vmax.f32 %v2959, %v2814
        %v2976 = vmax.f32 %v2960, %v2815
        %v2977 = vmax.f32 %v2961, %v2816
        %v2978 = vmax.f32 %v2962, %v2817
        %v2979 = vmax.f32 %v2963, %v2818
        %s2980 = scalar_lea.vmem %s542, 1280 [#allocation19]
        %v2981 = vld [vmem:[%s2980] sm:$0xff]
        %v2982 = vld [vmem:[%s2980 + $0x8] sm:$0xff]
        %v2983 = vld [vmem:[%s2980 + $0x10] sm:$0xff]
        %v2984 = vld [vmem:[%s2980 + $0x18] sm:$0xff]
        %v2985 = vld [vmem:[%s2980 + $0x20] sm:$0xff]
        %v2986 = vld [vmem:[%s2980 + $0x28] sm:$0xff]
        %v2987 = vld [vmem:[%s2980 + $0x30] sm:$0xff]
        %v2988 = vld [vmem:[%s2980 + $0x38] sm:$0xff]
        %v2989 = vld [vmem:[%s2980 + $0x40] sm:$0xff]
        %v2990 = vld [vmem:[%s2980 + $0x48] sm:$0xff]
        %v2991 = vld [vmem:[%s2980 + $0x50] sm:$0xff]
        %v2992 = vld [vmem:[%s2980 + $0x58] sm:$0xff]
        %v2993 = vld [vmem:[%s2980 + $0x60] sm:$0xff]
        %v2994 = vld [vmem:[%s2980 + $0x68] sm:$0xff]
        %v2995 = vld [vmem:[%s2980 + $0x70] sm:$0xff]
        %v2996 = vld [vmem:[%s2980 + $0x78] sm:$0xff]
        %v2997 = vadd.f32 %v2948, %v2981
        %v2998 = vadd.f32 %v2949, %v2982
        %v2999 = vadd.f32 %v2950, %v2983
        %v3000 = vadd.f32 %v2951, %v2984
        %v3001 = vadd.f32 %v2952, %v2985
        %v3002 = vadd.f32 %v2953, %v2986
        %v3003 = vadd.f32 %v2954, %v2987
        %v3004 = vadd.f32 %v2955, %v2988
        %v3005 = vadd.f32 %v2956, %v2989
        %v3006 = vadd.f32 %v2957, %v2990
        %v3007 = vadd.f32 %v2958, %v2991
        %v3008 = vadd.f32 %v2959, %v2992
        %v3009 = vadd.f32 %v2960, %v2993
        %v3010 = vadd.f32 %v2961, %v2994
        %v3011 = vadd.f32 %v2962, %v2995
        %v3012 = vadd.f32 %v2963, %v2996
        %v3013 = vmul.f32 %v2997, 2.0
        %v3014 = vmul.f32 %v2998, 2.0
        %v3015 = vmul.f32 %v2999, 2.0
        %v3016 = vmul.f32 %v3000, 2.0
        %v3017 = vmul.f32 %v3001, 2.0
        %v3018 = vmul.f32 %v3002, 2.0
        %v3019 = vmul.f32 %v3003, 2.0
        %v3020 = vmul.f32 %v3004, 2.0
        %v3021 = vmul.f32 %v3005, 2.0
        %v3022 = vmul.f32 %v3006, 2.0
        %v3023 = vmul.f32 %v3007, 2.0
        %v3024 = vmul.f32 %v3008, 2.0
        %v3025 = vmul.f32 %v3009, 2.0
        %v3026 = vmul.f32 %v3010, 2.0
        %v3027 = vmul.f32 %v3011, 2.0
        %v3028 = vmul.f32 %v3012, 2.0
        %v3029 = vmul.f32 %v3013, 1.442695
        %v3030 = vpow.pop %v3029
        %v3031 = vmul.f32 %v3014, 1.442695
        %v3032 = vpow.pop %v3031
        %v3033 = vmul.f32 %v3015, 1.442695
        %v3034 = vpow.pop %v3033
        %v3035 = vmul.f32 %v3016, 1.442695
        %v3036 = vpow.pop %v3035
        %v3037 = vmul.f32 %v3017, 1.442695
        %v3038 = vpow.pop %v3037
        %v3039 = vmul.f32 %v3018, 1.442695
        %v3040 = vpow.pop %v3039
        %v3041 = vmul.f32 %v3019, 1.442695
        %v3042 = vpow.pop %v3041
        %v3043 = vmul.f32 %v3020, 1.442695
        %v3044 = vpow.pop %v3043
        %v3045 = vmul.f32 %v3021, 1.442695
        %v3046 = vpow.pop %v3045
        %v3047 = vmul.f32 %v3022, 1.442695
        %v3048 = vpow.pop %v3047
        %v3049 = vmul.f32 %v3023, 1.442695
        %v3050 = vpow.pop %v3049
        %v3051 = vmul.f32 %v3024, 1.442695
        %v3052 = vpow.pop %v3051
        %v3053 = vmul.f32 %v3025, 1.442695
        %v3054 = vpow.pop %v3053
        %v3055 = vmul.f32 %v3026, 1.442695
        %v3056 = vpow.pop %v3055
        %v3057 = vmul.f32 %v3027, 1.442695
        %v3058 = vpow.pop %v3057
        %v3059 = vmul.f32 %v3028, 1.442695
        %v3060 = vpow.pop %v3059
        %3061 = vadd.xlane.f32.xlu0 %v3030
        %v3062 = vpop.xlane.xlu0 %3061
        %3063 = vadd.xlane.f32.xlu0 %v3032
        %v3064 = vpop.xlane.xlu0 %3063
        %3065 = vadd.xlane.f32.xlu0 %v3034
        %v3066 = vpop.xlane.xlu0 %3065
        %3067 = vadd.xlane.f32.xlu0 %v3036
        %v3068 = vpop.xlane.xlu0 %3067
        %3069 = vadd.xlane.f32.xlu0 %v3038
        %v3070 = vpop.xlane.xlu0 %3069
        %3071 = vadd.xlane.f32.xlu0 %v3040
        %v3072 = vpop.xlane.xlu0 %3071
        %3073 = vadd.xlane.f32.xlu0 %v3042
        %v3074 = vpop.xlane.xlu0 %3073
        %3075 = vadd.xlane.f32.xlu0 %v3044
        %v3076 = vpop.xlane.xlu0 %3075
        %3077 = vadd.xlane.f32.xlu0 %v3046
        %v3078 = vpop.xlane.xlu0 %3077
        %3079 = vadd.xlane.f32.xlu0 %v3048
        %v3080 = vpop.xlane.xlu0 %3079
        %3081 = vadd.xlane.f32.xlu0 %v3050
        %v3082 = vpop.xlane.xlu0 %3081
        %3083 = vadd.xlane.f32.xlu0 %v3052
        %v3084 = vpop.xlane.xlu0 %3083
        %3085 = vadd.xlane.f32.xlu0 %v3054
        %v3086 = vpop.xlane.xlu0 %3085
        %3087 = vadd.xlane.f32.xlu0 %v3056
        %v3088 = vpop.xlane.xlu0 %3087
        %3089 = vadd.xlane.f32.xlu0 %v3058
        %v3090 = vpop.xlane.xlu0 %3089
        %3091 = vadd.xlane.f32.xlu0 %v3060
        %v3092 = vpop.xlane.xlu0 %3091
        %v3093 = vrcp.pop %v3062
        %v3094 = vrcp.pop %v3064
        %v3095 = vrcp.pop %v3066
        %v3096 = vrcp.pop %v3068
        %v3097 = vrcp.pop %v3070
        %v3098 = vrcp.pop %v3072
        %v3099 = vrcp.pop %v3074
        %v3100 = vrcp.pop %v3076
        %v3101 = vrcp.pop %v3078
        %v3102 = vrcp.pop %v3080
        %v3103 = vrcp.pop %v3082
        %v3104 = vrcp.pop %v3084
        %v3105 = vrcp.pop %v3086
        %v3106 = vrcp.pop %v3088
        %v3107 = vrcp.pop %v3090
        %v3108 = vrcp.pop %v3092
        %v3109 = vmul.f32 %v3030, %v3093
        %v3110 = vmul.f32 %v3032, %v3094
        %v3111 = vmul.f32 %v3034, %v3095
        %v3112 = vmul.f32 %v3036, %v3096
        %v3113 = vmul.f32 %v3038, %v3097
        %v3114 = vmul.f32 %v3040, %v3098
        %v3115 = vmul.f32 %v3042, %v3099
        %v3116 = vmul.f32 %v3044, %v3100
        %v3117 = vmul.f32 %v3046, %v3101
        %v3118 = vmul.f32 %v3048, %v3102
        %v3119 = vmul.f32 %v3050, %v3103
        %v3120 = vmul.f32 %v3052, %v3104
        %v3121 = vmul.f32 %v3054, %v3105
        %v3122 = vmul.f32 %v3056, %v3106
        %v3123 = vmul.f32 %v3058, %v3107
        %v3124 = vmul.f32 %v3060, %v3108
        %v3125 = vmax.f32 %v3109, %v2964
        %v3126 = vmax.f32 %v3110, %v2965
        %v3127 = vmax.f32 %v3111, %v2966
        %v3128 = vmax.f32 %v3112, %v2967
        %v3129 = vmax.f32 %v3113, %v2968
        %v3130 = vmax.f32 %v3114, %v2969
        %v3131 = vmax.f32 %v3115, %v2970
        %v3132 = vmax.f32 %v3116, %v2971
        %v3133 = vmax.f32 %v3117, %v2972
        %v3134 = vmax.f32 %v3118, %v2973
        %v3135 = vmax.f32 %v3119, %v2974
        %v3136 = vmax.f32 %v3120, %v2975
        %v3137 = vmax.f32 %v3121, %v2976
        %v3138 = vmax.f32 %v3122, %v2977
        %v3139 = vmax.f32 %v3123, %v2978
        %v3140 = vmax.f32 %v3124, %v2979
        %s3141 = scalar_lea.vmem %s542, 1408 [#allocation19]
        %v3142 = vld [vmem:[%s3141] sm:$0xff]
        %v3143 = vld [vmem:[%s3141 + $0x8] sm:$0xff]
        %v3144 = vld [vmem:[%s3141 + $0x10] sm:$0xff]
        %v3145 = vld [vmem:[%s3141 + $0x18] sm:$0xff]
        %v3146 = vld [vmem:[%s3141 + $0x20] sm:$0xff]
        %v3147 = vld [vmem:[%s3141 + $0x28] sm:$0xff]
        %v3148 = vld [vmem:[%s3141 + $0x30] sm:$0xff]
        %v3149 = vld [vmem:[%s3141 + $0x38] sm:$0xff]
        %v3150 = vld [vmem:[%s3141 + $0x40] sm:$0xff]
        %v3151 = vld [vmem:[%s3141 + $0x48] sm:$0xff]
        %v3152 = vld [vmem:[%s3141 + $0x50] sm:$0xff]
        %v3153 = vld [vmem:[%s3141 + $0x58] sm:$0xff]
        %v3154 = vld [vmem:[%s3141 + $0x60] sm:$0xff]
        %v3155 = vld [vmem:[%s3141 + $0x68] sm:$0xff]
        %v3156 = vld [vmem:[%s3141 + $0x70] sm:$0xff]
        %v3157 = vld [vmem:[%s3141 + $0x78] sm:$0xff]
        %v3158 = vadd.f32 %v3109, %v3142
        %v3159 = vadd.f32 %v3110, %v3143
        %v3160 = vadd.f32 %v3111, %v3144
        %v3161 = vadd.f32 %v3112, %v3145
        %v3162 = vadd.f32 %v3113, %v3146
        %v3163 = vadd.f32 %v3114, %v3147
        %v3164 = vadd.f32 %v3115, %v3148
        %v3165 = vadd.f32 %v3116, %v3149
        %v3166 = vadd.f32 %v3117, %v3150
        %v3167 = vadd.f32 %v3118, %v3151
        %v3168 = vadd.f32 %v3119, %v3152
        %v3169 = vadd.f32 %v3120, %v3153
        %v3170 = vadd.f32 %v3121, %v3154
        %v3171 = vadd.f32 %v3122, %v3155
        %v3172 = vadd.f32 %v3123, %v3156
        %v3173 = vadd.f32 %v3124, %v3157
        %v3174 = vmul.f32 %v3158, 2.0
        %v3175 = vmul.f32 %v3159, 2.0
        %v3176 = vmul.f32 %v3160, 2.0
        %v3177 = vmul.f32 %v3161, 2.0
        %v3178 = vmul.f32 %v3162, 2.0
        %v3179 = vmul.f32 %v3163, 2.0
        %v3180 = vmul.f32 %v3164, 2.0
        %v3181 = vmul.f32 %v3165, 2.0
        %v3182 = vmul.f32 %v3166, 2.0
        %v3183 = vmul.f32 %v3167, 2.0
        %v3184 = vmul.f32 %v3168, 2.0
        %v3185 = vmul.f32 %v3169, 2.0
        %v3186 = vmul.f32 %v3170, 2.0
        %v3187 = vmul.f32 %v3171, 2.0
        %v3188 = vmul.f32 %v3172, 2.0
        %v3189 = vmul.f32 %v3173, 2.0
        %v3190 = vmul.f32 %v3174, 1.442695
        %v3191 = vpow.pop %v3190
        %v3192 = vmul.f32 %v3175, 1.442695
        %v3193 = vpow.pop %v3192
        %v3194 = vmul.f32 %v3176, 1.442695
        %v3195 = vpow.pop %v3194
        %v3196 = vmul.f32 %v3177, 1.442695
        %v3197 = vpow.pop %v3196
        %v3198 = vmul.f32 %v3178, 1.442695
        %v3199 = vpow.pop %v3198
        %v3200 = vmul.f32 %v3179, 1.442695
        %v3201 = vpow.pop %v3200
        %v3202 = vmul.f32 %v3180, 1.442695
        %v3203 = vpow.pop %v3202
        %v3204 = vmul.f32 %v3181, 1.442695
        %v3205 = vpow.pop %v3204
        %v3206 = vmul.f32 %v3182, 1.442695
        %v3207 = vpow.pop %v3206
        %v3208 = vmul.f32 %v3183, 1.442695
        %v3209 = vpow.pop %v3208
        %v3210 = vmul.f32 %v3184, 1.442695
        %v3211 = vpow.pop %v3210
        %v3212 = vmul.f32 %v3185, 1.442695
        %v3213 = vpow.pop %v3212
        %v3214 = vmul.f32 %v3186, 1.442695
        %v3215 = vpow.pop %v3214
        %v3216 = vmul.f32 %v3187, 1.442695
        %v3217 = vpow.pop %v3216
        %v3218 = vmul.f32 %v3188, 1.442695
        %v3219 = vpow.pop %v3218
        %v3220 = vmul.f32 %v3189, 1.442695
        %v3221 = vpow.pop %v3220
        %3222 = vadd.xlane.f32.xlu0 %v3191
        %v3223 = vpop.xlane.xlu0 %3222
        %3224 = vadd.xlane.f32.xlu0 %v3193
        %v3225 = vpop.xlane.xlu0 %3224
        %3226 = vadd.xlane.f32.xlu0 %v3195
        %v3227 = vpop.xlane.xlu0 %3226
        %3228 = vadd.xlane.f32.xlu0 %v3197
        %v3229 = vpop.xlane.xlu0 %3228
        %3230 = vadd.xlane.f32.xlu0 %v3199
        %v3231 = vpop.xlane.xlu0 %3230
        %3232 = vadd.xlane.f32.xlu0 %v3201
        %v3233 = vpop.xlane.xlu0 %3232
        %3234 = vadd.xlane.f32.xlu0 %v3203
        %v3235 = vpop.xlane.xlu0 %3234
        %3236 = vadd.xlane.f32.xlu0 %v3205
        %v3237 = vpop.xlane.xlu0 %3236
        %3238 = vadd.xlane.f32.xlu0 %v3207
        %v3239 = vpop.xlane.xlu0 %3238
        %3240 = vadd.xlane.f32.xlu0 %v3209
        %v3241 = vpop.xlane.xlu0 %3240
        %3242 = vadd.xlane.f32.xlu0 %v3211
        %v3243 = vpop.xlane.xlu0 %3242
        %3244 = vadd.xlane.f32.xlu0 %v3213
        %v3245 = vpop.xlane.xlu0 %3244
        %3246 = vadd.xlane.f32.xlu0 %v3215
        %v3247 = vpop.xlane.xlu0 %3246
        %3248 = vadd.xlane.f32.xlu0 %v3217
        %v3249 = vpop.xlane.xlu0 %3248
        %3250 = vadd.xlane.f32.xlu0 %v3219
        %v3251 = vpop.xlane.xlu0 %3250
        %3252 = vadd.xlane.f32.xlu0 %v3221
        %v3253 = vpop.xlane.xlu0 %3252
        %v3254 = vrcp.pop %v3223
        %v3255 = vrcp.pop %v3225
        %v3256 = vrcp.pop %v3227
        %v3257 = vrcp.pop %v3229
        %v3258 = vrcp.pop %v3231
        %v3259 = vrcp.pop %v3233
        %v3260 = vrcp.pop %v3235
        %v3261 = vrcp.pop %v3237
        %v3262 = vrcp.pop %v3239
        %v3263 = vrcp.pop %v3241
        %v3264 = vrcp.pop %v3243
        %v3265 = vrcp.pop %v3245
        %v3266 = vrcp.pop %v3247
        %v3267 = vrcp.pop %v3249
        %v3268 = vrcp.pop %v3251
        %v3269 = vrcp.pop %v3253
        %v3270 = vmul.f32 %v3191, %v3254
        %v3271 = vmul.f32 %v3193, %v3255
        %v3272 = vmul.f32 %v3195, %v3256
        %v3273 = vmul.f32 %v3197, %v3257
        %v3274 = vmul.f32 %v3199, %v3258
        %v3275 = vmul.f32 %v3201, %v3259
        %v3276 = vmul.f32 %v3203, %v3260
        %v3277 = vmul.f32 %v3205, %v3261
        %v3278 = vmul.f32 %v3207, %v3262
        %v3279 = vmul.f32 %v3209, %v3263
        %v3280 = vmul.f32 %v3211, %v3264
        %v3281 = vmul.f32 %v3213, %v3265
        %v3282 = vmul.f32 %v3215, %v3266
        %v3283 = vmul.f32 %v3217, %v3267
        %v3284 = vmul.f32 %v3219, %v3268
        %v3285 = vmul.f32 %v3221, %v3269
        %v3286 = vmax.f32 %v3270, %v3125
        %v3287 = vmax.f32 %v3271, %v3126
        %v3288 = vmax.f32 %v3272, %v3127
        %v3289 = vmax.f32 %v3273, %v3128
        %v3290 = vmax.f32 %v3274, %v3129
        %v3291 = vmax.f32 %v3275, %v3130
        %v3292 = vmax.f32 %v3276, %v3131
        %v3293 = vmax.f32 %v3277, %v3132
        %v3294 = vmax.f32 %v3278, %v3133
        %v3295 = vmax.f32 %v3279, %v3134
        %v3296 = vmax.f32 %v3280, %v3135
        %v3297 = vmax.f32 %v3281, %v3136
        %v3298 = vmax.f32 %v3282, %v3137
        %v3299 = vmax.f32 %v3283, %v3138
        %v3300 = vmax.f32 %v3284, %v3139
        %v3301 = vmax.f32 %v3285, %v3140
        %s3302 = scalar_lea.vmem %s542, 1536 [#allocation19]
        %v3303 = vld [vmem:[%s3302] sm:$0xff]
        %v3304 = vld [vmem:[%s3302 + $0x8] sm:$0xff]
        %v3305 = vld [vmem:[%s3302 + $0x10] sm:$0xff]
        %v3306 = vld [vmem:[%s3302 + $0x18] sm:$0xff]
        %v3307 = vld [vmem:[%s3302 + $0x20] sm:$0xff]
        %v3308 = vld [vmem:[%s3302 + $0x28] sm:$0xff]
        %v3309 = vld [vmem:[%s3302 + $0x30] sm:$0xff]
        %v3310 = vld [vmem:[%s3302 + $0x38] sm:$0xff]
        %v3311 = vld [vmem:[%s3302 + $0x40] sm:$0xff]
        %v3312 = vld [vmem:[%s3302 + $0x48] sm:$0xff]
        %v3313 = vld [vmem:[%s3302 + $0x50] sm:$0xff]
        %v3314 = vld [vmem:[%s3302 + $0x58] sm:$0xff]
        %v3315 = vld [vmem:[%s3302 + $0x60] sm:$0xff]
        %v3316 = vld [vmem:[%s3302 + $0x68] sm:$0xff]
        %v3317 = vld [vmem:[%s3302 + $0x70] sm:$0xff]
        %v3318 = vld [vmem:[%s3302 + $0x78] sm:$0xff]
        %v3319 = vadd.f32 %v3270, %v3303
        %v3320 = vadd.f32 %v3271, %v3304
        %v3321 = vadd.f32 %v3272, %v3305
        %v3322 = vadd.f32 %v3273, %v3306
        %v3323 = vadd.f32 %v3274, %v3307
        %v3324 = vadd.f32 %v3275, %v3308
        %v3325 = vadd.f32 %v3276, %v3309
        %v3326 = vadd.f32 %v3277, %v3310
        %v3327 = vadd.f32 %v3278, %v3311
        %v3328 = vadd.f32 %v3279, %v3312
        %v3329 = vadd.f32 %v3280, %v3313
        %v3330 = vadd.f32 %v3281, %v3314
        %v3331 = vadd.f32 %v3282, %v3315
        %v3332 = vadd.f32 %v3283, %v3316
        %v3333 = vadd.f32 %v3284, %v3317
        %v3334 = vadd.f32 %v3285, %v3318
        %v3335 = vmul.f32 %v3319, 2.0
        %v3336 = vmul.f32 %v3320, 2.0
        %v3337 = vmul.f32 %v3321, 2.0
        %v3338 = vmul.f32 %v3322, 2.0
        %v3339 = vmul.f32 %v3323, 2.0
        %v3340 = vmul.f32 %v3324, 2.0
        %v3341 = vmul.f32 %v3325, 2.0
        %v3342 = vmul.f32 %v3326, 2.0
        %v3343 = vmul.f32 %v3327, 2.0
        %v3344 = vmul.f32 %v3328, 2.0
        %v3345 = vmul.f32 %v3329, 2.0
        %v3346 = vmul.f32 %v3330, 2.0
        %v3347 = vmul.f32 %v3331, 2.0
        %v3348 = vmul.f32 %v3332, 2.0
        %v3349 = vmul.f32 %v3333, 2.0
        %v3350 = vmul.f32 %v3334, 2.0
        %v3351 = vmul.f32 %v3335, 1.442695
        %v3352 = vpow.pop %v3351
        %v3353 = vmul.f32 %v3336, 1.442695
        %v3354 = vpow.pop %v3353
        %v3355 = vmul.f32 %v3337, 1.442695
        %v3356 = vpow.pop %v3355
        %v3357 = vmul.f32 %v3338, 1.442695
        %v3358 = vpow.pop %v3357
        %v3359 = vmul.f32 %v3339, 1.442695
        %v3360 = vpow.pop %v3359
        %v3361 = vmul.f32 %v3340, 1.442695
        %v3362 = vpow.pop %v3361
        %v3363 = vmul.f32 %v3341, 1.442695
        %v3364 = vpow.pop %v3363
        %v3365 = vmul.f32 %v3342, 1.442695
        %v3366 = vpow.pop %v3365
        %v3367 = vmul.f32 %v3343, 1.442695
        %v3368 = vpow.pop %v3367
        %v3369 = vmul.f32 %v3344, 1.442695
        %v3370 = vpow.pop %v3369
        %v3371 = vmul.f32 %v3345, 1.442695
        %v3372 = vpow.pop %v3371
        %v3373 = vmul.f32 %v3346, 1.442695
        %v3374 = vpow.pop %v3373
        %v3375 = vmul.f32 %v3347, 1.442695
        %v3376 = vpow.pop %v3375
        %v3377 = vmul.f32 %v3348, 1.442695
        %v3378 = vpow.pop %v3377
        %v3379 = vmul.f32 %v3349, 1.442695
        %v3380 = vpow.pop %v3379
        %v3381 = vmul.f32 %v3350, 1.442695
        %v3382 = vpow.pop %v3381
        %3383 = vadd.xlane.f32.xlu0 %v3352
        %v3384 = vpop.xlane.xlu0 %3383
        %3385 = vadd.xlane.f32.xlu0 %v3354
        %v3386 = vpop.xlane.xlu0 %3385
        %3387 = vadd.xlane.f32.xlu0 %v3356
        %v3388 = vpop.xlane.xlu0 %3387
        %3389 = vadd.xlane.f32.xlu0 %v3358
        %v3390 = vpop.xlane.xlu0 %3389
        %3391 = vadd.xlane.f32.xlu0 %v3360
        %v3392 = vpop.xlane.xlu0 %3391
        %3393 = vadd.xlane.f32.xlu0 %v3362
        %v3394 = vpop.xlane.xlu0 %3393
        %3395 = vadd.xlane.f32.xlu0 %v3364
        %v3396 = vpop.xlane.xlu0 %3395
        %3397 = vadd.xlane.f32.xlu0 %v3366
        %v3398 = vpop.xlane.xlu0 %3397
        %3399 = vadd.xlane.f32.xlu0 %v3368
        %v3400 = vpop.xlane.xlu0 %3399
        %3401 = vadd.xlane.f32.xlu0 %v3370
        %v3402 = vpop.xlane.xlu0 %3401
        %3403 = vadd.xlane.f32.xlu0 %v3372
        %v3404 = vpop.xlane.xlu0 %3403
        %3405 = vadd.xlane.f32.xlu0 %v3374
        %v3406 = vpop.xlane.xlu0 %3405
        %3407 = vadd.xlane.f32.xlu0 %v3376
        %v3408 = vpop.xlane.xlu0 %3407
        %3409 = vadd.xlane.f32.xlu0 %v3378
        %v3410 = vpop.xlane.xlu0 %3409
        %3411 = vadd.xlane.f32.xlu0 %v3380
        %v3412 = vpop.xlane.xlu0 %3411
        %3413 = vadd.xlane.f32.xlu0 %v3382
        %v3414 = vpop.xlane.xlu0 %3413
        %v3415 = vrcp.pop %v3384
        %v3416 = vrcp.pop %v3386
        %v3417 = vrcp.pop %v3388
        %v3418 = vrcp.pop %v3390
        %v3419 = vrcp.pop %v3392
        %v3420 = vrcp.pop %v3394
        %v3421 = vrcp.pop %v3396
        %v3422 = vrcp.pop %v3398
        %v3423 = vrcp.pop %v3400
        %v3424 = vrcp.pop %v3402
        %v3425 = vrcp.pop %v3404
        %v3426 = vrcp.pop %v3406
        %v3427 = vrcp.pop %v3408
        %v3428 = vrcp.pop %v3410
        %v3429 = vrcp.pop %v3412
        %v3430 = vrcp.pop %v3414
        %v3431 = vmul.f32 %v3352, %v3415
        %v3432 = vmul.f32 %v3354, %v3416
        %v3433 = vmul.f32 %v3356, %v3417
        %v3434 = vmul.f32 %v3358, %v3418
        %v3435 = vmul.f32 %v3360, %v3419
        %v3436 = vmul.f32 %v3362, %v3420
        %v3437 = vmul.f32 %v3364, %v3421
        %v3438 = vmul.f32 %v3366, %v3422
        %v3439 = vmul.f32 %v3368, %v3423
        %v3440 = vmul.f32 %v3370, %v3424
        %v3441 = vmul.f32 %v3372, %v3425
        %v3442 = vmul.f32 %v3374, %v3426
        %v3443 = vmul.f32 %v3376, %v3427
        %v3444 = vmul.f32 %v3378, %v3428
        %v3445 = vmul.f32 %v3380, %v3429
        %v3446 = vmul.f32 %v3382, %v3430
        %v3447 = vmax.f32 %v3431, %v3286
        %v3448 = vmax.f32 %v3432, %v3287
        %v3449 = vmax.f32 %v3433, %v3288
        %v3450 = vmax.f32 %v3434, %v3289
        %v3451 = vmax.f32 %v3435, %v3290
        %v3452 = vmax.f32 %v3436, %v3291
        %v3453 = vmax.f32 %v3437, %v3292
        %v3454 = vmax.f32 %v3438, %v3293
        %v3455 = vmax.f32 %v3439, %v3294
        %v3456 = vmax.f32 %v3440, %v3295
        %v3457 = vmax.f32 %v3441, %v3296
        %v3458 = vmax.f32 %v3442, %v3297
        %v3459 = vmax.f32 %v3443, %v3298
        %v3460 = vmax.f32 %v3444, %v3299
        %v3461 = vmax.f32 %v3445, %v3300
        %v3462 = vmax.f32 %v3446, %v3301
        %s3463 = scalar_lea.vmem %s542, 1664 [#allocation19]
        %v3464 = vld [vmem:[%s3463] sm:$0xff]
        %v3465 = vld [vmem:[%s3463 + $0x8] sm:$0xff]
        %v3466 = vld [vmem:[%s3463 + $0x10] sm:$0xff]
        %v3467 = vld [vmem:[%s3463 + $0x18] sm:$0xff]
        %v3468 = vld [vmem:[%s3463 + $0x20] sm:$0xff]
        %v3469 = vld [vmem:[%s3463 + $0x28] sm:$0xff]
        %v3470 = vld [vmem:[%s3463 + $0x30] sm:$0xff]
        %v3471 = vld [vmem:[%s3463 + $0x38] sm:$0xff]
        %v3472 = vld [vmem:[%s3463 + $0x40] sm:$0xff]
        %v3473 = vld [vmem:[%s3463 + $0x48] sm:$0xff]
        %v3474 = vld [vmem:[%s3463 + $0x50] sm:$0xff]
        %v3475 = vld [vmem:[%s3463 + $0x58] sm:$0xff]
        %v3476 = vld [vmem:[%s3463 + $0x60] sm:$0xff]
        %v3477 = vld [vmem:[%s3463 + $0x68] sm:$0xff]
        %v3478 = vld [vmem:[%s3463 + $0x70] sm:$0xff]
        %v3479 = vld [vmem:[%s3463 + $0x78] sm:$0xff]
        %v3480 = vadd.f32 %v3431, %v3464
        %v3481 = vadd.f32 %v3432, %v3465
        %v3482 = vadd.f32 %v3433, %v3466
        %v3483 = vadd.f32 %v3434, %v3467
        %v3484 = vadd.f32 %v3435, %v3468
        %v3485 = vadd.f32 %v3436, %v3469
        %v3486 = vadd.f32 %v3437, %v3470
        %v3487 = vadd.f32 %v3438, %v3471
        %v3488 = vadd.f32 %v3439, %v3472
        %v3489 = vadd.f32 %v3440, %v3473
        %v3490 = vadd.f32 %v3441, %v3474
        %v3491 = vadd.f32 %v3442, %v3475
        %v3492 = vadd.f32 %v3443, %v3476
        %v3493 = vadd.f32 %v3444, %v3477
        %v3494 = vadd.f32 %v3445, %v3478
        %v3495 = vadd.f32 %v3446, %v3479
        %v3496 = vmul.f32 %v3480, 2.0
        %v3497 = vmul.f32 %v3481, 2.0
        %v3498 = vmul.f32 %v3482, 2.0
        %v3499 = vmul.f32 %v3483, 2.0
        %v3500 = vmul.f32 %v3484, 2.0
        %v3501 = vmul.f32 %v3485, 2.0
        %v3502 = vmul.f32 %v3486, 2.0
        %v3503 = vmul.f32 %v3487, 2.0
        %v3504 = vmul.f32 %v3488, 2.0
        %v3505 = vmul.f32 %v3489, 2.0
        %v3506 = vmul.f32 %v3490, 2.0
        %v3507 = vmul.f32 %v3491, 2.0
        %v3508 = vmul.f32 %v3492, 2.0
        %v3509 = vmul.f32 %v3493, 2.0
        %v3510 = vmul.f32 %v3494, 2.0
        %v3511 = vmul.f32 %v3495, 2.0
        %v3512 = vmul.f32 %v3496, 1.442695
        %v3513 = vpow.pop %v3512
        %v3514 = vmul.f32 %v3497, 1.442695
        %v3515 = vpow.pop %v3514
        %v3516 = vmul.f32 %v3498, 1.442695
        %v3517 = vpow.pop %v3516
        %v3518 = vmul.f32 %v3499, 1.442695
        %v3519 = vpow.pop %v3518
        %v3520 = vmul.f32 %v3500, 1.442695
        %v3521 = vpow.pop %v3520
        %v3522 = vmul.f32 %v3501, 1.442695
        %v3523 = vpow.pop %v3522
        %v3524 = vmul.f32 %v3502, 1.442695
        %v3525 = vpow.pop %v3524
        %v3526 = vmul.f32 %v3503, 1.442695
        %v3527 = vpow.pop %v3526
        %v3528 = vmul.f32 %v3504, 1.442695
        %v3529 = vpow.pop %v3528
        %v3530 = vmul.f32 %v3505, 1.442695
        %v3531 = vpow.pop %v3530
        %v3532 = vmul.f32 %v3506, 1.442695
        %v3533 = vpow.pop %v3532
        %v3534 = vmul.f32 %v3507, 1.442695
        %v3535 = vpow.pop %v3534
        %v3536 = vmul.f32 %v3508, 1.442695
        %v3537 = vpow.pop %v3536
        %v3538 = vmul.f32 %v3509, 1.442695
        %v3539 = vpow.pop %v3538
        %v3540 = vmul.f32 %v3510, 1.442695
        %v3541 = vpow.pop %v3540
        %v3542 = vmul.f32 %v3511, 1.442695
        %v3543 = vpow.pop %v3542
        %3544 = vadd.xlane.f32.xlu0 %v3513
        %v3545 = vpop.xlane.xlu0 %3544
        %3546 = vadd.xlane.f32.xlu0 %v3515
        %v3547 = vpop.xlane.xlu0 %3546
        %3548 = vadd.xlane.f32.xlu0 %v3517
        %v3549 = vpop.xlane.xlu0 %3548
        %3550 = vadd.xlane.f32.xlu0 %v3519
        %v3551 = vpop.xlane.xlu0 %3550
        %3552 = vadd.xlane.f32.xlu0 %v3521
        %v3553 = vpop.xlane.xlu0 %3552
        %3554 = vadd.xlane.f32.xlu0 %v3523
        %v3555 = vpop.xlane.xlu0 %3554
        %3556 = vadd.xlane.f32.xlu0 %v3525
        %v3557 = vpop.xlane.xlu0 %3556
        %3558 = vadd.xlane.f32.xlu0 %v3527
        %v3559 = vpop.xlane.xlu0 %3558
        %3560 = vadd.xlane.f32.xlu0 %v3529
        %v3561 = vpop.xlane.xlu0 %3560
        %3562 = vadd.xlane.f32.xlu0 %v3531
        %v3563 = vpop.xlane.xlu0 %3562
        %3564 = vadd.xlane.f32.xlu0 %v3533
        %v3565 = vpop.xlane.xlu0 %3564
        %3566 = vadd.xlane.f32.xlu0 %v3535
        %v3567 = vpop.xlane.xlu0 %3566
        %3568 = vadd.xlane.f32.xlu0 %v3537
        %v3569 = vpop.xlane.xlu0 %3568
        %3570 = vadd.xlane.f32.xlu0 %v3539
        %v3571 = vpop.xlane.xlu0 %3570
        %3572 = vadd.xlane.f32.xlu0 %v3541
        %v3573 = vpop.xlane.xlu0 %3572
        %3574 = vadd.xlane.f32.xlu0 %v3543
        %v3575 = vpop.xlane.xlu0 %3574
        %v3576 = vrcp.pop %v3545
        %v3577 = vrcp.pop %v3547
        %v3578 = vrcp.pop %v3549
        %v3579 = vrcp.pop %v3551
        %v3580 = vrcp.pop %v3553
        %v3581 = vrcp.pop %v3555
        %v3582 = vrcp.pop %v3557
        %v3583 = vrcp.pop %v3559
        %v3584 = vrcp.pop %v3561
        %v3585 = vrcp.pop %v3563
        %v3586 = vrcp.pop %v3565
        %v3587 = vrcp.pop %v3567
        %v3588 = vrcp.pop %v3569
        %v3589 = vrcp.pop %v3571
        %v3590 = vrcp.pop %v3573
        %v3591 = vrcp.pop %v3575
        %v3592 = vmul.f32 %v3513, %v3576
        %v3593 = vmul.f32 %v3515, %v3577
        %v3594 = vmul.f32 %v3517, %v3578
        %v3595 = vmul.f32 %v3519, %v3579
        %v3596 = vmul.f32 %v3521, %v3580
        %v3597 = vmul.f32 %v3523, %v3581
        %v3598 = vmul.f32 %v3525, %v3582
        %v3599 = vmul.f32 %v3527, %v3583
        %v3600 = vmul.f32 %v3529, %v3584
        %v3601 = vmul.f32 %v3531, %v3585
        %v3602 = vmul.f32 %v3533, %v3586
        %v3603 = vmul.f32 %v3535, %v3587
        %v3604 = vmul.f32 %v3537, %v3588
        %v3605 = vmul.f32 %v3539, %v3589
        %v3606 = vmul.f32 %v3541, %v3590
        %v3607 = vmul.f32 %v3543, %v3591
        %v3608 = vmax.f32 %v3592, %v3447
        %v3609 = vmax.f32 %v3593, %v3448
        %v3610 = vmax.f32 %v3594, %v3449
        %v3611 = vmax.f32 %v3595, %v3450
        %v3612 = vmax.f32 %v3596, %v3451
        %v3613 = vmax.f32 %v3597, %v3452
        %v3614 = vmax.f32 %v3598, %v3453
        %v3615 = vmax.f32 %v3599, %v3454
        %v3616 = vmax.f32 %v3600, %v3455
        %v3617 = vmax.f32 %v3601, %v3456
        %v3618 = vmax.f32 %v3602, %v3457
        %v3619 = vmax.f32 %v3603, %v3458
        %v3620 = vmax.f32 %v3604, %v3459
        %v3621 = vmax.f32 %v3605, %v3460
        %v3622 = vmax.f32 %v3606, %v3461
        %v3623 = vmax.f32 %v3607, %v3462
        %s3624 = scalar_lea.vmem %s542, 1792 [#allocation19]
        %v3625 = vld [vmem:[%s3624] sm:$0xff]
        %v3626 = vld [vmem:[%s3624 + $0x8] sm:$0xff]
        %v3627 = vld [vmem:[%s3624 + $0x10] sm:$0xff]
        %v3628 = vld [vmem:[%s3624 + $0x18] sm:$0xff]
        %v3629 = vld [vmem:[%s3624 + $0x20] sm:$0xff]
        %v3630 = vld [vmem:[%s3624 + $0x28] sm:$0xff]
        %v3631 = vld [vmem:[%s3624 + $0x30] sm:$0xff]
        %v3632 = vld [vmem:[%s3624 + $0x38] sm:$0xff]
        %v3633 = vld [vmem:[%s3624 + $0x40] sm:$0xff]
        %v3634 = vld [vmem:[%s3624 + $0x48] sm:$0xff]
        %v3635 = vld [vmem:[%s3624 + $0x50] sm:$0xff]
        %v3636 = vld [vmem:[%s3624 + $0x58] sm:$0xff]
        %v3637 = vld [vmem:[%s3624 + $0x60] sm:$0xff]
        %v3638 = vld [vmem:[%s3624 + $0x68] sm:$0xff]
        %v3639 = vld [vmem:[%s3624 + $0x70] sm:$0xff]
        %v3640 = vld [vmem:[%s3624 + $0x78] sm:$0xff]
        %v3641 = vadd.f32 %v3592, %v3625
        %v3642 = vadd.f32 %v3593, %v3626
        %v3643 = vadd.f32 %v3594, %v3627
        %v3644 = vadd.f32 %v3595, %v3628
        %v3645 = vadd.f32 %v3596, %v3629
        %v3646 = vadd.f32 %v3597, %v3630
        %v3647 = vadd.f32 %v3598, %v3631
        %v3648 = vadd.f32 %v3599, %v3632
        %v3649 = vadd.f32 %v3600, %v3633
        %v3650 = vadd.f32 %v3601, %v3634
        %v3651 = vadd.f32 %v3602, %v3635
        %v3652 = vadd.f32 %v3603, %v3636
        %v3653 = vadd.f32 %v3604, %v3637
        %v3654 = vadd.f32 %v3605, %v3638
        %v3655 = vadd.f32 %v3606, %v3639
        %v3656 = vadd.f32 %v3607, %v3640
        %v3657 = vmul.f32 %v3641, 2.0
        %v3658 = vmul.f32 %v3642, 2.0
        %v3659 = vmul.f32 %v3643, 2.0
        %v3660 = vmul.f32 %v3644, 2.0
        %v3661 = vmul.f32 %v3645, 2.0
        %v3662 = vmul.f32 %v3646, 2.0
        %v3663 = vmul.f32 %v3647, 2.0
        %v3664 = vmul.f32 %v3648, 2.0
        %v3665 = vmul.f32 %v3649, 2.0
        %v3666 = vmul.f32 %v3650, 2.0
        %v3667 = vmul.f32 %v3651, 2.0
        %v3668 = vmul.f32 %v3652, 2.0
        %v3669 = vmul.f32 %v3653, 2.0
        %v3670 = vmul.f32 %v3654, 2.0
        %v3671 = vmul.f32 %v3655, 2.0
        %v3672 = vmul.f32 %v3656, 2.0
        %v3673 = vmul.f32 %v3657, 1.442695
        %v3674 = vpow.pop %v3673
        %v3675 = vmul.f32 %v3658, 1.442695
        %v3676 = vpow.pop %v3675
        %v3677 = vmul.f32 %v3659, 1.442695
        %v3678 = vpow.pop %v3677
        %v3679 = vmul.f32 %v3660, 1.442695
        %v3680 = vpow.pop %v3679
        %v3681 = vmul.f32 %v3661, 1.442695
        %v3682 = vpow.pop %v3681
        %v3683 = vmul.f32 %v3662, 1.442695
        %v3684 = vpow.pop %v3683
        %v3685 = vmul.f32 %v3663, 1.442695
        %v3686 = vpow.pop %v3685
        %v3687 = vmul.f32 %v3664, 1.442695
        %v3688 = vpow.pop %v3687
        %v3689 = vmul.f32 %v3665, 1.442695
        %v3690 = vpow.pop %v3689
        %v3691 = vmul.f32 %v3666, 1.442695
        %v3692 = vpow.pop %v3691
        %v3693 = vmul.f32 %v3667, 1.442695
        %v3694 = vpow.pop %v3693
        %v3695 = vmul.f32 %v3668, 1.442695
        %v3696 = vpow.pop %v3695
        %v3697 = vmul.f32 %v3669, 1.442695
        %v3698 = vpow.pop %v3697
        %v3699 = vmul.f32 %v3670, 1.442695
        %v3700 = vpow.pop %v3699
        %v3701 = vmul.f32 %v3671, 1.442695
        %v3702 = vpow.pop %v3701
        %v3703 = vmul.f32 %v3672, 1.442695
        %v3704 = vpow.pop %v3703
        %3705 = vadd.xlane.f32.xlu0 %v3674
        %v3706 = vpop.xlane.xlu0 %3705
        %3707 = vadd.xlane.f32.xlu0 %v3676
        %v3708 = vpop.xlane.xlu0 %3707
        %3709 = vadd.xlane.f32.xlu0 %v3678
        %v3710 = vpop.xlane.xlu0 %3709
        %3711 = vadd.xlane.f32.xlu0 %v3680
        %v3712 = vpop.xlane.xlu0 %3711
        %3713 = vadd.xlane.f32.xlu0 %v3682
        %v3714 = vpop.xlane.xlu0 %3713
        %3715 = vadd.xlane.f32.xlu0 %v3684
        %v3716 = vpop.xlane.xlu0 %3715
        %3717 = vadd.xlane.f32.xlu0 %v3686
        %v3718 = vpop.xlane.xlu0 %3717
        %3719 = vadd.xlane.f32.xlu0 %v3688
        %v3720 = vpop.xlane.xlu0 %3719
        %3721 = vadd.xlane.f32.xlu0 %v3690
        %v3722 = vpop.xlane.xlu0 %3721
        %3723 = vadd.xlane.f32.xlu0 %v3692
        %v3724 = vpop.xlane.xlu0 %3723
        %3725 = vadd.xlane.f32.xlu0 %v3694
        %v3726 = vpop.xlane.xlu0 %3725
        %3727 = vadd.xlane.f32.xlu0 %v3696
        %v3728 = vpop.xlane.xlu0 %3727
        %3729 = vadd.xlane.f32.xlu0 %v3698
        %v3730 = vpop.xlane.xlu0 %3729
        %3731 = vadd.xlane.f32.xlu0 %v3700
        %v3732 = vpop.xlane.xlu0 %3731
        %3733 = vadd.xlane.f32.xlu0 %v3702
        %v3734 = vpop.xlane.xlu0 %3733
        %3735 = vadd.xlane.f32.xlu0 %v3704
        %v3736 = vpop.xlane.xlu0 %3735
        %v3737 = vrcp.pop %v3706
        %v3738 = vrcp.pop %v3708
        %v3739 = vrcp.pop %v3710
        %v3740 = vrcp.pop %v3712
        %v3741 = vrcp.pop %v3714
        %v3742 = vrcp.pop %v3716
        %v3743 = vrcp.pop %v3718
        %v3744 = vrcp.pop %v3720
        %v3745 = vrcp.pop %v3722
        %v3746 = vrcp.pop %v3724
        %v3747 = vrcp.pop %v3726
        %v3748 = vrcp.pop %v3728
        %v3749 = vrcp.pop %v3730
        %v3750 = vrcp.pop %v3732
        %v3751 = vrcp.pop %v3734
        %v3752 = vrcp.pop %v3736
        %v3753 = vmul.f32 %v3674, %v3737
        %v3754 = vmul.f32 %v3676, %v3738
        %v3755 = vmul.f32 %v3678, %v3739
        %v3756 = vmul.f32 %v3680, %v3740
        %v3757 = vmul.f32 %v3682, %v3741
        %v3758 = vmul.f32 %v3684, %v3742
        %v3759 = vmul.f32 %v3686, %v3743
        %v3760 = vmul.f32 %v3688, %v3744
        %v3761 = vmul.f32 %v3690, %v3745
        %v3762 = vmul.f32 %v3692, %v3746
        %v3763 = vmul.f32 %v3694, %v3747
        %v3764 = vmul.f32 %v3696, %v3748
        %v3765 = vmul.f32 %v3698, %v3749
        %v3766 = vmul.f32 %v3700, %v3750
        %v3767 = vmul.f32 %v3702, %v3751
        %v3768 = vmul.f32 %v3704, %v3752
        %v3769 = vmax.f32 %v3753, %v3608
        %v3770 = vmax.f32 %v3754, %v3609
        %v3771 = vmax.f32 %v3755, %v3610
        %v3772 = vmax.f32 %v3756, %v3611
        %v3773 = vmax.f32 %v3757, %v3612
        %v3774 = vmax.f32 %v3758, %v3613
        %v3775 = vmax.f32 %v3759, %v3614
        %v3776 = vmax.f32 %v3760, %v3615
        %v3777 = vmax.f32 %v3761, %v3616
        %v3778 = vmax.f32 %v3762, %v3617
        %v3779 = vmax.f32 %v3763, %v3618
        %v3780 = vmax.f32 %v3764, %v3619
        %v3781 = vmax.f32 %v3765, %v3620
        %v3782 = vmax.f32 %v3766, %v3621
        %v3783 = vmax.f32 %v3767, %v3622
        %v3784 = vmax.f32 %v3768, %v3623
        %s3785 = scalar_lea.vmem %s542, 1920 [#allocation19]
        %v3786 = vld [vmem:[%s3785] sm:$0xff]
        %v3787 = vld [vmem:[%s3785 + $0x8] sm:$0xff]
        %v3788 = vld [vmem:[%s3785 + $0x10] sm:$0xff]
        %v3789 = vld [vmem:[%s3785 + $0x18] sm:$0xff]
        %v3790 = vld [vmem:[%s3785 + $0x20] sm:$0xff]
        %v3791 = vld [vmem:[%s3785 + $0x28] sm:$0xff]
        %v3792 = vld [vmem:[%s3785 + $0x30] sm:$0xff]
        %v3793 = vld [vmem:[%s3785 + $0x38] sm:$0xff]
        %v3794 = vld [vmem:[%s3785 + $0x40] sm:$0xff]
        %v3795 = vld [vmem:[%s3785 + $0x48] sm:$0xff]
        %v3796 = vld [vmem:[%s3785 + $0x50] sm:$0xff]
        %v3797 = vld [vmem:[%s3785 + $0x58] sm:$0xff]
        %v3798 = vld [vmem:[%s3785 + $0x60] sm:$0xff]
        %v3799 = vld [vmem:[%s3785 + $0x68] sm:$0xff]
        %v3800 = vld [vmem:[%s3785 + $0x70] sm:$0xff]
        %v3801 = vld [vmem:[%s3785 + $0x78] sm:$0xff]
        %v3802 = vadd.f32 %v3753, %v3786
        %v3803 = vadd.f32 %v3754, %v3787
        %v3804 = vadd.f32 %v3755, %v3788
        %v3805 = vadd.f32 %v3756, %v3789
        %v3806 = vadd.f32 %v3757, %v3790
        %v3807 = vadd.f32 %v3758, %v3791
        %v3808 = vadd.f32 %v3759, %v3792
        %v3809 = vadd.f32 %v3760, %v3793
        %v3810 = vadd.f32 %v3761, %v3794
        %v3811 = vadd.f32 %v3762, %v3795
        %v3812 = vadd.f32 %v3763, %v3796
        %v3813 = vadd.f32 %v3764, %v3797
        %v3814 = vadd.f32 %v3765, %v3798
        %v3815 = vadd.f32 %v3766, %v3799
        %v3816 = vadd.f32 %v3767, %v3800
        %v3817 = vadd.f32 %v3768, %v3801
        %v3818 = vmul.f32 %v3802, 2.0
        %v3819 = vmul.f32 %v3803, 2.0
        %v3820 = vmul.f32 %v3804, 2.0
        %v3821 = vmul.f32 %v3805, 2.0
        %v3822 = vmul.f32 %v3806, 2.0
        %v3823 = vmul.f32 %v3807, 2.0
        %v3824 = vmul.f32 %v3808, 2.0
        %v3825 = vmul.f32 %v3809, 2.0
        %v3826 = vmul.f32 %v3810, 2.0
        %v3827 = vmul.f32 %v3811, 2.0
        %v3828 = vmul.f32 %v3812, 2.0
        %v3829 = vmul.f32 %v3813, 2.0
        %v3830 = vmul.f32 %v3814, 2.0
        %v3831 = vmul.f32 %v3815, 2.0
        %v3832 = vmul.f32 %v3816, 2.0
        %v3833 = vmul.f32 %v3817, 2.0
        %v3834 = vmul.f32 %v3818, 1.442695
        %v3835 = vpow.pop %v3834
        %v3836 = vmul.f32 %v3819, 1.442695
        %v3837 = vpow.pop %v3836
        %v3838 = vmul.f32 %v3820, 1.442695
        %v3839 = vpow.pop %v3838
        %v3840 = vmul.f32 %v3821, 1.442695
        %v3841 = vpow.pop %v3840
        %v3842 = vmul.f32 %v3822, 1.442695
        %v3843 = vpow.pop %v3842
        %v3844 = vmul.f32 %v3823, 1.442695
        %v3845 = vpow.pop %v3844
        %v3846 = vmul.f32 %v3824, 1.442695
        %v3847 = vpow.pop %v3846
        %v3848 = vmul.f32 %v3825, 1.442695
        %v3849 = vpow.pop %v3848
        %v3850 = vmul.f32 %v3826, 1.442695
        %v3851 = vpow.pop %v3850
        %v3852 = vmul.f32 %v3827, 1.442695
        %v3853 = vpow.pop %v3852
        %v3854 = vmul.f32 %v3828, 1.442695
        %v3855 = vpow.pop %v3854
        %v3856 = vmul.f32 %v3829, 1.442695
        %v3857 = vpow.pop %v3856
        %v3858 = vmul.f32 %v3830, 1.442695
        %v3859 = vpow.pop %v3858
        %v3860 = vmul.f32 %v3831, 1.442695
        %v3861 = vpow.pop %v3860
        %v3862 = vmul.f32 %v3832, 1.442695
        %v3863 = vpow.pop %v3862
        %v3864 = vmul.f32 %v3833, 1.442695
        %v3865 = vpow.pop %v3864
        %3866 = vadd.xlane.f32.xlu0 %v3835
        %v3867 = vpop.xlane.xlu0 %3866
        %3868 = vadd.xlane.f32.xlu0 %v3837
        %v3869 = vpop.xlane.xlu0 %3868
        %3870 = vadd.xlane.f32.xlu0 %v3839
        %v3871 = vpop.xlane.xlu0 %3870
        %3872 = vadd.xlane.f32.xlu0 %v3841
        %v3873 = vpop.xlane.xlu0 %3872
        %3874 = vadd.xlane.f32.xlu0 %v3843
        %v3875 = vpop.xlane.xlu0 %3874
        %3876 = vadd.xlane.f32.xlu0 %v3845
        %v3877 = vpop.xlane.xlu0 %3876
        %3878 = vadd.xlane.f32.xlu0 %v3847
        %v3879 = vpop.xlane.xlu0 %3878
        %3880 = vadd.xlane.f32.xlu0 %v3849
        %v3881 = vpop.xlane.xlu0 %3880
        %3882 = vadd.xlane.f32.xlu0 %v3851
        %v3883 = vpop.xlane.xlu0 %3882
        %3884 = vadd.xlane.f32.xlu0 %v3853
        %v3885 = vpop.xlane.xlu0 %3884
        %3886 = vadd.xlane.f32.xlu0 %v3855
        %v3887 = vpop.xlane.xlu0 %3886
        %3888 = vadd.xlane.f32.xlu0 %v3857
        %v3889 = vpop.xlane.xlu0 %3888
        %3890 = vadd.xlane.f32.xlu0 %v3859
        %v3891 = vpop.xlane.xlu0 %3890
        %3892 = vadd.xlane.f32.xlu0 %v3861
        %v3893 = vpop.xlane.xlu0 %3892
        %3894 = vadd.xlane.f32.xlu0 %v3863
        %v3895 = vpop.xlane.xlu0 %3894
        %3896 = vadd.xlane.f32.xlu0 %v3865
        %v3897 = vpop.xlane.xlu0 %3896
        %v3898 = vrcp.pop %v3867
        %v3899 = vrcp.pop %v3869
        %v3900 = vrcp.pop %v3871
        %v3901 = vrcp.pop %v3873
        %v3902 = vrcp.pop %v3875
        %v3903 = vrcp.pop %v3877
        %v3904 = vrcp.pop %v3879
        %v3905 = vrcp.pop %v3881
        %v3906 = vrcp.pop %v3883
        %v3907 = vrcp.pop %v3885
        %v3908 = vrcp.pop %v3887
        %v3909 = vrcp.pop %v3889
        %v3910 = vrcp.pop %v3891
        %v3911 = vrcp.pop %v3893
        %v3912 = vrcp.pop %v3895
        %v3913 = vrcp.pop %v3897
        %v3914 = vmul.f32 %v3835, %v3898
        %v3915 = vmul.f32 %v3837, %v3899
        %v3916 = vmul.f32 %v3839, %v3900
        %v3917 = vmul.f32 %v3841, %v3901
        %v3918 = vmul.f32 %v3843, %v3902
        %v3919 = vmul.f32 %v3845, %v3903
        %v3920 = vmul.f32 %v3847, %v3904
        %v3921 = vmul.f32 %v3849, %v3905
        %v3922 = vmul.f32 %v3851, %v3906
        %v3923 = vmul.f32 %v3853, %v3907
        %v3924 = vmul.f32 %v3855, %v3908
        %v3925 = vmul.f32 %v3857, %v3909
        %v3926 = vmul.f32 %v3859, %v3910
        %v3927 = vmul.f32 %v3861, %v3911
        %v3928 = vmul.f32 %v3863, %v3912
        %v3929 = vmul.f32 %v3865, %v3913
        %v3930 = vmax.f32 %v3914, %v3769
        %v3931 = vmax.f32 %v3915, %v3770
        %v3932 = vmax.f32 %v3916, %v3771
        %v3933 = vmax.f32 %v3917, %v3772
        %v3934 = vmax.f32 %v3918, %v3773
        %v3935 = vmax.f32 %v3919, %v3774
        %v3936 = vmax.f32 %v3920, %v3775
        %v3937 = vmax.f32 %v3921, %v3776
        %v3938 = vmax.f32 %v3922, %v3777
        %v3939 = vmax.f32 %v3923, %v3778
        %v3940 = vmax.f32 %v3924, %v3779
        %v3941 = vmax.f32 %v3925, %v3780
        %v3942 = vmax.f32 %v3926, %v3781
        %v3943 = vmax.f32 %v3927, %v3782
        %v3944 = vmax.f32 %v3928, %v3783
        %v3945 = vmax.f32 %v3929, %v3784
        %3946 = vst [vmem:[%s585] sm:$0xff] %v3930
        %3947 = vst [vmem:[%s585 + $0x8] sm:$0xff] %v3931
        %3948 = vst [vmem:[%s585 + $0x10] sm:$0xff] %v3932
        %3949 = vst [vmem:[%s585 + $0x18] sm:$0xff] %v3933
        %3950 = vst [vmem:[%s585 + $0x20] sm:$0xff] %v3934
        %3951 = vst [vmem:[%s585 + $0x28] sm:$0xff] %v3935
        %3952 = vst [vmem:[%s585 + $0x30] sm:$0xff] %v3936
        %3953 = vst [vmem:[%s585 + $0x38] sm:$0xff] %v3937
        %3954 = vst [vmem:[%s585 + $0x40] sm:$0xff] %v3938
        %3955 = vst [vmem:[%s585 + $0x48] sm:$0xff] %v3939
        %3956 = vst [vmem:[%s585 + $0x50] sm:$0xff] %v3940
        %3957 = vst [vmem:[%s585 + $0x58] sm:$0xff] %v3941
        %3958 = vst [vmem:[%s585 + $0x60] sm:$0xff] %v3942
        %3959 = vst [vmem:[%s585 + $0x68] sm:$0xff] %v3943
        %3960 = vst [vmem:[%s585 + $0x70] sm:$0xff] %v3944
        %3961 = vst [vmem:[%s585 + $0x78] sm:$0xff] %v3945
        %s3962 = sand.u32 %s282, 1
        %s3963 = scalar_lea.sflag [#allocation4], %s3962
        %s3964 = sand.u32 %s282, 1
        %s3965 = smul.addr %s3964, 128
        %s3966 = scalar_lea.vmem [#allocation20], %s3965
        // Predicated region
        $region109: #{masker_forward.1} parent=63 // pred_check
          %p3967 = pneg %p292
        $region110: #{masker_forward.1} parent=63 // pred_check_branch
          %3969 = sbr.rel (%p3967) target = $region112
        $region111: #{masker_forward.1} parent=63 // pred_region
          %s3970 = smul.u32 16, %s33
          %s3972 = ssub.s32 2048, 2048
          %3973 = vsyncadd %s3963, %s3972
          %s3974 = smul.addr %s3970, 128
          %s3975 = scalar_lea.hbm %s11, %s3974
          %s3976 = sshll.u32 %s3966, 4
          %s3977 = int_to_ptr.vmem [resolvable:$true] %s3976
          %3982 = dma.vmem_to_hbm [thread:$0]  %s3977, 2048, %s3975, %s3963, 128, 128, 8
        $region112: #{masker_forward.1} parent=63 // pred_fallthru
          _
      $region64: #{masker_forward.1} parent=5 // pred_fallthru
        _
      %p3983 = scmp.le.s32.totalorder 2, %s28
      // Predicated region
      $region113: #{masker_forward.1} parent=5 // pred_check
        %p3984 = pneg %p3983
      $region114: #{masker_forward.1} parent=5 // pred_check_branch
        %3986 = sbr.rel (%p3984) target = $region116
      $region115: #{masker_forward.1} parent=5 // pred_region
        %s3987 = ssub.s32 %s28, 2
        // Predicated region
        $region117: #{masker_forward.1} parent=115 // pred_check
          %p3988 = pneg %p298
        $region118: #{masker_forward.1} parent=115 // pred_check_branch
          %3990 = sbr.rel (%p3988) target = $region120
        $region119: #{masker_forward.1} parent=115 // pred_region
          %s3991 = sand.u32 %s283, 1
          %s3992 = scalar_lea.sflag [#allocation4], %s3991
          %s3993 = sand.u32 %s283, 1
          %s3994 = smul.addr %s3993, 128
          %s3995 = scalar_lea.vmem [#allocation20], %s3994
          %3996 = dma.done %s3992, 2048
        $region120: #{masker_forward.1} parent=115 // pred_fallthru
          _
      $region116: #{masker_forward.1} parent=5 // pred_fallthru
        _
    $region6: #{masker_forward.1} parent=1 // loop_footer
      %s32 = sadd.s32 1, %s28
    $region7: #{masker_forward.1} parent=1 // loop_footer_branch
      %27 = sbr.rel target = $region3
    $region8: #{masker_forward.1} parent=1 // loop_exit
      _
    %3997 = vsyncpa [#allocation3], 1
    %s3998 = scalar_lea.sflag [#allocation3], 1
    %3999 = vsyncpa %s3998, 1
    %4000 = vsyncpa [#allocation6], 1
    %4001 = vsyncpa [#allocation9], 1
    %4002 = vsyncpa [#allocation12], 1
    %4003 = vsyncpa [#allocation15], 1
    %4004 = vsyncpa [#allocation18], 1
    %4005 = vsyncpa [#allocation4], 1
    %s4006 = scalar_lea.sflag [#allocation4], 1
    %4007 = vsyncpa %s4006, 1

</llo_original>
